<compile_context>
chip_gen: v7x
topology: tpu7x:2x2x1
jax: 0.10.0
libtpu: 0.0.40
codegen_flags: <defaults>
</compile_context>

<pallas_src>
import jax
import jax.numpy as jnp
import numpy as np
from jax.experimental import pallas as pl
from jax.experimental.pallas import tpu as pltpu

# ---- model hyper-parameters (small, consistent with the module) ----
D_MODEL = 32
N_HEAD = 4
D_HEAD = D_MODEL // N_HEAD
D_FF = 64
SEQ = 8
BATCH = 2
NUM_LAYERS = 2
EPS = 1e-5                 # PyTorch LayerNorm default
APPROX_RECIPROCAL = True   # set False for exact softmax denominator (tighter parity)


def _layernorm(x, gamma, beta):
    mean = jnp.mean(x, axis=-1, keepdims=True)
    var = jnp.mean((x - mean) ** 2, axis=-1, keepdims=True)
    return (x - mean) * jax.lax.rsqrt(var + EPS) * gamma + beta


# --------------------------- fused Pallas kernel ---------------------------

def make_encoder_kernel(num_layers, apply_final_norm, B, S, D, H, Dh):
    BS = B * S

    def kernel(x_ref, pos_ref, bias_ref,
               wqk_ref, bqk_ref, wv_ref, bv_ref, wo_ref, bo_ref,
               g1_ref, be1_ref, wf1_ref, bf1_ref, wf2_ref, bf2_ref,
               g2_ref, be2_ref, gn_ref, bn_ref, out_ref):
        x = x_ref[...]        # (BS, D)  batch-major tokens
        pos = pos_ref[...]    # (BS, D)
        bias = bias_ref[...]  # (BS, BS) additive bias: 0 within a batch, -1e9 across

        for l in range(num_layers):                      # static unroll over layers
            qk_in = x + pos                              # with_pos_embed(src, pos)
            # fused Q|K projection; 1/sqrt(Dh) already folded into the Q half
            qk = jnp.dot(qk_in, wqk_ref[l],
                         preferred_element_type=jnp.float32) + bqk_ref[l]   # (BS, 2D)
            v = jnp.dot(x, wv_ref[l],
                        preferred_element_type=jnp.float32) + bv_ref[l]     # (BS, D)
            q = qk[:, :D]
            k = qk[:, D:]

            # heads stacked along a single leading batch axis -> (H, BS, Dh)
            qh = jnp.stack([q[:, h * Dh:(h + 1) * Dh] for h in range(H)], axis=0)
            kh = jnp.stack([k[:, h * Dh:(h + 1) * Dh] for h in range(H)], axis=0)
            vh = jnp.stack([v[:, h * Dh:(h + 1) * Dh] for h in range(H)], axis=0)

            # all-head scores in one contraction; cross-batch pairs masked via bias
            s = jnp.einsum('hqd,hkd->hqk', qh, kh,
                           preferred_element_type=jnp.float32)              # (H, BS, BS)
            s = s + bias
            s = s - jnp.max(s, axis=-1, keepdims=True)   # keep row-max subtraction
            p = jnp.exp(s)
            p = p * pl.reciprocal(jnp.sum(p, axis=-1, keepdims=True),
                                  approx=APPROX_RECIPROCAL)
            o = jnp.einsum('hqk,hkd->hqd', p, vh,
                           preferred_element_type=jnp.float32)              # (H, BS, Dh)

            # head concat once, then a single K=D output projection
            o_cat = jnp.concatenate([o[h] for h in range(H)], axis=-1)      # (BS, D)
            attn = jnp.dot(o_cat, wo_ref[l],
                           preferred_element_type=jnp.float32) + bo_ref[l]

            # residual + LayerNorm 1 (dropout is identity at inference)
            y = _layernorm(x + attn, g1_ref[l], be1_ref[l])

            # feed-forward: linear2(relu(linear1(y)))
            ff = jnp.maximum(
                jnp.dot(y, wf1_ref[l],
                        preferred_element_type=jnp.float32) + bf1_ref[l], 0.0)
            ff = jnp.dot(ff, wf2_ref[l],
                         preferred_element_type=jnp.float32) + bf2_ref[l]

            # residual + LayerNorm 2
            x = _layernorm(y + ff, g2_ref[l], be2_ref[l])

        if apply_final_norm:
            x = _layernorm(x, gn_ref[...], bn_ref[...])

        out_ref[...] = x      # lane-dense (BS, D) store; re-shaping happens in XLA

    return kernel


# --------------------------- wrappers ---------------------------

def pack_layer_params(layer_params):
    """Stack per-layer params along a leading L axis; fuse Wq|Wk (scale folded into Q)."""
    scale = 1.0 / (float(D_HEAD) ** 0.5)

    def stk(i):
        return jnp.stack([p[i] for p in layer_params], axis=0)

    wq, bq, wk, bk = stk(0), stk(1), stk(2), stk(3)
    wqk = jnp.concatenate([wq * scale, wk], axis=-1)     # (L, D, 2D), scale folded
    bqk = jnp.concatenate([bq * scale, bk], axis=-1)     # (L, 1, 2D)
    wv, bv = stk(4), stk(5)
    wo, bo = stk(6), stk(7)
    g1, be1 = stk(8), stk(9)
    wf1, bf1 = stk(10), stk(11)
    wf2, bf2 = stk(12), stk(13)
    g2, be2 = stk(14), stk(15)
    return (wqk, bqk, wv, bv, wo, bo, g1, be1, wf1, bf1, wf2, bf2, g2, be2)


def transformer_encoder(src_sbd, pos_sbd, layer_params, norm_params):
    """src_sbd, pos_sbd: (S, B, D) as in PyTorch DETR. Returns (S, B, D)."""
    S, B, D = src_sbd.shape
    BS = B * S
    packed = pack_layer_params(layer_params)
    if norm_params is not None:
        gamma, beta = norm_params
        apply_norm = True
    else:
        gamma = jnp.ones((1, D), jnp.float32)
        beta = jnp.zeros((1, D), jnp.float32)
        apply_norm = False

    # (S,B,D) -> batch-major (B*S, D) done by XLA OUTSIDE the kernel (review item 1).
    x_flat = jnp.transpose(src_sbd, (1, 0, 2)).reshape(BS, D)
    pos_flat = jnp.transpose(pos_sbd, (1, 0, 2)).reshape(BS, D)

    # Additive block-diagonal bias keeping attention within each batch element.
    same = (np.arange(BS)[:, None] // S) == (np.arange(BS)[None, :] // S)
    bias = jnp.asarray(np.where(same, 0.0, -1e9), dtype=jnp.float32)       # (BS, BS)

    kernel = make_encoder_kernel(len(layer_params), apply_norm,
                                 B, S, D, N_HEAD, D_HEAD)
    vmem = pl.BlockSpec(memory_space=pltpu.MemorySpace.VMEM)
    n_inputs = 3 + len(packed) + 2

    out_flat = pl.pallas_call(
        kernel,
        out_shape=jax.ShapeDtypeStruct((BS, D), jnp.float32),
        in_specs=[vmem] * n_inputs,
        out_specs=vmem,
    )(x_flat, pos_flat, bias, *packed, gamma, beta)

    # batch-major (B*S, D) -> (S, B, D), again in XLA outside the kernel.
    return jnp.transpose(out_flat.reshape(B, S, D), (1, 0, 2))


# --------------------------- parameter init ---------------------------

def init_layer_params(key):
    ks = jax.random.split(key, 8)
    s = 0.05
    wq = s * jax.random.normal(ks[0], (D_MODEL, D_MODEL), jnp.float32)
    wk = s * jax.random.normal(ks[1], (D_MODEL, D_MODEL), jnp.float32)
    wv = s * jax.random.normal(ks[2], (D_MODEL, D_MODEL), jnp.float32)
    wo = s * jax.random.normal(ks[3], (D_MODEL, D_MODEL), jnp.float32)
    bq = s * jax.random.normal(ks[4], (1, D_MODEL), jnp.float32)
    bk = s * jax.random.normal(ks[5], (1, D_MODEL), jnp.float32)
    bv = jnp.zeros((1, D_MODEL), jnp.float32)
    bo = jnp.zeros((1, D_MODEL), jnp.float32)
    g1 = jnp.ones((1, D_MODEL), jnp.float32)
    be1 = jnp.zeros((1, D_MODEL), jnp.float32)
    wf1 = s * jax.random.normal(ks[6], (D_MODEL, D_FF), jnp.float32)
    bf1 = jnp.zeros((1, D_FF), jnp.float32)
    wf2 = s * jax.random.normal(ks[7], (D_FF, D_MODEL), jnp.float32)
    bf2 = jnp.zeros((1, D_MODEL), jnp.float32)
    g2 = jnp.ones((1, D_MODEL), jnp.float32)
    be2 = jnp.zeros((1, D_MODEL), jnp.float32)
    return (wq, bq, wk, bk, wv, bv, wo, bo, g1, be1,
            wf1, bf1, wf2, bf2, g2, be2)


# --------------------------- pure-JAX reference ---------------------------

def _ref_layer(x, pos, params):
    (wq, bq, wk, bk, wv, bv, wo, bo, g1, be1,
     wf1, bf1, wf2, bf2, g2, be2) = params
    qk_in = x + pos
    q = qk_in @ wq + bq
    k = qk_in @ wk + bk
    v = x @ wv + bv
    B, S, D = x.shape
    qh = q.reshape(B, S, N_HEAD, D_HEAD).transpose(0, 2, 1, 3) / (D_HEAD ** 0.5)
    kh = k.reshape(B, S, N_HEAD, D_HEAD).transpose(0, 2, 1, 3)
    vh = v.reshape(B, S, N_HEAD, D_HEAD).transpose(0, 2, 1, 3)
    sc = jnp.einsum('bhqd,bhkd->bhqk', qh, kh)
    p = jax.nn.softmax(sc, axis=-1)
    o = jnp.einsum('bhqk,bhkd->bhqd', p, vh).transpose(0, 2, 1, 3).reshape(B, S, D)
    attn = o @ wo + bo
    y = _layernorm(x + attn, g1, be1)
    ff = jnp.maximum(y @ wf1 + bf1, 0.0) @ wf2 + bf2
    return _layernorm(y + ff, g2, be2)


def reference(src_sbd, pos_sbd, layer_params, norm_params):
    x = jnp.transpose(src_sbd, (1, 0, 2))
    pos = jnp.transpose(pos_sbd, (1, 0, 2))
    for params in layer_params:
        x = _ref_layer(x, pos, params)
    if norm_params is not None:
        gamma, beta = norm_params
        x = _layernorm(x, gamma, beta)
    return jnp.transpose(x, (1, 0, 2))


# --------------------------- main ---------------------------

if __name__ == "__main__":
    key = jax.random.PRNGKey(0)
    k_src, k_pos, k_par = jax.random.split(key, 3)

    # PyTorch convention: (S, B, D)
    src = jax.random.normal(k_src, (SEQ, BATCH, D_MODEL), jnp.float32)
    pos = jax.random.normal(k_pos, (SEQ, BATCH, D_MODEL), jnp.float32)

    layer_keys = jax.random.split(k_par, NUM_LAYERS)
    layer_params = tuple(init_layer_params(k) for k in layer_keys)
    norm_params = (jnp.ones((1, D_MODEL), jnp.float32),
                   jnp.zeros((1, D_MODEL), jnp.float32))

    fwd = jax.jit(transformer_encoder)
    out = fwd(src, pos, layer_params, norm_params)
    out = jax.block_until_ready(out)

    ref = reference(src, pos, layer_params, norm_params)
    assert out.shape == (SEQ, BATCH, D_MODEL)
    # tolerance relaxed slightly vs. 1e-4 because the softmax denominator uses the
    # hardware approximate reciprocal (pl.reciprocal(..., approx=True)).
    assert np.allclose(np.asarray(out), np.asarray(ref), atol=2e-3, rtol=2e-3)

    print("KERNEL_OK")
</pallas_src>

<mosaic_0001>
module attributes {stable_mosaic.version = 11 : i64} {
  func.func @kernel(%arg0: memref<16x32xf32, #tpu.memory_space<vmem>>, %arg1: memref<16x32xf32, #tpu.memory_space<vmem>>, %arg2: memref<16x16xf32, #tpu.memory_space<vmem>>, %arg3: memref<2x32x64xf32, #tpu.memory_space<vmem>>, %arg4: memref<2x1x64xf32, #tpu.memory_space<vmem>>, %arg5: memref<2x32x32xf32, #tpu.memory_space<vmem>>, %arg6: memref<2x1x32xf32, #tpu.memory_space<vmem>>, %arg7: memref<2x32x32xf32, #tpu.memory_space<vmem>>, %arg8: memref<2x1x32xf32, #tpu.memory_space<vmem>>, %arg9: memref<2x1x32xf32, #tpu.memory_space<vmem>>, %arg10: memref<2x1x32xf32, #tpu.memory_space<vmem>>, %arg11: memref<2x32x64xf32, #tpu.memory_space<vmem>>, %arg12: memref<2x1x64xf32, #tpu.memory_space<vmem>>, %arg13: memref<2x64x32xf32, #tpu.memory_space<vmem>>, %arg14: memref<2x1x32xf32, #tpu.memory_space<vmem>>, %arg15: memref<2x1x32xf32, #tpu.memory_space<vmem>>, %arg16: memref<2x1x32xf32, #tpu.memory_space<vmem>>, %arg17: memref<1x32xf32, #tpu.memory_space<vmem>>, %arg18: memref<1x32xf32, #tpu.memory_space<vmem>>, %arg19: memref<16x32xf32, #tpu.memory_space<vmem>>) attributes {dimension_semantics = [], scalar_prefetch = 0 : i64, scratch_operands = 0 : i64, tpu.core_type = #tpu.core_type<tc>} {
    %c0 = arith.constant 0 : index
    %c0_0 = arith.constant 0 : index
    %0 = vector.load %arg0[%c0, %c0_0] : memref<16x32xf32, #tpu.memory_space<vmem>>, vector<16x32xf32>
    %c0_1 = arith.constant 0 : index
    %c0_2 = arith.constant 0 : index
    %1 = vector.load %arg1[%c0_1, %c0_2] : memref<16x32xf32, #tpu.memory_space<vmem>>, vector<16x32xf32>
    %c0_3 = arith.constant 0 : index
    %c0_4 = arith.constant 0 : index
    %2 = vector.load %arg2[%c0_3, %c0_4] : memref<16x16xf32, #tpu.memory_space<vmem>>, vector<16x16xf32>
    %3 = arith.addf %0, %1 : vector<16x32xf32>
    %c0_5 = arith.constant 0 : index
    %c0_6 = arith.constant 0 : index
    %c0_7 = arith.constant 0 : index
    %4 = vector.load %arg3[%c0_5, %c0_6, %c0_7] : memref<2x32x64xf32, #tpu.memory_space<vmem>>, vector<1x32x64xf32>
    %5 = vector.shape_cast %4 : vector<1x32x64xf32> to vector<32x64xf32>
    %cst = arith.constant dense<0.000000e+00> : vector<16x64xf32>
    %6 = tpu.matmul %3, %5, %cst {dimension_numbers = #tpu.dot_dimension_numbers<[1], [0], [0], [1], [0, 0, 1, 1], [], []>} : vector<16x32xf32>, vector<32x64xf32>, vector<16x64xf32> -> vector<16x64xf32>
    %c0_8 = arith.constant 0 : index
    %c0_9 = arith.constant 0 : index
    %c0_10 = arith.constant 0 : index
    %7 = vector.load %arg4[%c0_8, %c0_9, %c0_10] : memref<2x1x64xf32, #tpu.memory_space<vmem>>, vector<1x1x64xf32>
    %8 = vector.shape_cast %7 : vector<1x1x64xf32> to vector<1x64xf32>
    %9 = vector.broadcast %8 : vector<1x64xf32> to vector<16x64xf32>
    %10 = arith.addf %6, %9 : vector<16x64xf32>
    %c0_11 = arith.constant 0 : index
    %c0_12 = arith.constant 0 : index
    %c0_13 = arith.constant 0 : index
    %11 = vector.load %arg5[%c0_11, %c0_12, %c0_13] : memref<2x32x32xf32, #tpu.memory_space<vmem>>, vector<1x32x32xf32>
    %12 = vector.shape_cast %11 : vector<1x32x32xf32> to vector<32x32xf32>
    %cst_14 = arith.constant dense<0.000000e+00> : vector<16x32xf32>
    %13 = tpu.matmul %0, %12, %cst_14 {dimension_numbers = #tpu.dot_dimension_numbers<[1], [0], [0], [1], [0, 0, 1, 1], [], []>} : vector<16x32xf32>, vector<32x32xf32>, vector<16x32xf32> -> vector<16x32xf32>
    %c0_15 = arith.constant 0 : index
    %c0_16 = arith.constant 0 : index
    %c0_17 = arith.constant 0 : index
    %14 = vector.load %arg6[%c0_15, %c0_16, %c0_17] : memref<2x1x32xf32, #tpu.memory_space<vmem>>, vector<1x1x32xf32>
    %15 = vector.shape_cast %14 : vector<1x1x32xf32> to vector<1x32xf32>
    %16 = vector.broadcast %15 : vector<1x32xf32> to vector<16x32xf32>
    %17 = arith.addf %13, %16 : vector<16x32xf32>
    %18 = vector.extract_strided_slice %10 {offsets = [0, 0], sizes = [16, 32], strides = [1, 1]} : vector<16x64xf32> to vector<16x32xf32>
    %19 = vector.extract_strided_slice %10 {offsets = [0, 32], sizes = [16, 32], strides = [1, 1]} : vector<16x64xf32> to vector<16x32xf32>
    %20 = vector.extract_strided_slice %18 {offsets = [0, 0], sizes = [16, 8], strides = [1, 1]} : vector<16x32xf32> to vector<16x8xf32>
    %21 = vector.extract_strided_slice %18 {offsets = [0, 8], sizes = [16, 8], strides = [1, 1]} : vector<16x32xf32> to vector<16x8xf32>
    %22 = vector.extract_strided_slice %18 {offsets = [0, 16], sizes = [16, 8], strides = [1, 1]} : vector<16x32xf32> to vector<16x8xf32>
    %23 = vector.extract_strided_slice %18 {offsets = [0, 24], sizes = [16, 8], strides = [1, 1]} : vector<16x32xf32> to vector<16x8xf32>
    %24 = vector.shape_cast %20 : vector<16x8xf32> to vector<1x16x8xf32>
    %25 = vector.shape_cast %21 : vector<16x8xf32> to vector<1x16x8xf32>
    %26 = vector.shape_cast %22 : vector<16x8xf32> to vector<1x16x8xf32>
    %27 = vector.shape_cast %23 : vector<16x8xf32> to vector<1x16x8xf32>
    %28 = tpu.concatenate %24, %25, %26, %27 in 0 : vector<1x16x8xf32>, vector<1x16x8xf32>, vector<1x16x8xf32>, vector<1x16x8xf32> -> vector<4x16x8xf32>
    %29 = vector.extract_strided_slice %19 {offsets = [0, 0], sizes = [16, 8], strides = [1, 1]} : vector<16x32xf32> to vector<16x8xf32>
    %30 = vector.extract_strided_slice %19 {offsets = [0, 8], sizes = [16, 8], strides = [1, 1]} : vector<16x32xf32> to vector<16x8xf32>
    %31 = vector.extract_strided_slice %19 {offsets = [0, 16], sizes = [16, 8], strides = [1, 1]} : vector<16x32xf32> to vector<16x8xf32>
    %32 = vector.extract_strided_slice %19 {offsets = [0, 24], sizes = [16, 8], strides = [1, 1]} : vector<16x32xf32> to vector<16x8xf32>
    %33 = vector.shape_cast %29 : vector<16x8xf32> to vector<1x16x8xf32>
    %34 = vector.shape_cast %30 : vector<16x8xf32> to vector<1x16x8xf32>
    %35 = vector.shape_cast %31 : vector<16x8xf32> to vector<1x16x8xf32>
    %36 = vector.shape_cast %32 : vector<16x8xf32> to vector<1x16x8xf32>
    %37 = tpu.concatenate %33, %34, %35, %36 in 0 : vector<1x16x8xf32>, vector<1x16x8xf32>, vector<1x16x8xf32>, vector<1x16x8xf32> -> vector<4x16x8xf32>
    %38 = vector.extract_strided_slice %17 {offsets = [0, 0], sizes = [16, 8], strides = [1, 1]} : vector<16x32xf32> to vector<16x8xf32>
    %39 = vector.extract_strided_slice %17 {offsets = [0, 8], sizes = [16, 8], strides = [1, 1]} : vector<16x32xf32> to vector<16x8xf32>
    %40 = vector.extract_strided_slice %17 {offsets = [0, 16], sizes = [16, 8], strides = [1, 1]} : vector<16x32xf32> to vector<16x8xf32>
    %41 = vector.extract_strided_slice %17 {offsets = [0, 24], sizes = [16, 8], strides = [1, 1]} : vector<16x32xf32> to vector<16x8xf32>
    %42 = vector.shape_cast %38 : vector<16x8xf32> to vector<1x16x8xf32>
    %43 = vector.shape_cast %39 : vector<16x8xf32> to vector<1x16x8xf32>
    %44 = vector.shape_cast %40 : vector<16x8xf32> to vector<1x16x8xf32>
    %45 = vector.shape_cast %41 : vector<16x8xf32> to vector<1x16x8xf32>
    %46 = tpu.concatenate %42, %43, %44, %45 in 0 : vector<1x16x8xf32>, vector<1x16x8xf32>, vector<1x16x8xf32>, vector<1x16x8xf32> -> vector<4x16x8xf32>
    "tpu.trace_start"() <{level = 10 : i32, message = "hqd,hkd->hqk"}> : () -> ()
    %cst_18 = arith.constant dense<0.000000e+00> : vector<4x16x16xf32>
    %47 = tpu.matmul %28, %37, %cst_18 {dimension_numbers = #tpu.dot_dimension_numbers<[2], [2], [1], [1], [0, 0, 0, 1, 1, 1], [0], [0]>} : vector<4x16x8xf32>, vector<4x16x8xf32>, vector<4x16x16xf32> -> vector<4x16x16xf32>
    "tpu.trace_stop"() : () -> ()
    %48 = vector.shape_cast %2 : vector<16x16xf32> to vector<1x16x16xf32>
    %49 = vector.broadcast %48 : vector<1x16x16xf32> to vector<4x16x16xf32>
    %50 = arith.addf %47, %49 : vector<4x16x16xf32>
    %cst_19 = arith.constant dense<0xFF800000> : vector<4x16xf32>
    %51 = vector.multi_reduction <maximumf>, %50, %cst_19 [2] : vector<4x16x16xf32> to vector<4x16xf32>
    %52 = vector.shape_cast %51 : vector<4x16xf32> to vector<4x16x1xf32>
    %53 = vector.broadcast %52 : vector<4x16x1xf32> to vector<4x16x16xf32>
    %54 = arith.subf %50, %53 : vector<4x16x16xf32>
    %55 = math.exp %54 : vector<4x16x16xf32>
    %cst_20 = arith.constant dense<0.000000e+00> : vector<4x16xf32>
    %56 = vector.multi_reduction <add>, %55, %cst_20 [2] : vector<4x16x16xf32> to vector<4x16xf32>
    %57 = vector.shape_cast %56 : vector<4x16xf32> to vector<4x16x1xf32>
    %58 = tpu.reciprocal %57 {approx = true} : vector<4x16x1xf32> -> vector<4x16x1xf32>
    %59 = vector.broadcast %58 : vector<4x16x1xf32> to vector<4x16x16xf32>
    %60 = arith.mulf %55, %59 : vector<4x16x16xf32>
    "tpu.trace_start"() <{level = 10 : i32, message = "hqk,hkd->hqd"}> : () -> ()
    %cst_21 = arith.constant dense<0.000000e+00> : vector<4x16x8xf32>
    %61 = tpu.matmul %60, %46, %cst_21 {dimension_numbers = #tpu.dot_dimension_numbers<[2], [1], [1], [2], [0, 0, 0, 1, 1, 2], [0], [0]>} : vector<4x16x16xf32>, vector<4x16x8xf32>, vector<4x16x8xf32> -> vector<4x16x8xf32>
    "tpu.trace_stop"() : () -> ()
    %62 = vector.extract_strided_slice %61 {offsets = [0, 0, 0], sizes = [1, 16, 8], strides = [1, 1, 1]} : vector<4x16x8xf32> to vector<1x16x8xf32>
    %63 = vector.shape_cast %62 : vector<1x16x8xf32> to vector<16x8xf32>
    %64 = vector.extract_strided_slice %61 {offsets = [1, 0, 0], sizes = [1, 16, 8], strides = [1, 1, 1]} : vector<4x16x8xf32> to vector<1x16x8xf32>
    %65 = vector.shape_cast %64 : vector<1x16x8xf32> to vector<16x8xf32>
    %66 = vector.extract_strided_slice %61 {offsets = [2, 0, 0], sizes = [1, 16, 8], strides = [1, 1, 1]} : vector<4x16x8xf32> to vector<1x16x8xf32>
    %67 = vector.shape_cast %66 : vector<1x16x8xf32> to vector<16x8xf32>
    %68 = vector.extract_strided_slice %61 {offsets = [3, 0, 0], sizes = [1, 16, 8], strides = [1, 1, 1]} : vector<4x16x8xf32> to vector<1x16x8xf32>
    %69 = vector.shape_cast %68 : vector<1x16x8xf32> to vector<16x8xf32>
    %70 = tpu.concatenate %63, %65, %67, %69 in 1 : vector<16x8xf32>, vector<16x8xf32>, vector<16x8xf32>, vector<16x8xf32> -> vector<16x32xf32>
    %c0_22 = arith.constant 0 : index
    %c0_23 = arith.constant 0 : index
    %c0_24 = arith.constant 0 : index
    %71 = vector.load %arg7[%c0_22, %c0_23, %c0_24] : memref<2x32x32xf32, #tpu.memory_space<vmem>>, vector<1x32x32xf32>
    %72 = vector.shape_cast %71 : vector<1x32x32xf32> to vector<32x32xf32>
    %cst_25 = arith.constant dense<0.000000e+00> : vector<16x32xf32>
    %73 = tpu.matmul %70, %72, %cst_25 {dimension_numbers = #tpu.dot_dimension_numbers<[1], [0], [0], [1], [0, 0, 1, 1], [], []>} : vector<16x32xf32>, vector<32x32xf32>, vector<16x32xf32> -> vector<16x32xf32>
    %c0_26 = arith.constant 0 : index
    %c0_27 = arith.constant 0 : index
    %c0_28 = arith.constant 0 : index
    %74 = vector.load %arg8[%c0_26, %c0_27, %c0_28] : memref<2x1x32xf32, #tpu.memory_space<vmem>>, vector<1x1x32xf32>
    %75 = vector.shape_cast %74 : vector<1x1x32xf32> to vector<1x32xf32>
    %76 = vector.broadcast %75 : vector<1x32xf32> to vector<16x32xf32>
    %77 = arith.addf %73, %76 : vector<16x32xf32>
    %78 = arith.addf %0, %77 : vector<16x32xf32>
    %c0_29 = arith.constant 0 : index
    %c0_30 = arith.constant 0 : index
    %c0_31 = arith.constant 0 : index
    %79 = vector.load %arg9[%c0_29, %c0_30, %c0_31] : memref<2x1x32xf32, #tpu.memory_space<vmem>>, vector<1x1x32xf32>
    %80 = vector.shape_cast %79 : vector<1x1x32xf32> to vector<1x32xf32>
    %c0_32 = arith.constant 0 : index
    %c0_33 = arith.constant 0 : index
    %c0_34 = arith.constant 0 : index
    %81 = vector.load %arg10[%c0_32, %c0_33, %c0_34] : memref<2x1x32xf32, #tpu.memory_space<vmem>>, vector<1x1x32xf32>
    %82 = vector.shape_cast %81 : vector<1x1x32xf32> to vector<1x32xf32>
    %cst_35 = arith.constant dense<0.000000e+00> : vector<16xf32>
    %83 = vector.multi_reduction <add>, %78, %cst_35 [1] : vector<16x32xf32> to vector<16xf32>
    %84 = vector.shape_cast %83 : vector<16xf32> to vector<16x1xf32>
    %cst_36 = arith.constant 3.200000e+01 : f32
    %85 = vector.broadcast %cst_36 : f32 to vector<16x1xf32>
    %86 = arith.divf %84, %85 : vector<16x1xf32>
    %87 = vector.broadcast %86 : vector<16x1xf32> to vector<16x32xf32>
    %88 = arith.subf %78, %87 : vector<16x32xf32>
    %89 = arith.mulf %88, %88 : vector<16x32xf32>
    %cst_37 = arith.constant dense<0.000000e+00> : vector<16xf32>
    %90 = vector.multi_reduction <add>, %89, %cst_37 [1] : vector<16x32xf32> to vector<16xf32>
    %91 = vector.shape_cast %90 : vector<16xf32> to vector<16x1xf32>
    %cst_38 = arith.constant 3.200000e+01 : f32
    %92 = vector.broadcast %cst_38 : f32 to vector<16x1xf32>
    %93 = arith.divf %91, %92 : vector<16x1xf32>
    %94 = vector.broadcast %86 : vector<16x1xf32> to vector<16x32xf32>
    %95 = arith.subf %78, %94 : vector<16x32xf32>
    %cst_39 = arith.constant 9.99999974E-6 : f32
    %96 = vector.broadcast %cst_39 : f32 to vector<16x1xf32>
    %97 = arith.addf %93, %96 : vector<16x1xf32>
    %98 = math.rsqrt %97 : vector<16x1xf32>
    %99 = vector.broadcast %98 : vector<16x1xf32> to vector<16x32xf32>
    %100 = arith.mulf %95, %99 : vector<16x32xf32>
    %101 = vector.broadcast %80 : vector<1x32xf32> to vector<16x32xf32>
    %102 = arith.mulf %100, %101 : vector<16x32xf32>
    %103 = vector.broadcast %82 : vector<1x32xf32> to vector<16x32xf32>
    %104 = arith.addf %102, %103 : vector<16x32xf32>
    %c0_40 = arith.constant 0 : index
    %c0_41 = arith.constant 0 : index
    %c0_42 = arith.constant 0 : index
    %105 = vector.load %arg11[%c0_40, %c0_41, %c0_42] : memref<2x32x64xf32, #tpu.memory_space<vmem>>, vector<1x32x64xf32>
    %106 = vector.shape_cast %105 : vector<1x32x64xf32> to vector<32x64xf32>
    %cst_43 = arith.constant dense<0.000000e+00> : vector<16x64xf32>
    %107 = tpu.matmul %104, %106, %cst_43 {dimension_numbers = #tpu.dot_dimension_numbers<[1], [0], [0], [1], [0, 0, 1, 1], [], []>} : vector<16x32xf32>, vector<32x64xf32>, vector<16x64xf32> -> vector<16x64xf32>
    %c0_44 = arith.constant 0 : index
    %c0_45 = arith.constant 0 : index
    %c0_46 = arith.constant 0 : index
    %108 = vector.load %arg12[%c0_44, %c0_45, %c0_46] : memref<2x1x64xf32, #tpu.memory_space<vmem>>, vector<1x1x64xf32>
    %109 = vector.shape_cast %108 : vector<1x1x64xf32> to vector<1x64xf32>
    %110 = vector.broadcast %109 : vector<1x64xf32> to vector<16x64xf32>
    %111 = arith.addf %107, %110 : vector<16x64xf32>
    %cst_47 = arith.constant 0.000000e+00 : f32
    %112 = vector.broadcast %cst_47 : f32 to vector<16x64xf32>
    %113 = arith.maximumf %111, %112 : vector<16x64xf32>
    %c0_48 = arith.constant 0 : index
    %c0_49 = arith.constant 0 : index
    %c0_50 = arith.constant 0 : index
    %114 = vector.load %arg13[%c0_48, %c0_49, %c0_50] : memref<2x64x32xf32, #tpu.memory_space<vmem>>, vector<1x64x32xf32>
    %115 = vector.shape_cast %114 : vector<1x64x32xf32> to vector<64x32xf32>
    %cst_51 = arith.constant dense<0.000000e+00> : vector<16x32xf32>
    %116 = tpu.matmul %113, %115, %cst_51 {dimension_numbers = #tpu.dot_dimension_numbers<[1], [0], [0], [1], [0, 0, 1, 1], [], []>} : vector<16x64xf32>, vector<64x32xf32>, vector<16x32xf32> -> vector<16x32xf32>
    %c0_52 = arith.constant 0 : index
    %c0_53 = arith.constant 0 : index
    %c0_54 = arith.constant 0 : index
    %117 = vector.load %arg14[%c0_52, %c0_53, %c0_54] : memref<2x1x32xf32, #tpu.memory_space<vmem>>, vector<1x1x32xf32>
    %118 = vector.shape_cast %117 : vector<1x1x32xf32> to vector<1x32xf32>
    %119 = vector.broadcast %118 : vector<1x32xf32> to vector<16x32xf32>
    %120 = arith.addf %116, %119 : vector<16x32xf32>
    %121 = arith.addf %104, %120 : vector<16x32xf32>
    %c0_55 = arith.constant 0 : index
    %c0_56 = arith.constant 0 : index
    %c0_57 = arith.constant 0 : index
    %122 = vector.load %arg15[%c0_55, %c0_56, %c0_57] : memref<2x1x32xf32, #tpu.memory_space<vmem>>, vector<1x1x32xf32>
    %123 = vector.shape_cast %122 : vector<1x1x32xf32> to vector<1x32xf32>
    %c0_58 = arith.constant 0 : index
    %c0_59 = arith.constant 0 : index
    %c0_60 = arith.constant 0 : index
    %124 = vector.load %arg16[%c0_58, %c0_59, %c0_60] : memref<2x1x32xf32, #tpu.memory_space<vmem>>, vector<1x1x32xf32>
    %125 = vector.shape_cast %124 : vector<1x1x32xf32> to vector<1x32xf32>
    %cst_61 = arith.constant dense<0.000000e+00> : vector<16xf32>
    %126 = vector.multi_reduction <add>, %121, %cst_61 [1] : vector<16x32xf32> to vector<16xf32>
    %127 = vector.shape_cast %126 : vector<16xf32> to vector<16x1xf32>
    %cst_62 = arith.constant 3.200000e+01 : f32
    %128 = vector.broadcast %cst_62 : f32 to vector<16x1xf32>
    %129 = arith.divf %127, %128 : vector<16x1xf32>
    %130 = vector.broadcast %129 : vector<16x1xf32> to vector<16x32xf32>
    %131 = arith.subf %121, %130 : vector<16x32xf32>
    %132 = arith.mulf %131, %131 : vector<16x32xf32>
    %cst_63 = arith.constant dense<0.000000e+00> : vector<16xf32>
    %133 = vector.multi_reduction <add>, %132, %cst_63 [1] : vector<16x32xf32> to vector<16xf32>
    %134 = vector.shape_cast %133 : vector<16xf32> to vector<16x1xf32>
    %cst_64 = arith.constant 3.200000e+01 : f32
    %135 = vector.broadcast %cst_64 : f32 to vector<16x1xf32>
    %136 = arith.divf %134, %135 : vector<16x1xf32>
    %137 = vector.broadcast %129 : vector<16x1xf32> to vector<16x32xf32>
    %138 = arith.subf %121, %137 : vector<16x32xf32>
    %cst_65 = arith.constant 9.99999974E-6 : f32
    %139 = vector.broadcast %cst_65 : f32 to vector<16x1xf32>
    %140 = arith.addf %136, %139 : vector<16x1xf32>
    %141 = math.rsqrt %140 : vector<16x1xf32>
    %142 = vector.broadcast %141 : vector<16x1xf32> to vector<16x32xf32>
    %143 = arith.mulf %138, %142 : vector<16x32xf32>
    %144 = vector.broadcast %123 : vector<1x32xf32> to vector<16x32xf32>
    %145 = arith.mulf %143, %144 : vector<16x32xf32>
    %146 = vector.broadcast %125 : vector<1x32xf32> to vector<16x32xf32>
    %147 = arith.addf %145, %146 : vector<16x32xf32>
    %148 = arith.addf %147, %1 : vector<16x32xf32>
    %c1 = arith.constant 1 : index
    %c0_66 = arith.constant 0 : index
    %c0_67 = arith.constant 0 : index
    %149 = vector.load %arg3[%c1, %c0_66, %c0_67] : memref<2x32x64xf32, #tpu.memory_space<vmem>>, vector<1x32x64xf32>
    %150 = vector.shape_cast %149 : vector<1x32x64xf32> to vector<32x64xf32>
    %cst_68 = arith.constant dense<0.000000e+00> : vector<16x64xf32>
    %151 = tpu.matmul %148, %150, %cst_68 {dimension_numbers = #tpu.dot_dimension_numbers<[1], [0], [0], [1], [0, 0, 1, 1], [], []>} : vector<16x32xf32>, vector<32x64xf32>, vector<16x64xf32> -> vector<16x64xf32>
    %c1_69 = arith.constant 1 : index
    %c0_70 = arith.constant 0 : index
    %c0_71 = arith.constant 0 : index
    %152 = vector.load %arg4[%c1_69, %c0_70, %c0_71] : memref<2x1x64xf32, #tpu.memory_space<vmem>>, vector<1x1x64xf32>
    %153 = vector.shape_cast %152 : vector<1x1x64xf32> to vector<1x64xf32>
    %154 = vector.broadcast %153 : vector<1x64xf32> to vector<16x64xf32>
    %155 = arith.addf %151, %154 : vector<16x64xf32>
    %c1_72 = arith.constant 1 : index
    %c0_73 = arith.constant 0 : index
    %c0_74 = arith.constant 0 : index
    %156 = vector.load %arg5[%c1_72, %c0_73, %c0_74] : memref<2x32x32xf32, #tpu.memory_space<vmem>>, vector<1x32x32xf32>
    %157 = vector.shape_cast %156 : vector<1x32x32xf32> to vector<32x32xf32>
    %cst_75 = arith.constant dense<0.000000e+00> : vector<16x32xf32>
    %158 = tpu.matmul %147, %157, %cst_75 {dimension_numbers = #tpu.dot_dimension_numbers<[1], [0], [0], [1], [0, 0, 1, 1], [], []>} : vector<16x32xf32>, vector<32x32xf32>, vector<16x32xf32> -> vector<16x32xf32>
    %c1_76 = arith.constant 1 : index
    %c0_77 = arith.constant 0 : index
    %c0_78 = arith.constant 0 : index
    %159 = vector.load %arg6[%c1_76, %c0_77, %c0_78] : memref<2x1x32xf32, #tpu.memory_space<vmem>>, vector<1x1x32xf32>
    %160 = vector.shape_cast %159 : vector<1x1x32xf32> to vector<1x32xf32>
    %161 = vector.broadcast %160 : vector<1x32xf32> to vector<16x32xf32>
    %162 = arith.addf %158, %161 : vector<16x32xf32>
    %163 = vector.extract_strided_slice %155 {offsets = [0, 0], sizes = [16, 32], strides = [1, 1]} : vector<16x64xf32> to vector<16x32xf32>
    %164 = vector.extract_strided_slice %155 {offsets = [0, 32], sizes = [16, 32], strides = [1, 1]} : vector<16x64xf32> to vector<16x32xf32>
    %165 = vector.extract_strided_slice %163 {offsets = [0, 0], sizes = [16, 8], strides = [1, 1]} : vector<16x32xf32> to vector<16x8xf32>
    %166 = vector.extract_strided_slice %163 {offsets = [0, 8], sizes = [16, 8], strides = [1, 1]} : vector<16x32xf32> to vector<16x8xf32>
    %167 = vector.extract_strided_slice %163 {offsets = [0, 16], sizes = [16, 8], strides = [1, 1]} : vector<16x32xf32> to vector<16x8xf32>
    %168 = vector.extract_strided_slice %163 {offsets = [0, 24], sizes = [16, 8], strides = [1, 1]} : vector<16x32xf32> to vector<16x8xf32>
    %169 = vector.shape_cast %165 : vector<16x8xf32> to vector<1x16x8xf32>
    %170 = vector.shape_cast %166 : vector<16x8xf32> to vector<1x16x8xf32>
    %171 = vector.shape_cast %167 : vector<16x8xf32> to vector<1x16x8xf32>
    %172 = vector.shape_cast %168 : vector<16x8xf32> to vector<1x16x8xf32>
    %173 = tpu.concatenate %169, %170, %171, %172 in 0 : vector<1x16x8xf32>, vector<1x16x8xf32>, vector<1x16x8xf32>, vector<1x16x8xf32> -> vector<4x16x8xf32>
    %174 = vector.extract_strided_slice %164 {offsets = [0, 0], sizes = [16, 8], strides = [1, 1]} : vector<16x32xf32> to vector<16x8xf32>
    %175 = vector.extract_strided_slice %164 {offsets = [0, 8], sizes = [16, 8], strides = [1, 1]} : vector<16x32xf32> to vector<16x8xf32>
    %176 = vector.extract_strided_slice %164 {offsets = [0, 16], sizes = [16, 8], strides = [1, 1]} : vector<16x32xf32> to vector<16x8xf32>
    %177 = vector.extract_strided_slice %164 {offsets = [0, 24], sizes = [16, 8], strides = [1, 1]} : vector<16x32xf32> to vector<16x8xf32>
    %178 = vector.shape_cast %174 : vector<16x8xf32> to vector<1x16x8xf32>
    %179 = vector.shape_cast %175 : vector<16x8xf32> to vector<1x16x8xf32>
    %180 = vector.shape_cast %176 : vector<16x8xf32> to vector<1x16x8xf32>
    %181 = vector.shape_cast %177 : vector<16x8xf32> to vector<1x16x8xf32>
    %182 = tpu.concatenate %178, %179, %180, %181 in 0 : vector<1x16x8xf32>, vector<1x16x8xf32>, vector<1x16x8xf32>, vector<1x16x8xf32> -> vector<4x16x8xf32>
    %183 = vector.extract_strided_slice %162 {offsets = [0, 0], sizes = [16, 8], strides = [1, 1]} : vector<16x32xf32> to vector<16x8xf32>
    %184 = vector.extract_strided_slice %162 {offsets = [0, 8], sizes = [16, 8], strides = [1, 1]} : vector<16x32xf32> to vector<16x8xf32>
    %185 = vector.extract_strided_slice %162 {offsets = [0, 16], sizes = [16, 8], strides = [1, 1]} : vector<16x32xf32> to vector<16x8xf32>
    %186 = vector.extract_strided_slice %162 {offsets = [0, 24], sizes = [16, 8], strides = [1, 1]} : vector<16x32xf32> to vector<16x8xf32>
    %187 = vector.shape_cast %183 : vector<16x8xf32> to vector<1x16x8xf32>
    %188 = vector.shape_cast %184 : vector<16x8xf32> to vector<1x16x8xf32>
    %189 = vector.shape_cast %185 : vector<16x8xf32> to vector<1x16x8xf32>
    %190 = vector.shape_cast %186 : vector<16x8xf32> to vector<1x16x8xf32>
    %191 = tpu.concatenate %187, %188, %189, %190 in 0 : vector<1x16x8xf32>, vector<1x16x8xf32>, vector<1x16x8xf32>, vector<1x16x8xf32> -> vector<4x16x8xf32>
    "tpu.trace_start"() <{level = 10 : i32, message = "hqd,hkd->hqk"}> : () -> ()
    %cst_79 = arith.constant dense<0.000000e+00> : vector<4x16x16xf32>
    %192 = tpu.matmul %173, %182, %cst_79 {dimension_numbers = #tpu.dot_dimension_numbers<[2], [2], [1], [1], [0, 0, 0, 1, 1, 1], [0], [0]>} : vector<4x16x8xf32>, vector<4x16x8xf32>, vector<4x16x16xf32> -> vector<4x16x16xf32>
    "tpu.trace_stop"() : () -> ()
    %193 = vector.shape_cast %2 : vector<16x16xf32> to vector<1x16x16xf32>
    %194 = vector.broadcast %193 : vector<1x16x16xf32> to vector<4x16x16xf32>
    %195 = arith.addf %192, %194 : vector<4x16x16xf32>
    %cst_80 = arith.constant dense<0xFF800000> : vector<4x16xf32>
    %196 = vector.multi_reduction <maximumf>, %195, %cst_80 [2] : vector<4x16x16xf32> to vector<4x16xf32>
    %197 = vector.shape_cast %196 : vector<4x16xf32> to vector<4x16x1xf32>
    %198 = vector.broadcast %197 : vector<4x16x1xf32> to vector<4x16x16xf32>
    %199 = arith.subf %195, %198 : vector<4x16x16xf32>
    %200 = math.exp %199 : vector<4x16x16xf32>
    %cst_81 = arith.constant dense<0.000000e+00> : vector<4x16xf32>
    %201 = vector.multi_reduction <add>, %200, %cst_81 [2] : vector<4x16x16xf32> to vector<4x16xf32>
    %202 = vector.shape_cast %201 : vector<4x16xf32> to vector<4x16x1xf32>
    %203 = tpu.reciprocal %202 {approx = true} : vector<4x16x1xf32> -> vector<4x16x1xf32>
    %204 = vector.broadcast %203 : vector<4x16x1xf32> to vector<4x16x16xf32>
    %205 = arith.mulf %200, %204 : vector<4x16x16xf32>
    "tpu.trace_start"() <{level = 10 : i32, message = "hqk,hkd->hqd"}> : () -> ()
    %cst_82 = arith.constant dense<0.000000e+00> : vector<4x16x8xf32>
    %206 = tpu.matmul %205, %191, %cst_82 {dimension_numbers = #tpu.dot_dimension_numbers<[2], [1], [1], [2], [0, 0, 0, 1, 1, 2], [0], [0]>} : vector<4x16x16xf32>, vector<4x16x8xf32>, vector<4x16x8xf32> -> vector<4x16x8xf32>
    "tpu.trace_stop"() : () -> ()
    %207 = vector.extract_strided_slice %206 {offsets = [0, 0, 0], sizes = [1, 16, 8], strides = [1, 1, 1]} : vector<4x16x8xf32> to vector<1x16x8xf32>
    %208 = vector.shape_cast %207 : vector<1x16x8xf32> to vector<16x8xf32>
    %209 = vector.extract_strided_slice %206 {offsets = [1, 0, 0], sizes = [1, 16, 8], strides = [1, 1, 1]} : vector<4x16x8xf32> to vector<1x16x8xf32>
    %210 = vector.shape_cast %209 : vector<1x16x8xf32> to vector<16x8xf32>
    %211 = vector.extract_strided_slice %206 {offsets = [2, 0, 0], sizes = [1, 16, 8], strides = [1, 1, 1]} : vector<4x16x8xf32> to vector<1x16x8xf32>
    %212 = vector.shape_cast %211 : vector<1x16x8xf32> to vector<16x8xf32>
    %213 = vector.extract_strided_slice %206 {offsets = [3, 0, 0], sizes = [1, 16, 8], strides = [1, 1, 1]} : vector<4x16x8xf32> to vector<1x16x8xf32>
    %214 = vector.shape_cast %213 : vector<1x16x8xf32> to vector<16x8xf32>
    %215 = tpu.concatenate %208, %210, %212, %214 in 1 : vector<16x8xf32>, vector<16x8xf32>, vector<16x8xf32>, vector<16x8xf32> -> vector<16x32xf32>
    %c1_83 = arith.constant 1 : index
    %c0_84 = arith.constant 0 : index
    %c0_85 = arith.constant 0 : index
    %216 = vector.load %arg7[%c1_83, %c0_84, %c0_85] : memref<2x32x32xf32, #tpu.memory_space<vmem>>, vector<1x32x32xf32>
    %217 = vector.shape_cast %216 : vector<1x32x32xf32> to vector<32x32xf32>
    %cst_86 = arith.constant dense<0.000000e+00> : vector<16x32xf32>
    %218 = tpu.matmul %215, %217, %cst_86 {dimension_numbers = #tpu.dot_dimension_numbers<[1], [0], [0], [1], [0, 0, 1, 1], [], []>} : vector<16x32xf32>, vector<32x32xf32>, vector<16x32xf32> -> vector<16x32xf32>
    %c1_87 = arith.constant 1 : index
    %c0_88 = arith.constant 0 : index
    %c0_89 = arith.constant 0 : index
    %219 = vector.load %arg8[%c1_87, %c0_88, %c0_89] : memref<2x1x32xf32, #tpu.memory_space<vmem>>, vector<1x1x32xf32>
    %220 = vector.shape_cast %219 : vector<1x1x32xf32> to vector<1x32xf32>
    %221 = vector.broadcast %220 : vector<1x32xf32> to vector<16x32xf32>
    %222 = arith.addf %218, %221 : vector<16x32xf32>
    %223 = arith.addf %147, %222 : vector<16x32xf32>
    %c1_90 = arith.constant 1 : index
    %c0_91 = arith.constant 0 : index
    %c0_92 = arith.constant 0 : index
    %224 = vector.load %arg9[%c1_90, %c0_91, %c0_92] : memref<2x1x32xf32, #tpu.memory_space<vmem>>, vector<1x1x32xf32>
    %225 = vector.shape_cast %224 : vector<1x1x32xf32> to vector<1x32xf32>
    %c1_93 = arith.constant 1 : index
    %c0_94 = arith.constant 0 : index
    %c0_95 = arith.constant 0 : index
    %226 = vector.load %arg10[%c1_93, %c0_94, %c0_95] : memref<2x1x32xf32, #tpu.memory_space<vmem>>, vector<1x1x32xf32>
    %227 = vector.shape_cast %226 : vector<1x1x32xf32> to vector<1x32xf32>
    %cst_96 = arith.constant dense<0.000000e+00> : vector<16xf32>
    %228 = vector.multi_reduction <add>, %223, %cst_96 [1] : vector<16x32xf32> to vector<16xf32>
    %229 = vector.shape_cast %228 : vector<16xf32> to vector<16x1xf32>
    %cst_97 = arith.constant 3.200000e+01 : f32
    %230 = vector.broadcast %cst_97 : f32 to vector<16x1xf32>
    %231 = arith.divf %229, %230 : vector<16x1xf32>
    %232 = vector.broadcast %231 : vector<16x1xf32> to vector<16x32xf32>
    %233 = arith.subf %223, %232 : vector<16x32xf32>
    %234 = arith.mulf %233, %233 : vector<16x32xf32>
    %cst_98 = arith.constant dense<0.000000e+00> : vector<16xf32>
    %235 = vector.multi_reduction <add>, %234, %cst_98 [1] : vector<16x32xf32> to vector<16xf32>
    %236 = vector.shape_cast %235 : vector<16xf32> to vector<16x1xf32>
    %cst_99 = arith.constant 3.200000e+01 : f32
    %237 = vector.broadcast %cst_99 : f32 to vector<16x1xf32>
    %238 = arith.divf %236, %237 : vector<16x1xf32>
    %239 = vector.broadcast %231 : vector<16x1xf32> to vector<16x32xf32>
    %240 = arith.subf %223, %239 : vector<16x32xf32>
    %cst_100 = arith.constant 9.99999974E-6 : f32
    %241 = vector.broadcast %cst_100 : f32 to vector<16x1xf32>
    %242 = arith.addf %238, %241 : vector<16x1xf32>
    %243 = math.rsqrt %242 : vector<16x1xf32>
    %244 = vector.broadcast %243 : vector<16x1xf32> to vector<16x32xf32>
    %245 = arith.mulf %240, %244 : vector<16x32xf32>
    %246 = vector.broadcast %225 : vector<1x32xf32> to vector<16x32xf32>
    %247 = arith.mulf %245, %246 : vector<16x32xf32>
    %248 = vector.broadcast %227 : vector<1x32xf32> to vector<16x32xf32>
    %249 = arith.addf %247, %248 : vector<16x32xf32>
    %c1_101 = arith.constant 1 : index
    %c0_102 = arith.constant 0 : index
    %c0_103 = arith.constant 0 : index
    %250 = vector.load %arg11[%c1_101, %c0_102, %c0_103] : memref<2x32x64xf32, #tpu.memory_space<vmem>>, vector<1x32x64xf32>
    %251 = vector.shape_cast %250 : vector<1x32x64xf32> to vector<32x64xf32>
    %cst_104 = arith.constant dense<0.000000e+00> : vector<16x64xf32>
    %252 = tpu.matmul %249, %251, %cst_104 {dimension_numbers = #tpu.dot_dimension_numbers<[1], [0], [0], [1], [0, 0, 1, 1], [], []>} : vector<16x32xf32>, vector<32x64xf32>, vector<16x64xf32> -> vector<16x64xf32>
    %c1_105 = arith.constant 1 : index
    %c0_106 = arith.constant 0 : index
    %c0_107 = arith.constant 0 : index
    %253 = vector.load %arg12[%c1_105, %c0_106, %c0_107] : memref<2x1x64xf32, #tpu.memory_space<vmem>>, vector<1x1x64xf32>
    %254 = vector.shape_cast %253 : vector<1x1x64xf32> to vector<1x64xf32>
    %255 = vector.broadcast %254 : vector<1x64xf32> to vector<16x64xf32>
    %256 = arith.addf %252, %255 : vector<16x64xf32>
    %cst_108 = arith.constant 0.000000e+00 : f32
    %257 = vector.broadcast %cst_108 : f32 to vector<16x64xf32>
    %258 = arith.maximumf %256, %257 : vector<16x64xf32>
    %c1_109 = arith.constant 1 : index
    %c0_110 = arith.constant 0 : index
    %c0_111 = arith.constant 0 : index
    %259 = vector.load %arg13[%c1_109, %c0_110, %c0_111] : memref<2x64x32xf32, #tpu.memory_space<vmem>>, vector<1x64x32xf32>
    %260 = vector.shape_cast %259 : vector<1x64x32xf32> to vector<64x32xf32>
    %cst_112 = arith.constant dense<0.000000e+00> : vector<16x32xf32>
    %261 = tpu.matmul %258, %260, %cst_112 {dimension_numbers = #tpu.dot_dimension_numbers<[1], [0], [0], [1], [0, 0, 1, 1], [], []>} : vector<16x64xf32>, vector<64x32xf32>, vector<16x32xf32> -> vector<16x32xf32>
    %c1_113 = arith.constant 1 : index
    %c0_114 = arith.constant 0 : index
    %c0_115 = arith.constant 0 : index
    %262 = vector.load %arg14[%c1_113, %c0_114, %c0_115] : memref<2x1x32xf32, #tpu.memory_space<vmem>>, vector<1x1x32xf32>
    %263 = vector.shape_cast %262 : vector<1x1x32xf32> to vector<1x32xf32>
    %264 = vector.broadcast %263 : vector<1x32xf32> to vector<16x32xf32>
    %265 = arith.addf %261, %264 : vector<16x32xf32>
    %266 = arith.addf %249, %265 : vector<16x32xf32>
    %c1_116 = arith.constant 1 : index
    %c0_117 = arith.constant 0 : index
    %c0_118 = arith.constant 0 : index
    %267 = vector.load %arg15[%c1_116, %c0_117, %c0_118] : memref<2x1x32xf32, #tpu.memory_space<vmem>>, vector<1x1x32xf32>
    %268 = vector.shape_cast %267 : vector<1x1x32xf32> to vector<1x32xf32>
    %c1_119 = arith.constant 1 : index
    %c0_120 = arith.constant 0 : index
    %c0_121 = arith.constant 0 : index
    %269 = vector.load %arg16[%c1_119, %c0_120, %c0_121] : memref<2x1x32xf32, #tpu.memory_space<vmem>>, vector<1x1x32xf32>
    %270 = vector.shape_cast %269 : vector<1x1x32xf32> to vector<1x32xf32>
    %cst_122 = arith.constant dense<0.000000e+00> : vector<16xf32>
    %271 = vector.multi_reduction <add>, %266, %cst_122 [1] : vector<16x32xf32> to vector<16xf32>
    %272 = vector.shape_cast %271 : vector<16xf32> to vector<16x1xf32>
    %cst_123 = arith.constant 3.200000e+01 : f32
    %273 = vector.broadcast %cst_123 : f32 to vector<16x1xf32>
    %274 = arith.divf %272, %273 : vector<16x1xf32>
    %275 = vector.broadcast %274 : vector<16x1xf32> to vector<16x32xf32>
    %276 = arith.subf %266, %275 : vector<16x32xf32>
    %277 = arith.mulf %276, %276 : vector<16x32xf32>
    %cst_124 = arith.constant dense<0.000000e+00> : vector<16xf32>
    %278 = vector.multi_reduction <add>, %277, %cst_124 [1] : vector<16x32xf32> to vector<16xf32>
    %279 = vector.shape_cast %278 : vector<16xf32> to vector<16x1xf32>
    %cst_125 = arith.constant 3.200000e+01 : f32
    %280 = vector.broadcast %cst_125 : f32 to vector<16x1xf32>
    %281 = arith.divf %279, %280 : vector<16x1xf32>
    %282 = vector.broadcast %274 : vector<16x1xf32> to vector<16x32xf32>
    %283 = arith.subf %266, %282 : vector<16x32xf32>
    %cst_126 = arith.constant 9.99999974E-6 : f32
    %284 = vector.broadcast %cst_126 : f32 to vector<16x1xf32>
    %285 = arith.addf %281, %284 : vector<16x1xf32>
    %286 = math.rsqrt %285 : vector<16x1xf32>
    %287 = vector.broadcast %286 : vector<16x1xf32> to vector<16x32xf32>
    %288 = arith.mulf %283, %287 : vector<16x32xf32>
    %289 = vector.broadcast %268 : vector<1x32xf32> to vector<16x32xf32>
    %290 = arith.mulf %288, %289 : vector<16x32xf32>
    %291 = vector.broadcast %270 : vector<1x32xf32> to vector<16x32xf32>
    %292 = arith.addf %290, %291 : vector<16x32xf32>
    %c0_127 = arith.constant 0 : index
    %c0_128 = arith.constant 0 : index
    %293 = vector.load %arg17[%c0_127, %c0_128] : memref<1x32xf32, #tpu.memory_space<vmem>>, vector<1x32xf32>
    %c0_129 = arith.constant 0 : index
    %c0_130 = arith.constant 0 : index
    %294 = vector.load %arg18[%c0_129, %c0_130] : memref<1x32xf32, #tpu.memory_space<vmem>>, vector<1x32xf32>
    %cst_131 = arith.constant dense<0.000000e+00> : vector<16xf32>
    %295 = vector.multi_reduction <add>, %292, %cst_131 [1] : vector<16x32xf32> to vector<16xf32>
    %296 = vector.shape_cast %295 : vector<16xf32> to vector<16x1xf32>
    %cst_132 = arith.constant 3.200000e+01 : f32
    %297 = vector.broadcast %cst_132 : f32 to vector<16x1xf32>
    %298 = arith.divf %296, %297 : vector<16x1xf32>
    %299 = vector.broadcast %298 : vector<16x1xf32> to vector<16x32xf32>
    %300 = arith.subf %292, %299 : vector<16x32xf32>
    %301 = arith.mulf %300, %300 : vector<16x32xf32>
    %cst_133 = arith.constant dense<0.000000e+00> : vector<16xf32>
    %302 = vector.multi_reduction <add>, %301, %cst_133 [1] : vector<16x32xf32> to vector<16xf32>
    %303 = vector.shape_cast %302 : vector<16xf32> to vector<16x1xf32>
    %cst_134 = arith.constant 3.200000e+01 : f32
    %304 = vector.broadcast %cst_134 : f32 to vector<16x1xf32>
    %305 = arith.divf %303, %304 : vector<16x1xf32>
    %306 = vector.broadcast %298 : vector<16x1xf32> to vector<16x32xf32>
    %307 = arith.subf %292, %306 : vector<16x32xf32>
    %cst_135 = arith.constant 9.99999974E-6 : f32
    %308 = vector.broadcast %cst_135 : f32 to vector<16x1xf32>
    %309 = arith.addf %305, %308 : vector<16x1xf32>
    %310 = math.rsqrt %309 : vector<16x1xf32>
    %311 = vector.broadcast %310 : vector<16x1xf32> to vector<16x32xf32>
    %312 = arith.mulf %307, %311 : vector<16x32xf32>
    %313 = vector.broadcast %293 : vector<1x32xf32> to vector<16x32xf32>
    %314 = arith.mulf %312, %313 : vector<16x32xf32>
    %315 = vector.broadcast %294 : vector<1x32xf32> to vector<16x32xf32>
    %316 = arith.addf %314, %315 : vector<16x32xf32>
    %c0_136 = arith.constant 0 : index
    %c0_137 = arith.constant 0 : index
    %317 = vector.load %arg19[%c0_136, %c0_137] : memref<16x32xf32, #tpu.memory_space<vmem>>, vector<16x32xf32>
    tpu.vector_store %arg19[%c0_136, %c0_137], %316 {strides = array<i32>} : memref<16x32xf32, #tpu.memory_space<vmem>>, vector<16x32xf32>,
    return
  }
}

</mosaic_0001>

<llo_original>
// kernel: transformer_encoder.1
$region0: #{transformer_encoder.1}
  #allocation0 [shape = 'u32[]', space=smem, size = 0x4, offset = 0x4, fixed_abs, tag = 'smem constant byte address 0x4 - core index']
  #allocation1 [shape = 'u32[144,128]{1,0:T(1,128)}', space=vmem, size = 0x12000, scoped, tag = 'internal scratch']
  %s0 = inlined_call_operand.vmem [shape: f32[16,32], index: 0, kind: input, shape index: {}]
  %s1 = inlined_call_operand.vmem [shape: f32[16,32], index: 1, kind: input, shape index: {}]
  %s2 = inlined_call_operand.vmem [shape: f32[16,16], index: 2, kind: input, shape index: {}]
  %s3 = inlined_call_operand.vmem [shape: f32[2,32,64], index: 3, kind: input, shape index: {}]
  %s4 = inlined_call_operand.vmem [shape: f32[2,1,64], index: 4, kind: input, shape index: {}]
  %s5 = inlined_call_operand.vmem [shape: f32[2,32,32], index: 5, kind: input, shape index: {}]
  %s6 = inlined_call_operand.vmem [shape: f32[2,1,32], index: 6, kind: input, shape index: {}]
  %s7 = inlined_call_operand.vmem [shape: f32[2,32,32], index: 7, kind: input, shape index: {}]
  %s8 = inlined_call_operand.vmem [shape: f32[2,1,32], index: 8, kind: input, shape index: {}]
  %s9 = inlined_call_operand.vmem [shape: f32[2,1,32], index: 9, kind: input, shape index: {}]
  %s10 = inlined_call_operand.vmem [shape: f32[2,1,32], index: 10, kind: input, shape index: {}]
  %s11 = inlined_call_operand.vmem [shape: f32[2,32,64], index: 11, kind: input, shape index: {}]
  %s12 = inlined_call_operand.vmem [shape: f32[2,1,64], index: 12, kind: input, shape index: {}]
  %s13 = inlined_call_operand.vmem [shape: f32[2,64,32], index: 13, kind: input, shape index: {}]
  %s14 = inlined_call_operand.vmem [shape: f32[2,1,32], index: 14, kind: input, shape index: {}]
  %s15 = inlined_call_operand.vmem [shape: f32[2,1,32], index: 15, kind: input, shape index: {}]
  %s16 = inlined_call_operand.vmem [shape: f32[2,1,32], index: 16, kind: input, shape index: {}]
  %s17 = inlined_call_operand.vmem [shape: f32[1,32], index: 17, kind: input, shape index: {}]
  %s18 = inlined_call_operand.vmem [shape: f32[1,32], index: 18, kind: input, shape index: {}]
  %s19 = inlined_call_operand.vmem [shape: f32[16,32], index: 19, kind: output, shape index: {}]
  %s20 = sld [smem:[#allocation0]]
  $region86: #{transformer_encoder.1} parent=0
    _
  %s22 = ssub.s32 1, %s20
  %s23 = scalar_select 0, %s22, %s20
  // Predicated region
  $region2: #{transformer_encoder.1} parent=0 // pred_check
    _
  $region3: #{transformer_encoder.1} parent=0 // pred_check_branch
    %25 = sbr.rel (0) target = $region5
  $region4: #{transformer_encoder.1} parent=0 // pred_region
    _
  $region5: #{transformer_encoder.1} parent=0 // pred_fallthru
    _
  // Predicated region
  $region6: #{transformer_encoder.1} parent=0 // pred_check
    _
  $region7: #{transformer_encoder.1} parent=0 // pred_check_branch
    %27 = sbr.rel (0) target = $region9
  $region8: #{transformer_encoder.1} parent=0 // pred_region
    _
  $region9: #{transformer_encoder.1} parent=0 // pred_fallthru
    _
  // Predicated region
  $region10: #{transformer_encoder.1} parent=0 // pred_check
    _
  $region11: #{transformer_encoder.1} parent=0 // pred_check_branch
    %29 = sbr.rel (0) target = $region13
  $region12: #{transformer_encoder.1} parent=0 // pred_region
    _
  $region13: #{transformer_encoder.1} parent=0 // pred_fallthru
    _
  // Predicated region
  $region14: #{transformer_encoder.1} parent=0 // pred_check
    _
  $region15: #{transformer_encoder.1} parent=0 // pred_check_branch
    %31 = sbr.rel (0) target = $region17
  $region16: #{transformer_encoder.1} parent=0 // pred_region
    _
  $region17: #{transformer_encoder.1} parent=0 // pred_fallthru
    _
  // Predicated region
  $region18: #{transformer_encoder.1} parent=0 // pred_check
    _
  $region19: #{transformer_encoder.1} parent=0 // pred_check_branch
    %33 = sbr.rel (0) target = $region21
  $region20: #{transformer_encoder.1} parent=0 // pred_region
    _
  $region21: #{transformer_encoder.1} parent=0 // pred_fallthru
    _
  // Predicated region
  $region22: #{transformer_encoder.1} parent=0 // pred_check
    _
  $region23: #{transformer_encoder.1} parent=0 // pred_check_branch
    %35 = sbr.rel (0) target = $region25
  $region24: #{transformer_encoder.1} parent=0 // pred_region
    _
  $region25: #{transformer_encoder.1} parent=0 // pred_fallthru
    _
  // Predicated region
  $region26: #{transformer_encoder.1} parent=0 // pred_check
    _
  $region27: #{transformer_encoder.1} parent=0 // pred_check_branch
    %37 = sbr.rel (0) target = $region29
  $region28: #{transformer_encoder.1} parent=0 // pred_region
    _
  $region29: #{transformer_encoder.1} parent=0 // pred_fallthru
    _
  // Predicated region
  $region30: #{transformer_encoder.1} parent=0 // pred_check
    _
  $region31: #{transformer_encoder.1} parent=0 // pred_check_branch
    %39 = sbr.rel (0) target = $region33
  $region32: #{transformer_encoder.1} parent=0 // pred_region
    _
  $region33: #{transformer_encoder.1} parent=0 // pred_fallthru
    _
  // Predicated region
  $region34: #{transformer_encoder.1} parent=0 // pred_check
    _
  $region35: #{transformer_encoder.1} parent=0 // pred_check_branch
    %41 = sbr.rel (0) target = $region37
  $region36: #{transformer_encoder.1} parent=0 // pred_region
    _
  $region37: #{transformer_encoder.1} parent=0 // pred_fallthru
    _
  // Predicated region
  $region38: #{transformer_encoder.1} parent=0 // pred_check
    _
  $region39: #{transformer_encoder.1} parent=0 // pred_check_branch
    %43 = sbr.rel (0) target = $region41
  $region40: #{transformer_encoder.1} parent=0 // pred_region
    _
  $region41: #{transformer_encoder.1} parent=0 // pred_fallthru
    _
  // Predicated region
  $region42: #{transformer_encoder.1} parent=0 // pred_check
    _
  $region43: #{transformer_encoder.1} parent=0 // pred_check_branch
    %45 = sbr.rel (0) target = $region45
  $region44: #{transformer_encoder.1} parent=0 // pred_region
    _
  $region45: #{transformer_encoder.1} parent=0 // pred_fallthru
    _
  // Predicated region
  $region46: #{transformer_encoder.1} parent=0 // pred_check
    _
  $region47: #{transformer_encoder.1} parent=0 // pred_check_branch
    %47 = sbr.rel (0) target = $region49
  $region48: #{transformer_encoder.1} parent=0 // pred_region
    _
  $region49: #{transformer_encoder.1} parent=0 // pred_fallthru
    _
  // Predicated region
  $region50: #{transformer_encoder.1} parent=0 // pred_check
    _
  $region51: #{transformer_encoder.1} parent=0 // pred_check_branch
    %49 = sbr.rel (0) target = $region53
  $region52: #{transformer_encoder.1} parent=0 // pred_region
    _
  $region53: #{transformer_encoder.1} parent=0 // pred_fallthru
    _
  // Predicated region
  $region54: #{transformer_encoder.1} parent=0 // pred_check
    _
  $region55: #{transformer_encoder.1} parent=0 // pred_check_branch
    %51 = sbr.rel (0) target = $region57
  $region56: #{transformer_encoder.1} parent=0 // pred_region
    _
  $region57: #{transformer_encoder.1} parent=0 // pred_fallthru
    _
  // Predicated region
  $region58: #{transformer_encoder.1} parent=0 // pred_check
    _
  $region59: #{transformer_encoder.1} parent=0 // pred_check_branch
    %53 = sbr.rel (0) target = $region61
  $region60: #{transformer_encoder.1} parent=0 // pred_region
    _
  $region61: #{transformer_encoder.1} parent=0 // pred_fallthru
    _
  // Predicated region
  $region62: #{transformer_encoder.1} parent=0 // pred_check
    _
  $region63: #{transformer_encoder.1} parent=0 // pred_check_branch
    %55 = sbr.rel (0) target = $region65
  $region64: #{transformer_encoder.1} parent=0 // pred_region
    _
  $region65: #{transformer_encoder.1} parent=0 // pred_fallthru
    _
  // Predicated region
  $region66: #{transformer_encoder.1} parent=0 // pred_check
    _
  $region67: #{transformer_encoder.1} parent=0 // pred_check_branch
    %57 = sbr.rel (0) target = $region69
  $region68: #{transformer_encoder.1} parent=0 // pred_region
    _
  $region69: #{transformer_encoder.1} parent=0 // pred_fallthru
    _
  // Predicated region
  $region70: #{transformer_encoder.1} parent=0 // pred_check
    _
  $region71: #{transformer_encoder.1} parent=0 // pred_check_branch
    %59 = sbr.rel (0) target = $region73
  $region72: #{transformer_encoder.1} parent=0 // pred_region
    _
  $region73: #{transformer_encoder.1} parent=0 // pred_fallthru
    _
  // Predicated region
  $region74: #{transformer_encoder.1} parent=0 // pred_check
    _
  $region75: #{transformer_encoder.1} parent=0 // pred_check_branch
    %61 = sbr.rel (0) target = $region77
  $region76: #{transformer_encoder.1} parent=0 // pred_region
    _
  $region77: #{transformer_encoder.1} parent=0 // pred_fallthru
    _
  %v62 = vld [vmem:[%s0] sm:$0xff]
  %v63 = vld [vmem:[%s0 + $0x8] sm:$0xff]
  %v64 = vld [vmem:[%s1] sm:$0xff]
  %v65 = vld [vmem:[%s1 + $0x8] sm:$0xff]
  %v66 = vld [vmem:[%s2] sm:$0xff]
  %v67 = vld [vmem:[%s2 + $0x8] sm:$0xff]
  %v68 = vadd.f32 %v62, %v64
  %v69 = vadd.f32 %v63, %v65
  %v70 = vld [vmem:[%s3] sm:$0xff]
  %v71 = vld [vmem:[%s3 + $0x8] sm:$0xff]
  %v72 = vld [vmem:[%s3 + $0x10] sm:$0xff]
  %v73 = vld [vmem:[%s3 + $0x18] sm:$0xff]
  %v74 = vld [vmem:[%s4] sm:$0x1]
  %v76 = vlaneseq
  %v77 = vshrl.u32 %v76, 7
  %v78 = vsub.s32 0, %v77
  %v79 = vrot.slane %v74, %v78
  %vm81 = vcmask 261120
  %v83 = vsel %vm81, %v68, 0
  %v86 = vsel %vm81, %v69, 0
  %88 = vmatprep.subr.mxu0 0.0
  %89 = vmatpush1.msra.mxu0 %v70
  %90 = vmatprep.subr.mxu0 0.0
  %91 = vmatpush1.msra.mxu0 %v71
  %92 = vmatprep.subr.mxu0 0.0
  %93 = vmatpush1.msra.mxu0 %v72
  %94 = vmatprep.subr.mxu0 0.0
  %95 = vmatpush1.msra.mxu0 %v73
  %96 = vmatprep.subr.mxu0 0.0
  %97 = vmatpush1.msra.mxu0 0.0
  %98 = vmatprep.subr.mxu0 0.0
  %99 = vmatpush1.msra.mxu0 0.0
  %100 = vmatprep.subr.mxu0 0.0
  %101 = vmatpush1.msra.mxu0 0.0
  %102 = vmatprep.subr.mxu0 0.0
  %103 = vmatpush1.msra.mxu0 0.0
  %104 = vmatprep.subr.mxu0 0.0
  %105 = vmatpush1.msra.mxu0 0.0
  %106 = vmatprep.subr.mxu0 0.0
  %107 = vmatpush1.msra.mxu0 0.0
  %108 = vmatprep.subr.mxu0 0.0
  %109 = vmatpush1.msra.mxu0 0.0
  %110 = vmatprep.subr.mxu0 0.0
  %111 = vmatpush1.msra.mxu0 0.0
  %112 = vmatprep.subr.mxu0 0.0
  %113 = vmatpush1.msra.mxu0 0.0
  %114 = vmatprep.subr.mxu0 0.0
  %115 = vmatpush1.msra.mxu0 0.0
  %116 = vmatprep.subr.mxu0 0.0
  %117 = vmatpush1.msra.mxu0 0.0
  %118 = vmatprep.subr.mxu0 0.0
  %119 = vmatpush1.msra.mxu0 0.0
  %120 = vmatprep.subr.mxu0 0.0
  %121 = vmatpush1.msra.mxu0 0.0
  %122 = vmatprep.subr.mxu0 0.0
  %123 = vmatpush1.msra.mxu0 0.0
  %124 = vmatprep.subr.mxu0 0.0
  %125 = vmatpush1.msra.mxu0 0.0
  %126 = vmatprep.subr.mxu0 0.0
  %127 = vmatpush1.msra.mxu0 0.0
  %128 = vmatprep.subr.mxu0 0.0
  %129 = vmatpush1.msra.mxu0 0.0
  %130 = vmatprep.subr.mxu0 0.0
  %131 = vmatpush1.msra.mxu0 0.0
  %132 = vmatprep.subr.mxu0 0.0
  %133 = vmatpush1.msra.mxu0 0.0
  %134 = vmatprep.subr.mxu0 0.0
  %135 = vmatpush1.msra.mxu0 0.0
  %136 = vmatprep.subr.mxu0 0.0
  %137 = vmatpush1.msra.mxu0 0.0
  %138 = vmatprep.subr.mxu0 0.0
  %139 = vmatpush1.msra.mxu0 0.0
  %140 = vmatprep.subr.mxu0 0.0
  %141 = vmatpush1.msra.mxu0 0.0
  %142 = vmatprep.subr.mxu0 0.0
  %143 = vmatpush1.msra.mxu0 0.0
  %144 = vmatprep.subr.mxu0 0.0
  %145 = vmatpush1.msra.mxu0 0.0
  %146 = vmatprep.subr.mxu0 0.0
  %147 = vmatpush1.msra.mxu0 0.0
  %148 = vmatprep.subr.mxu0 0.0
  %149 = vmatpush1.msra.mxu0 0.0
  %150 = vmatprep.subr.mxu0 0.0
  %151 = vmatpush1.msra.mxu0 0.0
  %152 = vmatprep.mubr.f32.mxu0 0.0
  %153 = vmatmul.mubr.f32.gmra.mrb[0].mxu0 %v83
  %v154 = vpop.f32.mrb[0].mxu0
  %v155 = vadd.f32 %v79, %v154
  %v156 = vpop.f32.mrb[0].mxu0
  %157 = vmatprep.mubr.f32.mxu0 0.0
  %158 = vmatmul.mubr.f32.gmra.mrb[0].mxu0 %v86
  %v159 = vpop.f32.mrb[0].mxu0
  %v160 = vadd.f32 %v79, %v159
  %v161 = vpop.f32.mrb[0].mxu0
  %162 = vdwg.mxu0
  %v163 = vld [vmem:[%s5] sm:$0xff]
  %v164 = vld [vmem:[%s5 + $0x8] sm:$0xff]
  %v165 = vld [vmem:[%s5 + $0x10] sm:$0xff]
  %v166 = vld [vmem:[%s5 + $0x18] sm:$0xff]
  %v167 = vld [vmem:[%s6] sm:$0x1]
  %v169 = vlaneseq
  %v170 = vshrl.u32 %v169, 7
  %v171 = vsub.s32 0, %v170
  %v172 = vrot.slane %v167, %v171
  %v175 = vsel %vm81, %v62, 0
  %v178 = vsel %vm81, %v63, 0
  %180 = vmatprep.subr.mxu0 0.0
  %181 = vmatpush1.msra.mxu0 %v163
  %182 = vmatprep.subr.mxu0 0.0
  %183 = vmatpush1.msra.mxu0 %v164
  %184 = vmatprep.subr.mxu0 0.0
  %185 = vmatpush1.msra.mxu0 %v165
  %186 = vmatprep.subr.mxu0 0.0
  %187 = vmatpush1.msra.mxu0 %v166
  %188 = vmatprep.subr.mxu0 0.0
  %189 = vmatpush1.msra.mxu0 0.0
  %190 = vmatprep.subr.mxu0 0.0
  %191 = vmatpush1.msra.mxu0 0.0
  %192 = vmatprep.subr.mxu0 0.0
  %193 = vmatpush1.msra.mxu0 0.0
  %194 = vmatprep.subr.mxu0 0.0
  %195 = vmatpush1.msra.mxu0 0.0
  %196 = vmatprep.subr.mxu0 0.0
  %197 = vmatpush1.msra.mxu0 0.0
  %198 = vmatprep.subr.mxu0 0.0
  %199 = vmatpush1.msra.mxu0 0.0
  %200 = vmatprep.subr.mxu0 0.0
  %201 = vmatpush1.msra.mxu0 0.0
  %202 = vmatprep.subr.mxu0 0.0
  %203 = vmatpush1.msra.mxu0 0.0
  %204 = vmatprep.subr.mxu0 0.0
  %205 = vmatpush1.msra.mxu0 0.0
  %206 = vmatprep.subr.mxu0 0.0
  %207 = vmatpush1.msra.mxu0 0.0
  %208 = vmatprep.subr.mxu0 0.0
  %209 = vmatpush1.msra.mxu0 0.0
  %210 = vmatprep.subr.mxu0 0.0
  %211 = vmatpush1.msra.mxu0 0.0
  %212 = vmatprep.subr.mxu0 0.0
  %213 = vmatpush1.msra.mxu0 0.0
  %214 = vmatprep.subr.mxu0 0.0
  %215 = vmatpush1.msra.mxu0 0.0
  %216 = vmatprep.subr.mxu0 0.0
  %217 = vmatpush1.msra.mxu0 0.0
  %218 = vmatprep.subr.mxu0 0.0
  %219 = vmatpush1.msra.mxu0 0.0
  %220 = vmatprep.subr.mxu0 0.0
  %221 = vmatpush1.msra.mxu0 0.0
  %222 = vmatprep.subr.mxu0 0.0
  %223 = vmatpush1.msra.mxu0 0.0
  %224 = vmatprep.subr.mxu0 0.0
  %225 = vmatpush1.msra.mxu0 0.0
  %226 = vmatprep.subr.mxu0 0.0
  %227 = vmatpush1.msra.mxu0 0.0
  %228 = vmatprep.subr.mxu0 0.0
  %229 = vmatpush1.msra.mxu0 0.0
  %230 = vmatprep.subr.mxu0 0.0
  %231 = vmatpush1.msra.mxu0 0.0
  %232 = vmatprep.subr.mxu0 0.0
  %233 = vmatpush1.msra.mxu0 0.0
  %234 = vmatprep.subr.mxu0 0.0
  %235 = vmatpush1.msra.mxu0 0.0
  %236 = vmatprep.subr.mxu0 0.0
  %237 = vmatpush1.msra.mxu0 0.0
  %238 = vmatprep.subr.mxu0 0.0
  %239 = vmatpush1.msra.mxu0 0.0
  %240 = vmatprep.subr.mxu0 0.0
  %241 = vmatpush1.msra.mxu0 0.0
  %242 = vmatprep.subr.mxu0 0.0
  %243 = vmatpush1.msra.mxu0 0.0
  %244 = vmatprep.mubr.f32.mxu0 0.0
  %245 = vmatmul.mubr.f32.gmra.mrb[0].mxu0 %v175
  %v246 = vpop.f32.mrb[0].mxu0
  %v247 = vadd.f32 %v172, %v246
  %v248 = vpop.f32.mrb[0].mxu0
  %249 = vmatprep.mubr.f32.mxu0 0.0
  %250 = vmatmul.mubr.f32.gmra.mrb[0].mxu0 %v178
  %v251 = vpop.f32.mrb[0].mxu0
  %v252 = vadd.f32 %v172, %v251
  %v253 = vpop.f32.mrb[0].mxu0
  %254 = vdwg.mxu0
  %257 = vrot.lane.b32.xlu0 %v155, 120
  %v258 = vpop.permute.xlu0 %257
  %259 = vrot.lane.b32.xlu0 %v160, 120
  %v260 = vpop.permute.xlu0 %259
  %261 = vrot.lane.b32.xlu0 %v155, 112
  %v262 = vpop.permute.xlu0 %261
  %263 = vrot.lane.b32.xlu0 %v160, 112
  %v264 = vpop.permute.xlu0 %263
  %265 = vrot.lane.b32.xlu0 %v155, 104
  %v266 = vpop.permute.xlu0 %265
  %267 = vrot.lane.b32.xlu0 %v160, 104
  %v268 = vpop.permute.xlu0 %267
  %271 = vrot.lane.b32.xlu0 %v247, 120
  %v272 = vpop.permute.xlu0 %271
  %273 = vrot.lane.b32.xlu0 %v252, 120
  %v274 = vpop.permute.xlu0 %273
  %277 = vrot.lane.b32.xlu0 %v247, 112
  %v278 = vpop.permute.xlu0 %277
  %279 = vrot.lane.b32.xlu0 %v252, 112
  %v280 = vpop.permute.xlu0 %279
  %283 = vrot.lane.b32.xlu0 %v247, 104
  %v284 = vpop.permute.xlu0 %283
  %285 = vrot.lane.b32.xlu0 %v252, 104
  %v286 = vpop.permute.xlu0 %285
  %289 = vrot.lane.b32.xlu0 %v155, 96
  %v290 = vpop.permute.xlu0 %289
  %291 = vrot.lane.b32.xlu0 %v160, 96
  %v292 = vpop.permute.xlu0 %291
  %vm293 = vcmask 64512
  %v294 = vsel %vm293, %v155, 0
  %v296 = vsel %vm293, %v160, 0
  %v298 = vsel %vm293, %v290, 0
  %v300 = vsel %vm293, %v292, 0
  %302 = vmatprep.subr.mxu0 0.0
  %303 = vmatpush1.xpose.msra.mxu0 %v298
  %304 = vmatprep.subr.mxu0 0.0
  %305 = vmatpush1.xpose.msra.mxu0 %v300
  %306 = vmatprep.subr.mxu0 0.0
  %307 = vmatpush1.xpose.msra.mxu0 0.0
  %308 = vmatprep.subr.mxu0 0.0
  %309 = vmatpush1.xpose.msra.mxu0 0.0
  %310 = vmatprep.subr.mxu0 0.0
  %311 = vmatpush1.xpose.msra.mxu0 0.0
  %312 = vmatprep.subr.mxu0 0.0
  %313 = vmatpush1.xpose.msra.mxu0 0.0
  %314 = vmatprep.subr.mxu0 0.0
  %315 = vmatpush1.xpose.msra.mxu0 0.0
  %316 = vmatprep.subr.mxu0 0.0
  %317 = vmatpush1.xpose.msra.mxu0 0.0
  %318 = vmatprep.subr.mxu0 0.0
  %319 = vmatpush1.xpose.msra.mxu0 0.0
  %320 = vmatprep.subr.mxu0 0.0
  %321 = vmatpush1.xpose.msra.mxu0 0.0
  %322 = vmatprep.subr.mxu0 0.0
  %323 = vmatpush1.xpose.msra.mxu0 0.0
  %324 = vmatprep.subr.mxu0 0.0
  %325 = vmatpush1.xpose.msra.mxu0 0.0
  %326 = vmatprep.subr.mxu0 0.0
  %327 = vmatpush1.xpose.msra.mxu0 0.0
  %328 = vmatprep.subr.mxu0 0.0
  %329 = vmatpush1.xpose.msra.mxu0 0.0
  %330 = vmatprep.subr.mxu0 0.0
  %331 = vmatpush1.xpose.msra.mxu0 0.0
  %332 = vmatprep.subr.mxu0 0.0
  %333 = vmatpush1.xpose.msra.mxu0 0.0
  %334 = vmatprep.subr.mxu0 0.0
  %335 = vmatpush1.xpose.msra.mxu0 0.0
  %336 = vmatprep.subr.mxu0 0.0
  %337 = vmatpush1.xpose.msra.mxu0 0.0
  %338 = vmatprep.subr.mxu0 0.0
  %339 = vmatpush1.xpose.msra.mxu0 0.0
  %340 = vmatprep.subr.mxu0 0.0
  %341 = vmatpush1.xpose.msra.mxu0 0.0
  %342 = vmatprep.subr.mxu0 0.0
  %343 = vmatpush1.xpose.msra.mxu0 0.0
  %344 = vmatprep.subr.mxu0 0.0
  %345 = vmatpush1.xpose.msra.mxu0 0.0
  %346 = vmatprep.subr.mxu0 0.0
  %347 = vmatpush1.xpose.msra.mxu0 0.0
  %348 = vmatprep.subr.mxu0 0.0
  %349 = vmatpush1.xpose.msra.mxu0 0.0
  %350 = vmatprep.subr.mxu0 0.0
  %351 = vmatpush1.xpose.msra.mxu0 0.0
  %352 = vmatprep.subr.mxu0 0.0
  %353 = vmatpush1.xpose.msra.mxu0 0.0
  %354 = vmatprep.subr.mxu0 0.0
  %355 = vmatpush1.xpose.msra.mxu0 0.0
  %356 = vmatprep.subr.mxu0 0.0
  %357 = vmatpush1.xpose.msra.mxu0 0.0
  %358 = vmatprep.subr.mxu0 0.0
  %359 = vmatpush1.xpose.msra.mxu0 0.0
  %360 = vmatprep.subr.mxu0 0.0
  %361 = vmatpush1.xpose.msra.mxu0 0.0
  %362 = vmatprep.subr.mxu0 0.0
  %363 = vmatpush1.xpose.msra.mxu0 0.0
  %364 = vmatprep.subr.mxu0 0.0
  %365 = vmatpush1.xpose.msra.mxu0 0.0
  %366 = vmatprep.mubr.f32.mxu0 0.0
  %367 = vmatmul.mubr.f32.gmra.mrb[0].mxu0 %v294
  %v368 = vpop.f32.mrb[0].mxu0
  %v369 = vadd.f32 %v66, %v368
  %v370 = vpop.f32.mrb[0].mxu0
  %371 = vmatprep.mubr.f32.mxu0 0.0
  %372 = vmatmul.mubr.f32.gmra.mrb[0].mxu0 %v296
  %v373 = vpop.f32.mrb[0].mxu0
  %v374 = vadd.f32 %v67, %v373
  %v375 = vpop.f32.mrb[0].mxu0
  %376 = vdwg.mxu0
  %377 = vrot.lane.b32.xlu0 %v258, 96
  %v378 = vpop.permute.xlu0 %377
  %379 = vrot.lane.b32.xlu0 %v260, 96
  %v380 = vpop.permute.xlu0 %379
  %v381 = vsel %vm293, %v258, 0
  %v383 = vsel %vm293, %v260, 0
  %v385 = vsel %vm293, %v378, 0
  %v387 = vsel %vm293, %v380, 0
  %389 = vmatprep.subr.mxu0 0.0
  %390 = vmatpush1.xpose.msra.mxu0 %v385
  %391 = vmatprep.subr.mxu0 0.0
  %392 = vmatpush1.xpose.msra.mxu0 %v387
  %393 = vmatprep.subr.mxu0 0.0
  %394 = vmatpush1.xpose.msra.mxu0 0.0
  %395 = vmatprep.subr.mxu0 0.0
  %396 = vmatpush1.xpose.msra.mxu0 0.0
  %397 = vmatprep.subr.mxu0 0.0
  %398 = vmatpush1.xpose.msra.mxu0 0.0
  %399 = vmatprep.subr.mxu0 0.0
  %400 = vmatpush1.xpose.msra.mxu0 0.0
  %401 = vmatprep.subr.mxu0 0.0
  %402 = vmatpush1.xpose.msra.mxu0 0.0
  %403 = vmatprep.subr.mxu0 0.0
  %404 = vmatpush1.xpose.msra.mxu0 0.0
  %405 = vmatprep.subr.mxu0 0.0
  %406 = vmatpush1.xpose.msra.mxu0 0.0
  %407 = vmatprep.subr.mxu0 0.0
  %408 = vmatpush1.xpose.msra.mxu0 0.0
  %409 = vmatprep.subr.mxu0 0.0
  %410 = vmatpush1.xpose.msra.mxu0 0.0
  %411 = vmatprep.subr.mxu0 0.0
  %412 = vmatpush1.xpose.msra.mxu0 0.0
  %413 = vmatprep.subr.mxu0 0.0
  %414 = vmatpush1.xpose.msra.mxu0 0.0
  %415 = vmatprep.subr.mxu0 0.0
  %416 = vmatpush1.xpose.msra.mxu0 0.0
  %417 = vmatprep.subr.mxu0 0.0
  %418 = vmatpush1.xpose.msra.mxu0 0.0
  %419 = vmatprep.subr.mxu0 0.0
  %420 = vmatpush1.xpose.msra.mxu0 0.0
  %421 = vmatprep.subr.mxu0 0.0
  %422 = vmatpush1.xpose.msra.mxu0 0.0
  %423 = vmatprep.subr.mxu0 0.0
  %424 = vmatpush1.xpose.msra.mxu0 0.0
  %425 = vmatprep.subr.mxu0 0.0
  %426 = vmatpush1.xpose.msra.mxu0 0.0
  %427 = vmatprep.subr.mxu0 0.0
  %428 = vmatpush1.xpose.msra.mxu0 0.0
  %429 = vmatprep.subr.mxu0 0.0
  %430 = vmatpush1.xpose.msra.mxu0 0.0
  %431 = vmatprep.subr.mxu0 0.0
  %432 = vmatpush1.xpose.msra.mxu0 0.0
  %433 = vmatprep.subr.mxu0 0.0
  %434 = vmatpush1.xpose.msra.mxu0 0.0
  %435 = vmatprep.subr.mxu0 0.0
  %436 = vmatpush1.xpose.msra.mxu0 0.0
  %437 = vmatprep.subr.mxu0 0.0
  %438 = vmatpush1.xpose.msra.mxu0 0.0
  %439 = vmatprep.subr.mxu0 0.0
  %440 = vmatpush1.xpose.msra.mxu0 0.0
  %441 = vmatprep.subr.mxu0 0.0
  %442 = vmatpush1.xpose.msra.mxu0 0.0
  %443 = vmatprep.subr.mxu0 0.0
  %444 = vmatpush1.xpose.msra.mxu0 0.0
  %445 = vmatprep.subr.mxu0 0.0
  %446 = vmatpush1.xpose.msra.mxu0 0.0
  %447 = vmatprep.subr.mxu0 0.0
  %448 = vmatpush1.xpose.msra.mxu0 0.0
  %449 = vmatprep.subr.mxu0 0.0
  %450 = vmatpush1.xpose.msra.mxu0 0.0
  %451 = vmatprep.subr.mxu0 0.0
  %452 = vmatpush1.xpose.msra.mxu0 0.0
  %453 = vmatprep.mubr.f32.mxu0 0.0
  %454 = vmatmul.mubr.f32.gmra.mrb[0].mxu0 %v381
  %v455 = vpop.f32.mrb[0].mxu0
  %v456 = vadd.f32 %v66, %v455
  %v457 = vpop.f32.mrb[0].mxu0
  %458 = vmatprep.mubr.f32.mxu0 0.0
  %459 = vmatmul.mubr.f32.gmra.mrb[0].mxu0 %v383
  %v460 = vpop.f32.mrb[0].mxu0
  %v461 = vadd.f32 %v67, %v460
  %v462 = vpop.f32.mrb[0].mxu0
  %463 = vdwg.mxu0
  %464 = vrot.lane.b32.xlu0 %v262, 96
  %v465 = vpop.permute.xlu0 %464
  %466 = vrot.lane.b32.xlu0 %v264, 96
  %v467 = vpop.permute.xlu0 %466
  %v468 = vsel %vm293, %v262, 0
  %v470 = vsel %vm293, %v264, 0
  %v472 = vsel %vm293, %v465, 0
  %v474 = vsel %vm293, %v467, 0
  %476 = vmatprep.subr.mxu0 0.0
  %477 = vmatpush1.xpose.msra.mxu0 %v472
  %478 = vmatprep.subr.mxu0 0.0
  %479 = vmatpush1.xpose.msra.mxu0 %v474
  %480 = vmatprep.subr.mxu0 0.0
  %481 = vmatpush1.xpose.msra.mxu0 0.0
  %482 = vmatprep.subr.mxu0 0.0
  %483 = vmatpush1.xpose.msra.mxu0 0.0
  %484 = vmatprep.subr.mxu0 0.0
  %485 = vmatpush1.xpose.msra.mxu0 0.0
  %486 = vmatprep.subr.mxu0 0.0
  %487 = vmatpush1.xpose.msra.mxu0 0.0
  %488 = vmatprep.subr.mxu0 0.0
  %489 = vmatpush1.xpose.msra.mxu0 0.0
  %490 = vmatprep.subr.mxu0 0.0
  %491 = vmatpush1.xpose.msra.mxu0 0.0
  %492 = vmatprep.subr.mxu0 0.0
  %493 = vmatpush1.xpose.msra.mxu0 0.0
  %494 = vmatprep.subr.mxu0 0.0
  %495 = vmatpush1.xpose.msra.mxu0 0.0
  %496 = vmatprep.subr.mxu0 0.0
  %497 = vmatpush1.xpose.msra.mxu0 0.0
  %498 = vmatprep.subr.mxu0 0.0
  %499 = vmatpush1.xpose.msra.mxu0 0.0
  %500 = vmatprep.subr.mxu0 0.0
  %501 = vmatpush1.xpose.msra.mxu0 0.0
  %502 = vmatprep.subr.mxu0 0.0
  %503 = vmatpush1.xpose.msra.mxu0 0.0
  %504 = vmatprep.subr.mxu0 0.0
  %505 = vmatpush1.xpose.msra.mxu0 0.0
  %506 = vmatprep.subr.mxu0 0.0
  %507 = vmatpush1.xpose.msra.mxu0 0.0
  %508 = vmatprep.subr.mxu0 0.0
  %509 = vmatpush1.xpose.msra.mxu0 0.0
  %510 = vmatprep.subr.mxu0 0.0
  %511 = vmatpush1.xpose.msra.mxu0 0.0
  %512 = vmatprep.subr.mxu0 0.0
  %513 = vmatpush1.xpose.msra.mxu0 0.0
  %514 = vmatprep.subr.mxu0 0.0
  %515 = vmatpush1.xpose.msra.mxu0 0.0
  %516 = vmatprep.subr.mxu0 0.0
  %517 = vmatpush1.xpose.msra.mxu0 0.0
  %518 = vmatprep.subr.mxu0 0.0
  %519 = vmatpush1.xpose.msra.mxu0 0.0
  %520 = vmatprep.subr.mxu0 0.0
  %521 = vmatpush1.xpose.msra.mxu0 0.0
  %522 = vmatprep.subr.mxu0 0.0
  %523 = vmatpush1.xpose.msra.mxu0 0.0
  %524 = vmatprep.subr.mxu0 0.0
  %525 = vmatpush1.xpose.msra.mxu0 0.0
  %526 = vmatprep.subr.mxu0 0.0
  %527 = vmatpush1.xpose.msra.mxu0 0.0
  %528 = vmatprep.subr.mxu0 0.0
  %529 = vmatpush1.xpose.msra.mxu0 0.0
  %530 = vmatprep.subr.mxu0 0.0
  %531 = vmatpush1.xpose.msra.mxu0 0.0
  %532 = vmatprep.subr.mxu0 0.0
  %533 = vmatpush1.xpose.msra.mxu0 0.0
  %534 = vmatprep.subr.mxu0 0.0
  %535 = vmatpush1.xpose.msra.mxu0 0.0
  %536 = vmatprep.subr.mxu0 0.0
  %537 = vmatpush1.xpose.msra.mxu0 0.0
  %538 = vmatprep.subr.mxu0 0.0
  %539 = vmatpush1.xpose.msra.mxu0 0.0
  %540 = vmatprep.mubr.f32.mxu0 0.0
  %541 = vmatmul.mubr.f32.gmra.mrb[0].mxu0 %v468
  %v542 = vpop.f32.mrb[0].mxu0
  %v543 = vadd.f32 %v66, %v542
  %v544 = vpop.f32.mrb[0].mxu0
  %545 = vmatprep.mubr.f32.mxu0 0.0
  %546 = vmatmul.mubr.f32.gmra.mrb[0].mxu0 %v470
  %v547 = vpop.f32.mrb[0].mxu0
  %v548 = vadd.f32 %v67, %v547
  %v549 = vpop.f32.mrb[0].mxu0
  %550 = vdwg.mxu0
  %551 = vrot.lane.b32.xlu0 %v266, 96
  %v552 = vpop.permute.xlu0 %551
  %553 = vrot.lane.b32.xlu0 %v268, 96
  %v554 = vpop.permute.xlu0 %553
  %v555 = vsel %vm293, %v266, 0
  %v557 = vsel %vm293, %v268, 0
  %v559 = vsel %vm293, %v552, 0
  %v561 = vsel %vm293, %v554, 0
  %563 = vmatprep.subr.mxu0 0.0
  %564 = vmatpush1.xpose.msra.mxu0 %v559
  %565 = vmatprep.subr.mxu0 0.0
  %566 = vmatpush1.xpose.msra.mxu0 %v561
  %567 = vmatprep.subr.mxu0 0.0
  %568 = vmatpush1.xpose.msra.mxu0 0.0
  %569 = vmatprep.subr.mxu0 0.0
  %570 = vmatpush1.xpose.msra.mxu0 0.0
  %571 = vmatprep.subr.mxu0 0.0
  %572 = vmatpush1.xpose.msra.mxu0 0.0
  %573 = vmatprep.subr.mxu0 0.0
  %574 = vmatpush1.xpose.msra.mxu0 0.0
  %575 = vmatprep.subr.mxu0 0.0
  %576 = vmatpush1.xpose.msra.mxu0 0.0
  %577 = vmatprep.subr.mxu0 0.0
  %578 = vmatpush1.xpose.msra.mxu0 0.0
  %579 = vmatprep.subr.mxu0 0.0
  %580 = vmatpush1.xpose.msra.mxu0 0.0
  %581 = vmatprep.subr.mxu0 0.0
  %582 = vmatpush1.xpose.msra.mxu0 0.0
  %583 = vmatprep.subr.mxu0 0.0
  %584 = vmatpush1.xpose.msra.mxu0 0.0
  %585 = vmatprep.subr.mxu0 0.0
  %586 = vmatpush1.xpose.msra.mxu0 0.0
  %587 = vmatprep.subr.mxu0 0.0
  %588 = vmatpush1.xpose.msra.mxu0 0.0
  %589 = vmatprep.subr.mxu0 0.0
  %590 = vmatpush1.xpose.msra.mxu0 0.0
  %591 = vmatprep.subr.mxu0 0.0
  %592 = vmatpush1.xpose.msra.mxu0 0.0
  %593 = vmatprep.subr.mxu0 0.0
  %594 = vmatpush1.xpose.msra.mxu0 0.0
  %595 = vmatprep.subr.mxu0 0.0
  %596 = vmatpush1.xpose.msra.mxu0 0.0
  %597 = vmatprep.subr.mxu0 0.0
  %598 = vmatpush1.xpose.msra.mxu0 0.0
  %599 = vmatprep.subr.mxu0 0.0
  %600 = vmatpush1.xpose.msra.mxu0 0.0
  %601 = vmatprep.subr.mxu0 0.0
  %602 = vmatpush1.xpose.msra.mxu0 0.0
  %603 = vmatprep.subr.mxu0 0.0
  %604 = vmatpush1.xpose.msra.mxu0 0.0
  %605 = vmatprep.subr.mxu0 0.0
  %606 = vmatpush1.xpose.msra.mxu0 0.0
  %607 = vmatprep.subr.mxu0 0.0
  %608 = vmatpush1.xpose.msra.mxu0 0.0
  %609 = vmatprep.subr.mxu0 0.0
  %610 = vmatpush1.xpose.msra.mxu0 0.0
  %611 = vmatprep.subr.mxu0 0.0
  %612 = vmatpush1.xpose.msra.mxu0 0.0
  %613 = vmatprep.subr.mxu0 0.0
  %614 = vmatpush1.xpose.msra.mxu0 0.0
  %615 = vmatprep.subr.mxu0 0.0
  %616 = vmatpush1.xpose.msra.mxu0 0.0
  %617 = vmatprep.subr.mxu0 0.0
  %618 = vmatpush1.xpose.msra.mxu0 0.0
  %619 = vmatprep.subr.mxu0 0.0
  %620 = vmatpush1.xpose.msra.mxu0 0.0
  %621 = vmatprep.subr.mxu0 0.0
  %622 = vmatpush1.xpose.msra.mxu0 0.0
  %623 = vmatprep.subr.mxu0 0.0
  %624 = vmatpush1.xpose.msra.mxu0 0.0
  %625 = vmatprep.subr.mxu0 0.0
  %626 = vmatpush1.xpose.msra.mxu0 0.0
  %627 = vmatprep.mubr.f32.mxu0 0.0
  %628 = vmatmul.mubr.f32.gmra.mrb[0].mxu0 %v555
  %v629 = vpop.f32.mrb[0].mxu0
  %v630 = vadd.f32 %v66, %v629
  %v631 = vpop.f32.mrb[0].mxu0
  %632 = vmatprep.mubr.f32.mxu0 0.0
  %633 = vmatmul.mubr.f32.gmra.mrb[0].mxu0 %v557
  %v634 = vpop.f32.mrb[0].mxu0
  %v635 = vadd.f32 %v67, %v634
  %v636 = vpop.f32.mrb[0].mxu0
  %637 = vdwg.mxu0
  %vm638 = vcmask 130048
  %v639 = vsel %vm638, %v369, -inf
  %640 = vmax.xlane.f32.xlu0 %v639
  %v641 = vpop.xlane.xlu0 %640
  %v642 = vsel %vm638, %v374, -inf
  %643 = vmax.xlane.f32.xlu0 %v642
  %v644 = vpop.xlane.xlu0 %643
  %v645 = vsel %vm638, %v456, -inf
  %646 = vmax.xlane.f32.xlu0 %v645
  %v647 = vpop.xlane.xlu0 %646
  %v648 = vsel %vm638, %v461, -inf
  %649 = vmax.xlane.f32.xlu0 %v648
  %v650 = vpop.xlane.xlu0 %649
  %v651 = vsel %vm638, %v543, -inf
  %652 = vmax.xlane.f32.xlu0 %v651
  %v653 = vpop.xlane.xlu0 %652
  %v654 = vsel %vm638, %v548, -inf
  %655 = vmax.xlane.f32.xlu0 %v654
  %v656 = vpop.xlane.xlu0 %655
  %v657 = vsel %vm638, %v630, -inf
  %658 = vmax.xlane.f32.xlu0 %v657
  %v659 = vpop.xlane.xlu0 %658
  %v660 = vsel %vm638, %v635, -inf
  %661 = vmax.xlane.f32.xlu0 %v660
  %v662 = vpop.xlane.xlu0 %661
  %v663 = vsub.f32 %v369, %v641
  %v664 = vsub.f32 %v374, %v644
  %v665 = vsub.f32 %v456, %v647
  %v666 = vsub.f32 %v461, %v650
  %v667 = vsub.f32 %v543, %v653
  %v668 = vsub.f32 %v548, %v656
  %v669 = vsub.f32 %v630, %v659
  %v670 = vsub.f32 %v635, %v662
  %v671 = vmul.f32 %v663, 1.442695
  %v672 = vpow.pop %v671
  %v673 = vmul.f32 %v664, 1.442695
  %v674 = vpow.pop %v673
  %v675 = vmul.f32 %v665, 1.442695
  %v676 = vpow.pop %v675
  %v677 = vmul.f32 %v666, 1.442695
  %v678 = vpow.pop %v677
  %v679 = vmul.f32 %v667, 1.442695
  %v680 = vpow.pop %v679
  %v681 = vmul.f32 %v668, 1.442695
  %v682 = vpow.pop %v681
  %v683 = vmul.f32 %v669, 1.442695
  %v684 = vpow.pop %v683
  %v685 = vmul.f32 %v670, 1.442695
  %v686 = vpow.pop %v685
  %v687 = vsel %vm638, %v672, 0.0
  %688 = vadd.xlane.f32.xlu0 %v687
  %v689 = vpop.xlane.xlu0 %688
  %v690 = vsel %vm638, %v674, 0.0
  %691 = vadd.xlane.f32.xlu0 %v690
  %v692 = vpop.xlane.xlu0 %691
  %v693 = vsel %vm638, %v676, 0.0
  %694 = vadd.xlane.f32.xlu0 %v693
  %v695 = vpop.xlane.xlu0 %694
  %v696 = vsel %vm638, %v678, 0.0
  %697 = vadd.xlane.f32.xlu0 %v696
  %v698 = vpop.xlane.xlu0 %697
  %v699 = vsel %vm638, %v680, 0.0
  %700 = vadd.xlane.f32.xlu0 %v699
  %v701 = vpop.xlane.xlu0 %700
  %v702 = vsel %vm638, %v682, 0.0
  %703 = vadd.xlane.f32.xlu0 %v702
  %v704 = vpop.xlane.xlu0 %703
  %v705 = vsel %vm638, %v684, 0.0
  %706 = vadd.xlane.f32.xlu0 %v705
  %v707 = vpop.xlane.xlu0 %706
  %v708 = vsel %vm638, %v686, 0.0
  %709 = vadd.xlane.f32.xlu0 %v708
  %v710 = vpop.xlane.xlu0 %709
  %v711 = vrcp.pop %v689
  %v712 = vrcp.pop %v692
  %v713 = vrcp.pop %v695
  %v714 = vrcp.pop %v698
  %v715 = vrcp.pop %v701
  %v716 = vrcp.pop %v704
  %v717 = vrcp.pop %v707
  %v718 = vrcp.pop %v710
  %v719 = vmul.f32 %v672, %v711
  %v720 = vmul.f32 %v674, %v712
  %v721 = vmul.f32 %v676, %v713
  %v722 = vmul.f32 %v678, %v714
  %v723 = vmul.f32 %v680, %v715
  %v724 = vmul.f32 %v682, %v716
  %v725 = vmul.f32 %v684, %v717
  %v726 = vmul.f32 %v686, %v718
  %v728 = vsel %vm638, %v719, 0
  %v731 = vsel %vm638, %v720, 0
  %733 = vmatprep.subr.mxu0 0.0
  %734 = vmatpush1.msra.mxu0 %v247
  %735 = vmatprep.subr.mxu0 0.0
  %736 = vmatpush1.msra.mxu0 %v252
  %737 = vmatprep.subr.mxu0 0.0
  %738 = vmatpush1.msra.mxu0 0.0
  %739 = vmatprep.subr.mxu0 0.0
  %740 = vmatpush1.msra.mxu0 0.0
  %741 = vmatprep.subr.mxu0 0.0
  %742 = vmatpush1.msra.mxu0 0.0
  %743 = vmatprep.subr.mxu0 0.0
  %744 = vmatpush1.msra.mxu0 0.0
  %745 = vmatprep.subr.mxu0 0.0
  %746 = vmatpush1.msra.mxu0 0.0
  %747 = vmatprep.subr.mxu0 0.0
  %748 = vmatpush1.msra.mxu0 0.0
  %749 = vmatprep.subr.mxu0 0.0
  %750 = vmatpush1.msra.mxu0 0.0
  %751 = vmatprep.subr.mxu0 0.0
  %752 = vmatpush1.msra.mxu0 0.0
  %753 = vmatprep.subr.mxu0 0.0
  %754 = vmatpush1.msra.mxu0 0.0
  %755 = vmatprep.subr.mxu0 0.0
  %756 = vmatpush1.msra.mxu0 0.0
  %757 = vmatprep.subr.mxu0 0.0
  %758 = vmatpush1.msra.mxu0 0.0
  %759 = vmatprep.subr.mxu0 0.0
  %760 = vmatpush1.msra.mxu0 0.0
  %761 = vmatprep.subr.mxu0 0.0
  %762 = vmatpush1.msra.mxu0 0.0
  %763 = vmatprep.subr.mxu0 0.0
  %764 = vmatpush1.msra.mxu0 0.0
  %765 = vmatprep.subr.mxu0 0.0
  %766 = vmatpush1.msra.mxu0 0.0
  %767 = vmatprep.subr.mxu0 0.0
  %768 = vmatpush1.msra.mxu0 0.0
  %769 = vmatprep.subr.mxu0 0.0
  %770 = vmatpush1.msra.mxu0 0.0
  %771 = vmatprep.subr.mxu0 0.0
  %772 = vmatpush1.msra.mxu0 0.0
  %773 = vmatprep.subr.mxu0 0.0
  %774 = vmatpush1.msra.mxu0 0.0
  %775 = vmatprep.subr.mxu0 0.0
  %776 = vmatpush1.msra.mxu0 0.0
  %777 = vmatprep.subr.mxu0 0.0
  %778 = vmatpush1.msra.mxu0 0.0
  %779 = vmatprep.subr.mxu0 0.0
  %780 = vmatpush1.msra.mxu0 0.0
  %781 = vmatprep.subr.mxu0 0.0
  %782 = vmatpush1.msra.mxu0 0.0
  %783 = vmatprep.subr.mxu0 0.0
  %784 = vmatpush1.msra.mxu0 0.0
  %785 = vmatprep.subr.mxu0 0.0
  %786 = vmatpush1.msra.mxu0 0.0
  %787 = vmatprep.subr.mxu0 0.0
  %788 = vmatpush1.msra.mxu0 0.0
  %789 = vmatprep.subr.mxu0 0.0
  %790 = vmatpush1.msra.mxu0 0.0
  %791 = vmatprep.subr.mxu0 0.0
  %792 = vmatpush1.msra.mxu0 0.0
  %793 = vmatprep.subr.mxu0 0.0
  %794 = vmatpush1.msra.mxu0 0.0
  %795 = vmatprep.subr.mxu0 0.0
  %796 = vmatpush1.msra.mxu0 0.0
  %797 = vmatprep.mubr.f32.mxu0 0.0
  %798 = vmatmul.mubr.f32.gmra.mrb[0].mxu0 %v728
  %v799 = vpop.f32.mrb[0].mxu0
  %v800 = vadd.f32 0.0, %v799
  %v801 = vpop.f32.mrb[0].mxu0
  %802 = vmatprep.mubr.f32.mxu0 0.0
  %803 = vmatmul.mubr.f32.gmra.mrb[0].mxu0 %v731
  %v804 = vpop.f32.mrb[0].mxu0
  %v805 = vadd.f32 0.0, %v804
  %v806 = vpop.f32.mrb[0].mxu0
  %807 = vdwg.mxu0
  %v809 = vsel %vm638, %v721, 0
  %v812 = vsel %vm638, %v722, 0
  %814 = vmatprep.subr.mxu0 0.0
  %815 = vmatpush1.msra.mxu0 %v272
  %816 = vmatprep.subr.mxu0 0.0
  %817 = vmatpush1.msra.mxu0 %v274
  %818 = vmatprep.subr.mxu0 0.0
  %819 = vmatpush1.msra.mxu0 0.0
  %820 = vmatprep.subr.mxu0 0.0
  %821 = vmatpush1.msra.mxu0 0.0
  %822 = vmatprep.subr.mxu0 0.0
  %823 = vmatpush1.msra.mxu0 0.0
  %824 = vmatprep.subr.mxu0 0.0
  %825 = vmatpush1.msra.mxu0 0.0
  %826 = vmatprep.subr.mxu0 0.0
  %827 = vmatpush1.msra.mxu0 0.0
  %828 = vmatprep.subr.mxu0 0.0
  %829 = vmatpush1.msra.mxu0 0.0
  %830 = vmatprep.subr.mxu0 0.0
  %831 = vmatpush1.msra.mxu0 0.0
  %832 = vmatprep.subr.mxu0 0.0
  %833 = vmatpush1.msra.mxu0 0.0
  %834 = vmatprep.subr.mxu0 0.0
  %835 = vmatpush1.msra.mxu0 0.0
  %836 = vmatprep.subr.mxu0 0.0
  %837 = vmatpush1.msra.mxu0 0.0
  %838 = vmatprep.subr.mxu0 0.0
  %839 = vmatpush1.msra.mxu0 0.0
  %840 = vmatprep.subr.mxu0 0.0
  %841 = vmatpush1.msra.mxu0 0.0
  %842 = vmatprep.subr.mxu0 0.0
  %843 = vmatpush1.msra.mxu0 0.0
  %844 = vmatprep.subr.mxu0 0.0
  %845 = vmatpush1.msra.mxu0 0.0
  %846 = vmatprep.subr.mxu0 0.0
  %847 = vmatpush1.msra.mxu0 0.0
  %848 = vmatprep.subr.mxu0 0.0
  %849 = vmatpush1.msra.mxu0 0.0
  %850 = vmatprep.subr.mxu0 0.0
  %851 = vmatpush1.msra.mxu0 0.0
  %852 = vmatprep.subr.mxu0 0.0
  %853 = vmatpush1.msra.mxu0 0.0
  %854 = vmatprep.subr.mxu0 0.0
  %855 = vmatpush1.msra.mxu0 0.0
  %856 = vmatprep.subr.mxu0 0.0
  %857 = vmatpush1.msra.mxu0 0.0
  %858 = vmatprep.subr.mxu0 0.0
  %859 = vmatpush1.msra.mxu0 0.0
  %860 = vmatprep.subr.mxu0 0.0
  %861 = vmatpush1.msra.mxu0 0.0
  %862 = vmatprep.subr.mxu0 0.0
  %863 = vmatpush1.msra.mxu0 0.0
  %864 = vmatprep.subr.mxu0 0.0
  %865 = vmatpush1.msra.mxu0 0.0
  %866 = vmatprep.subr.mxu0 0.0
  %867 = vmatpush1.msra.mxu0 0.0
  %868 = vmatprep.subr.mxu0 0.0
  %869 = vmatpush1.msra.mxu0 0.0
  %870 = vmatprep.subr.mxu0 0.0
  %871 = vmatpush1.msra.mxu0 0.0
  %872 = vmatprep.subr.mxu0 0.0
  %873 = vmatpush1.msra.mxu0 0.0
  %874 = vmatprep.subr.mxu0 0.0
  %875 = vmatpush1.msra.mxu0 0.0
  %876 = vmatprep.subr.mxu0 0.0
  %877 = vmatpush1.msra.mxu0 0.0
  %878 = vmatprep.mubr.f32.mxu0 0.0
  %879 = vmatmul.mubr.f32.gmra.mrb[0].mxu0 %v809
  %v880 = vpop.f32.mrb[0].mxu0
  %v881 = vadd.f32 0.0, %v880
  %v882 = vpop.f32.mrb[0].mxu0
  %883 = vmatprep.mubr.f32.mxu0 0.0
  %884 = vmatmul.mubr.f32.gmra.mrb[0].mxu0 %v812
  %v885 = vpop.f32.mrb[0].mxu0
  %v886 = vadd.f32 0.0, %v885
  %v887 = vpop.f32.mrb[0].mxu0
  %888 = vdwg.mxu0
  %v890 = vsel %vm638, %v723, 0
  %v893 = vsel %vm638, %v724, 0
  %895 = vmatprep.subr.mxu0 0.0
  %896 = vmatpush1.msra.mxu0 %v278
  %897 = vmatprep.subr.mxu0 0.0
  %898 = vmatpush1.msra.mxu0 %v280
  %899 = vmatprep.subr.mxu0 0.0
  %900 = vmatpush1.msra.mxu0 0.0
  %901 = vmatprep.subr.mxu0 0.0
  %902 = vmatpush1.msra.mxu0 0.0
  %903 = vmatprep.subr.mxu0 0.0
  %904 = vmatpush1.msra.mxu0 0.0
  %905 = vmatprep.subr.mxu0 0.0
  %906 = vmatpush1.msra.mxu0 0.0
  %907 = vmatprep.subr.mxu0 0.0
  %908 = vmatpush1.msra.mxu0 0.0
  %909 = vmatprep.subr.mxu0 0.0
  %910 = vmatpush1.msra.mxu0 0.0
  %911 = vmatprep.subr.mxu0 0.0
  %912 = vmatpush1.msra.mxu0 0.0
  %913 = vmatprep.subr.mxu0 0.0
  %914 = vmatpush1.msra.mxu0 0.0
  %915 = vmatprep.subr.mxu0 0.0
  %916 = vmatpush1.msra.mxu0 0.0
  %917 = vmatprep.subr.mxu0 0.0
  %918 = vmatpush1.msra.mxu0 0.0
  %919 = vmatprep.subr.mxu0 0.0
  %920 = vmatpush1.msra.mxu0 0.0
  %921 = vmatprep.subr.mxu0 0.0
  %922 = vmatpush1.msra.mxu0 0.0
  %923 = vmatprep.subr.mxu0 0.0
  %924 = vmatpush1.msra.mxu0 0.0
  %925 = vmatprep.subr.mxu0 0.0
  %926 = vmatpush1.msra.mxu0 0.0
  %927 = vmatprep.subr.mxu0 0.0
  %928 = vmatpush1.msra.mxu0 0.0
  %929 = vmatprep.subr.mxu0 0.0
  %930 = vmatpush1.msra.mxu0 0.0
  %931 = vmatprep.subr.mxu0 0.0
  %932 = vmatpush1.msra.mxu0 0.0
  %933 = vmatprep.subr.mxu0 0.0
  %934 = vmatpush1.msra.mxu0 0.0
  %935 = vmatprep.subr.mxu0 0.0
  %936 = vmatpush1.msra.mxu0 0.0
  %937 = vmatprep.subr.mxu0 0.0
  %938 = vmatpush1.msra.mxu0 0.0
  %939 = vmatprep.subr.mxu0 0.0
  %940 = vmatpush1.msra.mxu0 0.0
  %941 = vmatprep.subr.mxu0 0.0
  %942 = vmatpush1.msra.mxu0 0.0
  %943 = vmatprep.subr.mxu0 0.0
  %944 = vmatpush1.msra.mxu0 0.0
  %945 = vmatprep.subr.mxu0 0.0
  %946 = vmatpush1.msra.mxu0 0.0
  %947 = vmatprep.subr.mxu0 0.0
  %948 = vmatpush1.msra.mxu0 0.0
  %949 = vmatprep.subr.mxu0 0.0
  %950 = vmatpush1.msra.mxu0 0.0
  %951 = vmatprep.subr.mxu0 0.0
  %952 = vmatpush1.msra.mxu0 0.0
  %953 = vmatprep.subr.mxu0 0.0
  %954 = vmatpush1.msra.mxu0 0.0
  %955 = vmatprep.subr.mxu0 0.0
  %956 = vmatpush1.msra.mxu0 0.0
  %957 = vmatprep.subr.mxu0 0.0
  %958 = vmatpush1.msra.mxu0 0.0
  %959 = vmatprep.mubr.f32.mxu0 0.0
  %960 = vmatmul.mubr.f32.gmra.mrb[0].mxu0 %v890
  %v961 = vpop.f32.mrb[0].mxu0
  %v962 = vadd.f32 0.0, %v961
  %v963 = vpop.f32.mrb[0].mxu0
  %964 = vmatprep.mubr.f32.mxu0 0.0
  %965 = vmatmul.mubr.f32.gmra.mrb[0].mxu0 %v893
  %v966 = vpop.f32.mrb[0].mxu0
  %v967 = vadd.f32 0.0, %v966
  %v968 = vpop.f32.mrb[0].mxu0
  %969 = vdwg.mxu0
  %v971 = vsel %vm638, %v725, 0
  %v974 = vsel %vm638, %v726, 0
  %976 = vmatprep.subr.mxu0 0.0
  %977 = vmatpush1.msra.mxu0 %v284
  %978 = vmatprep.subr.mxu0 0.0
  %979 = vmatpush1.msra.mxu0 %v286
  %980 = vmatprep.subr.mxu0 0.0
  %981 = vmatpush1.msra.mxu0 0.0
  %982 = vmatprep.subr.mxu0 0.0
  %983 = vmatpush1.msra.mxu0 0.0
  %984 = vmatprep.subr.mxu0 0.0
  %985 = vmatpush1.msra.mxu0 0.0
  %986 = vmatprep.subr.mxu0 0.0
  %987 = vmatpush1.msra.mxu0 0.0
  %988 = vmatprep.subr.mxu0 0.0
  %989 = vmatpush1.msra.mxu0 0.0
  %990 = vmatprep.subr.mxu0 0.0
  %991 = vmatpush1.msra.mxu0 0.0
  %992 = vmatprep.subr.mxu0 0.0
  %993 = vmatpush1.msra.mxu0 0.0
  %994 = vmatprep.subr.mxu0 0.0
  %995 = vmatpush1.msra.mxu0 0.0
  %996 = vmatprep.subr.mxu0 0.0
  %997 = vmatpush1.msra.mxu0 0.0
  %998 = vmatprep.subr.mxu0 0.0
  %999 = vmatpush1.msra.mxu0 0.0
  %1000 = vmatprep.subr.mxu0 0.0
  %1001 = vmatpush1.msra.mxu0 0.0
  %1002 = vmatprep.subr.mxu0 0.0
  %1003 = vmatpush1.msra.mxu0 0.0
  %1004 = vmatprep.subr.mxu0 0.0
  %1005 = vmatpush1.msra.mxu0 0.0
  %1006 = vmatprep.subr.mxu0 0.0
  %1007 = vmatpush1.msra.mxu0 0.0
  %1008 = vmatprep.subr.mxu0 0.0
  %1009 = vmatpush1.msra.mxu0 0.0
  %1010 = vmatprep.subr.mxu0 0.0
  %1011 = vmatpush1.msra.mxu0 0.0
  %1012 = vmatprep.subr.mxu0 0.0
  %1013 = vmatpush1.msra.mxu0 0.0
  %1014 = vmatprep.subr.mxu0 0.0
  %1015 = vmatpush1.msra.mxu0 0.0
  %1016 = vmatprep.subr.mxu0 0.0
  %1017 = vmatpush1.msra.mxu0 0.0
  %1018 = vmatprep.subr.mxu0 0.0
  %1019 = vmatpush1.msra.mxu0 0.0
  %1020 = vmatprep.subr.mxu0 0.0
  %1021 = vmatpush1.msra.mxu0 0.0
  %1022 = vmatprep.subr.mxu0 0.0
  %1023 = vmatpush1.msra.mxu0 0.0
  %1024 = vmatprep.subr.mxu0 0.0
  %1025 = vmatpush1.msra.mxu0 0.0
  %1026 = vmatprep.subr.mxu0 0.0
  %1027 = vmatpush1.msra.mxu0 0.0
  %1028 = vmatprep.subr.mxu0 0.0
  %1029 = vmatpush1.msra.mxu0 0.0
  %1030 = vmatprep.subr.mxu0 0.0
  %1031 = vmatpush1.msra.mxu0 0.0
  %1032 = vmatprep.subr.mxu0 0.0
  %1033 = vmatpush1.msra.mxu0 0.0
  %1034 = vmatprep.subr.mxu0 0.0
  %1035 = vmatpush1.msra.mxu0 0.0
  %1036 = vmatprep.subr.mxu0 0.0
  %1037 = vmatpush1.msra.mxu0 0.0
  %1038 = vmatprep.subr.mxu0 0.0
  %1039 = vmatpush1.msra.mxu0 0.0
  %1040 = vmatprep.mubr.f32.mxu0 0.0
  %1041 = vmatmul.mubr.f32.gmra.mrb[0].mxu0 %v971
  %v1042 = vpop.f32.mrb[0].mxu0
  %v1043 = vadd.f32 0.0, %v1042
  %v1044 = vpop.f32.mrb[0].mxu0
  %1045 = vmatprep.mubr.f32.mxu0 0.0
  %1046 = vmatmul.mubr.f32.gmra.mrb[0].mxu0 %v974
  %v1047 = vpop.f32.mrb[0].mxu0
  %v1048 = vadd.f32 0.0, %v1047
  %v1049 = vpop.f32.mrb[0].mxu0
  %1050 = vdwg.mxu0
  %1053 = vrot.lane.b32.xlu0 %v881, 8
  %v1054 = vpop.permute.xlu0 %1053
  %1055 = vrot.lane.b32.xlu0 %v886, 8
  %v1056 = vpop.permute.xlu0 %1055
  %1061 = vrot.lane.b32.xlu0 %v962, 16
  %v1062 = vpop.permute.xlu0 %1061
  %1063 = vrot.lane.b32.xlu0 %v967, 16
  %v1064 = vpop.permute.xlu0 %1063
  %1069 = vrot.lane.b32.xlu0 %v1043, 24
  %v1070 = vpop.permute.xlu0 %1069
  %1071 = vrot.lane.b32.xlu0 %v1048, 24
  %v1072 = vpop.permute.xlu0 %1071
  %v1075 = vsel %vm293, %v800, %v1054
  %v1076 = vsel %vm293, %v805, %v1056
  %v1077 = vsel %vm638, %v1075, %v1062
  %v1078 = vsel %vm638, %v1076, %v1064
  %vm1079 = vcmask 195584
  %v1080 = vsel %vm1079, %v1077, %v1070
  %v1081 = vsel %vm1079, %v1078, %v1072
  %v1082 = vld [vmem:[%s7] sm:$0xff]
  %v1083 = vld [vmem:[%s7 + $0x8] sm:$0xff]
  %v1084 = vld [vmem:[%s7 + $0x10] sm:$0xff]
  %v1085 = vld [vmem:[%s7 + $0x18] sm:$0xff]
  %v1086 = vld [vmem:[%s8] sm:$0x1]
  %v1088 = vlaneseq
  %v1089 = vshrl.u32 %v1088, 7
  %v1090 = vsub.s32 0, %v1089
  %v1091 = vrot.slane %v1086, %v1090
  %v1094 = vsel %vm81, %v1080, 0
  %v1097 = vsel %vm81, %v1081, 0
  %1099 = vmatprep.subr.mxu0 0.0
  %1100 = vmatpush1.msra.mxu0 %v1082
  %1101 = vmatprep.subr.mxu0 0.0
  %1102 = vmatpush1.msra.mxu0 %v1083
  %1103 = vmatprep.subr.mxu0 0.0
  %1104 = vmatpush1.msra.mxu0 %v1084
  %1105 = vmatprep.subr.mxu0 0.0
  %1106 = vmatpush1.msra.mxu0 %v1085
  %1107 = vmatprep.subr.mxu0 0.0
  %1108 = vmatpush1.msra.mxu0 0.0
  %1109 = vmatprep.subr.mxu0 0.0
  %1110 = vmatpush1.msra.mxu0 0.0
  %1111 = vmatprep.subr.mxu0 0.0
  %1112 = vmatpush1.msra.mxu0 0.0
  %1113 = vmatprep.subr.mxu0 0.0
  %1114 = vmatpush1.msra.mxu0 0.0
  %1115 = vmatprep.subr.mxu0 0.0
  %1116 = vmatpush1.msra.mxu0 0.0
  %1117 = vmatprep.subr.mxu0 0.0
  %1118 = vmatpush1.msra.mxu0 0.0
  %1119 = vmatprep.subr.mxu0 0.0
  %1120 = vmatpush1.msra.mxu0 0.0
  %1121 = vmatprep.subr.mxu0 0.0
  %1122 = vmatpush1.msra.mxu0 0.0
  %1123 = vmatprep.subr.mxu0 0.0
  %1124 = vmatpush1.msra.mxu0 0.0
  %1125 = vmatprep.subr.mxu0 0.0
  %1126 = vmatpush1.msra.mxu0 0.0
  %1127 = vmatprep.subr.mxu0 0.0
  %1128 = vmatpush1.msra.mxu0 0.0
  %1129 = vmatprep.subr.mxu0 0.0
  %1130 = vmatpush1.msra.mxu0 0.0
  %1131 = vmatprep.subr.mxu0 0.0
  %1132 = vmatpush1.msra.mxu0 0.0
  %1133 = vmatprep.subr.mxu0 0.0
  %1134 = vmatpush1.msra.mxu0 0.0
  %1135 = vmatprep.subr.mxu0 0.0
  %1136 = vmatpush1.msra.mxu0 0.0
  %1137 = vmatprep.subr.mxu0 0.0
  %1138 = vmatpush1.msra.mxu0 0.0
  %1139 = vmatprep.subr.mxu0 0.0
  %1140 = vmatpush1.msra.mxu0 0.0
  %1141 = vmatprep.subr.mxu0 0.0
  %1142 = vmatpush1.msra.mxu0 0.0
  %1143 = vmatprep.subr.mxu0 0.0
  %1144 = vmatpush1.msra.mxu0 0.0
  %1145 = vmatprep.subr.mxu0 0.0
  %1146 = vmatpush1.msra.mxu0 0.0
  %1147 = vmatprep.subr.mxu0 0.0
  %1148 = vmatpush1.msra.mxu0 0.0
  %1149 = vmatprep.subr.mxu0 0.0
  %1150 = vmatpush1.msra.mxu0 0.0
  %1151 = vmatprep.subr.mxu0 0.0
  %1152 = vmatpush1.msra.mxu0 0.0
  %1153 = vmatprep.subr.mxu0 0.0
  %1154 = vmatpush1.msra.mxu0 0.0
  %1155 = vmatprep.subr.mxu0 0.0
  %1156 = vmatpush1.msra.mxu0 0.0
  %1157 = vmatprep.subr.mxu0 0.0
  %1158 = vmatpush1.msra.mxu0 0.0
  %1159 = vmatprep.subr.mxu0 0.0
  %1160 = vmatpush1.msra.mxu0 0.0
  %1161 = vmatprep.subr.mxu0 0.0
  %1162 = vmatpush1.msra.mxu0 0.0
  %1163 = vmatprep.mubr.f32.mxu0 0.0
  %1164 = vmatmul.mubr.f32.gmra.mrb[0].mxu0 %v1094
  %v1165 = vpop.f32.mrb[0].mxu0
  %v1166 = vadd.f32 %v1091, %v1165
  %v1167 = vpop.f32.mrb[0].mxu0
  %1168 = vmatprep.mubr.f32.mxu0 0.0
  %1169 = vmatmul.mubr.f32.gmra.mrb[0].mxu0 %v1097
  %v1170 = vpop.f32.mrb[0].mxu0
  %v1171 = vadd.f32 %v1091, %v1170
  %v1172 = vpop.f32.mrb[0].mxu0
  %1173 = vdwg.mxu0
  %v1174 = vadd.f32 %v62, %v1166
  %v1175 = vadd.f32 %v63, %v1171
  %v1176 = vld [vmem:[%s9] sm:$0x1]
  %v1177 = vld [vmem:[%s10] sm:$0x1]
  %v1178 = vsel %vm81, %v1174, 0.0
  %1179 = vadd.xlane.f32.xlu0 %v1178
  %v1180 = vpop.xlane.xlu0 %1179
  %v1181 = vsel %vm81, %v1175, 0.0
  %1182 = vadd.xlane.f32.xlu0 %v1181
  %v1183 = vpop.xlane.xlu0 %1182
  %v1184 = vrcp.pop 32.0
  %v1185 = vmul.f32 %v1180, %v1184
  %v1186 = vmul.f32 %v1183, %v1184
  %v1187 = vsub.f32 %v1174, %v1185
  %v1188 = vsub.f32 %v1175, %v1186
  %v1189 = vmul.f32 %v1187, %v1187
  %v1190 = vmul.f32 %v1188, %v1188
  %v1191 = vsel %vm81, %v1189, 0.0
  %1192 = vadd.xlane.f32.xlu0 %v1191
  %v1193 = vpop.xlane.xlu0 %1192
  %v1194 = vsel %vm81, %v1190, 0.0
  %1195 = vadd.xlane.f32.xlu0 %v1194
  %v1196 = vpop.xlane.xlu0 %1195
  %v1197 = vmul.f32 %v1193, %v1184
  %v1198 = vmul.f32 %v1196, %v1184
  %v1199 = vadd.f32 %v1197, 1e-05
  %v1200 = vadd.f32 %v1198, 1e-05
  %v1201 = vrsqrt.pop %v1199
  %v1202 = vrsqrt.pop %v1200
  %v1203 = vmul.f32 %v1187, %v1201
  %v1204 = vmul.f32 %v1188, %v1202
  %v1206 = vlaneseq
  %v1207 = vshrl.u32 %v1206, 7
  %v1208 = vsub.s32 0, %v1207
  %v1209 = vrot.slane %v1176, %v1208
  %v1211 = vmul.f32 %v1203, %v1209
  %v1212 = vmul.f32 %v1204, %v1209
  %v1214 = vlaneseq
  %v1215 = vshrl.u32 %v1214, 7
  %v1216 = vsub.s32 0, %v1215
  %v1217 = vrot.slane %v1177, %v1216
  %v1219 = vadd.f32 %v1211, %v1217
  %v1220 = vadd.f32 %v1212, %v1217
  %v1221 = vld [vmem:[%s11] sm:$0xff]
  %v1222 = vld [vmem:[%s11 + $0x8] sm:$0xff]
  %v1223 = vld [vmem:[%s11 + $0x10] sm:$0xff]
  %v1224 = vld [vmem:[%s11 + $0x18] sm:$0xff]
  %v1225 = vld [vmem:[%s12] sm:$0x1]
  %v1227 = vlaneseq
  %v1228 = vshrl.u32 %v1227, 7
  %v1229 = vsub.s32 0, %v1228
  %v1230 = vrot.slane %v1225, %v1229
  %v1233 = vsel %vm81, %v1219, 0
  %v1236 = vsel %vm81, %v1220, 0
  %1238 = vmatprep.subr.mxu0 0.0
  %1239 = vmatpush1.msra.mxu0 %v1221
  %1240 = vmatprep.subr.mxu0 0.0
  %1241 = vmatpush1.msra.mxu0 %v1222
  %1242 = vmatprep.subr.mxu0 0.0
  %1243 = vmatpush1.msra.mxu0 %v1223
  %1244 = vmatprep.subr.mxu0 0.0
  %1245 = vmatpush1.msra.mxu0 %v1224
  %1246 = vmatprep.subr.mxu0 0.0
  %1247 = vmatpush1.msra.mxu0 0.0
  %1248 = vmatprep.subr.mxu0 0.0
  %1249 = vmatpush1.msra.mxu0 0.0
  %1250 = vmatprep.subr.mxu0 0.0
  %1251 = vmatpush1.msra.mxu0 0.0
  %1252 = vmatprep.subr.mxu0 0.0
  %1253 = vmatpush1.msra.mxu0 0.0
  %1254 = vmatprep.subr.mxu0 0.0
  %1255 = vmatpush1.msra.mxu0 0.0
  %1256 = vmatprep.subr.mxu0 0.0
  %1257 = vmatpush1.msra.mxu0 0.0
  %1258 = vmatprep.subr.mxu0 0.0
  %1259 = vmatpush1.msra.mxu0 0.0
  %1260 = vmatprep.subr.mxu0 0.0
  %1261 = vmatpush1.msra.mxu0 0.0
  %1262 = vmatprep.subr.mxu0 0.0
  %1263 = vmatpush1.msra.mxu0 0.0
  %1264 = vmatprep.subr.mxu0 0.0
  %1265 = vmatpush1.msra.mxu0 0.0
  %1266 = vmatprep.subr.mxu0 0.0
  %1267 = vmatpush1.msra.mxu0 0.0
  %1268 = vmatprep.subr.mxu0 0.0
  %1269 = vmatpush1.msra.mxu0 0.0
  %1270 = vmatprep.subr.mxu0 0.0
  %1271 = vmatpush1.msra.mxu0 0.0
  %1272 = vmatprep.subr.mxu0 0.0
  %1273 = vmatpush1.msra.mxu0 0.0
  %1274 = vmatprep.subr.mxu0 0.0
  %1275 = vmatpush1.msra.mxu0 0.0
  %1276 = vmatprep.subr.mxu0 0.0
  %1277 = vmatpush1.msra.mxu0 0.0
  %1278 = vmatprep.subr.mxu0 0.0
  %1279 = vmatpush1.msra.mxu0 0.0
  %1280 = vmatprep.subr.mxu0 0.0
  %1281 = vmatpush1.msra.mxu0 0.0
  %1282 = vmatprep.subr.mxu0 0.0
  %1283 = vmatpush1.msra.mxu0 0.0
  %1284 = vmatprep.subr.mxu0 0.0
  %1285 = vmatpush1.msra.mxu0 0.0
  %1286 = vmatprep.subr.mxu0 0.0
  %1287 = vmatpush1.msra.mxu0 0.0
  %1288 = vmatprep.subr.mxu0 0.0
  %1289 = vmatpush1.msra.mxu0 0.0
  %1290 = vmatprep.subr.mxu0 0.0
  %1291 = vmatpush1.msra.mxu0 0.0
  %1292 = vmatprep.subr.mxu0 0.0
  %1293 = vmatpush1.msra.mxu0 0.0
  %1294 = vmatprep.subr.mxu0 0.0
  %1295 = vmatpush1.msra.mxu0 0.0
  %1296 = vmatprep.subr.mxu0 0.0
  %1297 = vmatpush1.msra.mxu0 0.0
  %1298 = vmatprep.subr.mxu0 0.0
  %1299 = vmatpush1.msra.mxu0 0.0
  %1300 = vmatprep.subr.mxu0 0.0
  %1301 = vmatpush1.msra.mxu0 0.0
  %1302 = vmatprep.mubr.f32.mxu0 0.0
  %1303 = vmatmul.mubr.f32.gmra.mrb[0].mxu0 %v1233
  %v1304 = vpop.f32.mrb[0].mxu0
  %v1305 = vadd.f32 %v1230, %v1304
  %v1306 = vpop.f32.mrb[0].mxu0
  %1307 = vmatprep.mubr.f32.mxu0 0.0
  %1308 = vmatmul.mubr.f32.gmra.mrb[0].mxu0 %v1236
  %v1309 = vpop.f32.mrb[0].mxu0
  %v1310 = vadd.f32 %v1230, %v1309
  %v1311 = vpop.f32.mrb[0].mxu0
  %1312 = vdwg.mxu0
  %v1313 = vmax.f32 %v1305, 0.0
  %v1314 = vmax.f32 %v1310, 0.0
  %v1315 = vld [vmem:[%s13] sm:$0xff]
  %v1316 = vld [vmem:[%s13 + $0x8] sm:$0xff]
  %v1317 = vld [vmem:[%s13 + $0x10] sm:$0xff]
  %v1318 = vld [vmem:[%s13 + $0x18] sm:$0xff]
  %v1319 = vld [vmem:[%s13 + $0x20] sm:$0xff]
  %v1320 = vld [vmem:[%s13 + $0x28] sm:$0xff]
  %v1321 = vld [vmem:[%s13 + $0x30] sm:$0xff]
  %v1322 = vld [vmem:[%s13 + $0x38] sm:$0xff]
  %v1323 = vld [vmem:[%s14] sm:$0x1]
  %v1325 = vlaneseq
  %v1326 = vshrl.u32 %v1325, 7
  %v1327 = vsub.s32 0, %v1326
  %v1328 = vrot.slane %v1323, %v1327
  %vm1330 = vcmask 523264
  %v1332 = vsel %vm1330, %v1313, 0
  %v1335 = vsel %vm1330, %v1314, 0
  %1337 = vmatprep.subr.mxu0 0.0
  %1338 = vmatpush1.msra.mxu0 %v1315
  %1339 = vmatprep.subr.mxu0 0.0
  %1340 = vmatpush1.msra.mxu0 %v1316
  %1341 = vmatprep.subr.mxu0 0.0
  %1342 = vmatpush1.msra.mxu0 %v1317
  %1343 = vmatprep.subr.mxu0 0.0
  %1344 = vmatpush1.msra.mxu0 %v1318
  %1345 = vmatprep.subr.mxu0 0.0
  %1346 = vmatpush1.msra.mxu0 %v1319
  %1347 = vmatprep.subr.mxu0 0.0
  %1348 = vmatpush1.msra.mxu0 %v1320
  %1349 = vmatprep.subr.mxu0 0.0
  %1350 = vmatpush1.msra.mxu0 %v1321
  %1351 = vmatprep.subr.mxu0 0.0
  %1352 = vmatpush1.msra.mxu0 %v1322
  %1353 = vmatprep.subr.mxu0 0.0
  %1354 = vmatpush1.msra.mxu0 0.0
  %1355 = vmatprep.subr.mxu0 0.0
  %1356 = vmatpush1.msra.mxu0 0.0
  %1357 = vmatprep.subr.mxu0 0.0
  %1358 = vmatpush1.msra.mxu0 0.0
  %1359 = vmatprep.subr.mxu0 0.0
  %1360 = vmatpush1.msra.mxu0 0.0
  %1361 = vmatprep.subr.mxu0 0.0
  %1362 = vmatpush1.msra.mxu0 0.0
  %1363 = vmatprep.subr.mxu0 0.0
  %1364 = vmatpush1.msra.mxu0 0.0
  %1365 = vmatprep.subr.mxu0 0.0
  %1366 = vmatpush1.msra.mxu0 0.0
  %1367 = vmatprep.subr.mxu0 0.0
  %1368 = vmatpush1.msra.mxu0 0.0
  %1369 = vmatprep.subr.mxu0 0.0
  %1370 = vmatpush1.msra.mxu0 0.0
  %1371 = vmatprep.subr.mxu0 0.0
  %1372 = vmatpush1.msra.mxu0 0.0
  %1373 = vmatprep.subr.mxu0 0.0
  %1374 = vmatpush1.msra.mxu0 0.0
  %1375 = vmatprep.subr.mxu0 0.0
  %1376 = vmatpush1.msra.mxu0 0.0
  %1377 = vmatprep.subr.mxu0 0.0
  %1378 = vmatpush1.msra.mxu0 0.0
  %1379 = vmatprep.subr.mxu0 0.0
  %1380 = vmatpush1.msra.mxu0 0.0
  %1381 = vmatprep.subr.mxu0 0.0
  %1382 = vmatpush1.msra.mxu0 0.0
  %1383 = vmatprep.subr.mxu0 0.0
  %1384 = vmatpush1.msra.mxu0 0.0
  %1385 = vmatprep.subr.mxu0 0.0
  %1386 = vmatpush1.msra.mxu0 0.0
  %1387 = vmatprep.subr.mxu0 0.0
  %1388 = vmatpush1.msra.mxu0 0.0
  %1389 = vmatprep.subr.mxu0 0.0
  %1390 = vmatpush1.msra.mxu0 0.0
  %1391 = vmatprep.subr.mxu0 0.0
  %1392 = vmatpush1.msra.mxu0 0.0
  %1393 = vmatprep.subr.mxu0 0.0
  %1394 = vmatpush1.msra.mxu0 0.0
  %1395 = vmatprep.subr.mxu0 0.0
  %1396 = vmatpush1.msra.mxu0 0.0
  %1397 = vmatprep.subr.mxu0 0.0
  %1398 = vmatpush1.msra.mxu0 0.0
  %1399 = vmatprep.subr.mxu0 0.0
  %1400 = vmatpush1.msra.mxu0 0.0
  %1401 = vmatprep.mubr.f32.mxu0 0.0
  %1402 = vmatmul.mubr.f32.gmra.mrb[0].mxu0 %v1332
  %v1403 = vpop.f32.mrb[0].mxu0
  %v1404 = vadd.f32 %v1328, %v1403
  %v1405 = vpop.f32.mrb[0].mxu0
  %1406 = vmatprep.mubr.f32.mxu0 0.0
  %1407 = vmatmul.mubr.f32.gmra.mrb[0].mxu0 %v1335
  %v1408 = vpop.f32.mrb[0].mxu0
  %v1409 = vadd.f32 %v1328, %v1408
  %v1410 = vpop.f32.mrb[0].mxu0
  %1411 = vdwg.mxu0
  %v1412 = vadd.f32 %v1219, %v1404
  %v1413 = vadd.f32 %v1220, %v1409
  %v1414 = vld [vmem:[%s15] sm:$0x1]
  %v1415 = vld [vmem:[%s16] sm:$0x1]
  %v1416 = vsel %vm81, %v1412, 0.0
  %1417 = vadd.xlane.f32.xlu0 %v1416
  %v1418 = vpop.xlane.xlu0 %1417
  %v1419 = vsel %vm81, %v1413, 0.0
  %1420 = vadd.xlane.f32.xlu0 %v1419
  %v1421 = vpop.xlane.xlu0 %1420
  %v1422 = vmul.f32 %v1418, %v1184
  %v1423 = vmul.f32 %v1421, %v1184
  %v1424 = vsub.f32 %v1412, %v1422
  %v1425 = vsub.f32 %v1413, %v1423
  %v1426 = vmul.f32 %v1424, %v1424
  %v1427 = vmul.f32 %v1425, %v1425
  %v1428 = vsel %vm81, %v1426, 0.0
  %1429 = vadd.xlane.f32.xlu0 %v1428
  %v1430 = vpop.xlane.xlu0 %1429
  %v1431 = vsel %vm81, %v1427, 0.0
  %1432 = vadd.xlane.f32.xlu0 %v1431
  %v1433 = vpop.xlane.xlu0 %1432
  %v1434 = vmul.f32 %v1430, %v1184
  %v1435 = vmul.f32 %v1433, %v1184
  %v1436 = vadd.f32 %v1434, 1e-05
  %v1437 = vadd.f32 %v1435, 1e-05
  %v1438 = vrsqrt.pop %v1436
  %v1439 = vrsqrt.pop %v1437
  %v1440 = vmul.f32 %v1424, %v1438
  %v1441 = vmul.f32 %v1425, %v1439
  %v1443 = vlaneseq
  %v1444 = vshrl.u32 %v1443, 7
  %v1445 = vsub.s32 0, %v1444
  %v1446 = vrot.slane %v1414, %v1445
  %v1448 = vmul.f32 %v1440, %v1446
  %v1449 = vmul.f32 %v1441, %v1446
  %v1451 = vlaneseq
  %v1452 = vshrl.u32 %v1451, 7
  %v1453 = vsub.s32 0, %v1452
  %v1454 = vrot.slane %v1415, %v1453
  %v1456 = vadd.f32 %v1448, %v1454
  %v1457 = vadd.f32 %v1449, %v1454
  %v1458 = vadd.f32 %v1456, %v64
  %v1459 = vadd.f32 %v1457, %v65
  %s1460 = scalar_lea.vmem %s3, 32
  %v1461 = vld [vmem:[%s1460] sm:$0xff]
  %v1462 = vld [vmem:[%s1460 + $0x8] sm:$0xff]
  %v1463 = vld [vmem:[%s1460 + $0x10] sm:$0xff]
  %v1464 = vld [vmem:[%s1460 + $0x18] sm:$0xff]
  %s1465 = scalar_lea.vmem %s4, 1
  %v1466 = vld [vmem:[%s1465] sm:$0x1]
  %v1468 = vlaneseq
  %v1469 = vshrl.u32 %v1468, 7
  %v1470 = vsub.s32 0, %v1469
  %v1471 = vrot.slane %v1466, %v1470
  %v1474 = vsel %vm81, %v1458, 0
  %v1477 = vsel %vm81, %v1459, 0
  %1479 = vmatprep.subr.mxu0 0.0
  %1480 = vmatpush1.msra.mxu0 %v1461
  %1481 = vmatprep.subr.mxu0 0.0
  %1482 = vmatpush1.msra.mxu0 %v1462
  %1483 = vmatprep.subr.mxu0 0.0
  %1484 = vmatpush1.msra.mxu0 %v1463
  %1485 = vmatprep.subr.mxu0 0.0
  %1486 = vmatpush1.msra.mxu0 %v1464
  %1487 = vmatprep.subr.mxu0 0.0
  %1488 = vmatpush1.msra.mxu0 0.0
  %1489 = vmatprep.subr.mxu0 0.0
  %1490 = vmatpush1.msra.mxu0 0.0
  %1491 = vmatprep.subr.mxu0 0.0
  %1492 = vmatpush1.msra.mxu0 0.0
  %1493 = vmatprep.subr.mxu0 0.0
  %1494 = vmatpush1.msra.mxu0 0.0
  %1495 = vmatprep.subr.mxu0 0.0
  %1496 = vmatpush1.msra.mxu0 0.0
  %1497 = vmatprep.subr.mxu0 0.0
  %1498 = vmatpush1.msra.mxu0 0.0
  %1499 = vmatprep.subr.mxu0 0.0
  %1500 = vmatpush1.msra.mxu0 0.0
  %1501 = vmatprep.subr.mxu0 0.0
  %1502 = vmatpush1.msra.mxu0 0.0
  %1503 = vmatprep.subr.mxu0 0.0
  %1504 = vmatpush1.msra.mxu0 0.0
  %1505 = vmatprep.subr.mxu0 0.0
  %1506 = vmatpush1.msra.mxu0 0.0
  %1507 = vmatprep.subr.mxu0 0.0
  %1508 = vmatpush1.msra.mxu0 0.0
  %1509 = vmatprep.subr.mxu0 0.0
  %1510 = vmatpush1.msra.mxu0 0.0
  %1511 = vmatprep.subr.mxu0 0.0
  %1512 = vmatpush1.msra.mxu0 0.0
  %1513 = vmatprep.subr.mxu0 0.0
  %1514 = vmatpush1.msra.mxu0 0.0
  %1515 = vmatprep.subr.mxu0 0.0
  %1516 = vmatpush1.msra.mxu0 0.0
  %1517 = vmatprep.subr.mxu0 0.0
  %1518 = vmatpush1.msra.mxu0 0.0
  %1519 = vmatprep.subr.mxu0 0.0
  %1520 = vmatpush1.msra.mxu0 0.0
  %1521 = vmatprep.subr.mxu0 0.0
  %1522 = vmatpush1.msra.mxu0 0.0
  %1523 = vmatprep.subr.mxu0 0.0
  %1524 = vmatpush1.msra.mxu0 0.0
  %1525 = vmatprep.subr.mxu0 0.0
  %1526 = vmatpush1.msra.mxu0 0.0
  %1527 = vmatprep.subr.mxu0 0.0
  %1528 = vmatpush1.msra.mxu0 0.0
  %1529 = vmatprep.subr.mxu0 0.0
  %1530 = vmatpush1.msra.mxu0 0.0
  %1531 = vmatprep.subr.mxu0 0.0
  %1532 = vmatpush1.msra.mxu0 0.0
  %1533 = vmatprep.subr.mxu0 0.0
  %1534 = vmatpush1.msra.mxu0 0.0
  %1535 = vmatprep.subr.mxu0 0.0
  %1536 = vmatpush1.msra.mxu0 0.0
  %1537 = vmatprep.subr.mxu0 0.0
  %1538 = vmatpush1.msra.mxu0 0.0
  %1539 = vmatprep.subr.mxu0 0.0
  %1540 = vmatpush1.msra.mxu0 0.0
  %1541 = vmatprep.subr.mxu0 0.0
  %1542 = vmatpush1.msra.mxu0 0.0
  %1543 = vmatprep.mubr.f32.mxu0 0.0
  %1544 = vmatmul.mubr.f32.gmra.mrb[0].mxu0 %v1474
  %v1545 = vpop.f32.mrb[0].mxu0
  %v1546 = vadd.f32 %v1471, %v1545
  %v1547 = vpop.f32.mrb[0].mxu0
  %1548 = vmatprep.mubr.f32.mxu0 0.0
  %1549 = vmatmul.mubr.f32.gmra.mrb[0].mxu0 %v1477
  %v1550 = vpop.f32.mrb[0].mxu0
  %v1551 = vadd.f32 %v1471, %v1550
  %v1552 = vpop.f32.mrb[0].mxu0
  %1553 = vdwg.mxu0
  %s1554 = scalar_lea.vmem %s5, 32
  %v1555 = vld [vmem:[%s1554] sm:$0xff]
  %v1556 = vld [vmem:[%s1554 + $0x8] sm:$0xff]
  %v1557 = vld [vmem:[%s1554 + $0x10] sm:$0xff]
  %v1558 = vld [vmem:[%s1554 + $0x18] sm:$0xff]
  %s1559 = scalar_lea.vmem %s6, 1
  %v1560 = vld [vmem:[%s1559] sm:$0x1]
  %v1562 = vlaneseq
  %v1563 = vshrl.u32 %v1562, 7
  %v1564 = vsub.s32 0, %v1563
  %v1565 = vrot.slane %v1560, %v1564
  %v1568 = vsel %vm81, %v1456, 0
  %v1571 = vsel %vm81, %v1457, 0
  %1573 = vmatprep.subr.mxu0 0.0
  %1574 = vmatpush1.msra.mxu0 %v1555
  %1575 = vmatprep.subr.mxu0 0.0
  %1576 = vmatpush1.msra.mxu0 %v1556
  %1577 = vmatprep.subr.mxu0 0.0
  %1578 = vmatpush1.msra.mxu0 %v1557
  %1579 = vmatprep.subr.mxu0 0.0
  %1580 = vmatpush1.msra.mxu0 %v1558
  %1581 = vmatprep.subr.mxu0 0.0
  %1582 = vmatpush1.msra.mxu0 0.0
  %1583 = vmatprep.subr.mxu0 0.0
  %1584 = vmatpush1.msra.mxu0 0.0
  %1585 = vmatprep.subr.mxu0 0.0
  %1586 = vmatpush1.msra.mxu0 0.0
  %1587 = vmatprep.subr.mxu0 0.0
  %1588 = vmatpush1.msra.mxu0 0.0
  %1589 = vmatprep.subr.mxu0 0.0
  %1590 = vmatpush1.msra.mxu0 0.0
  %1591 = vmatprep.subr.mxu0 0.0
  %1592 = vmatpush1.msra.mxu0 0.0
  %1593 = vmatprep.subr.mxu0 0.0
  %1594 = vmatpush1.msra.mxu0 0.0
  %1595 = vmatprep.subr.mxu0 0.0
  %1596 = vmatpush1.msra.mxu0 0.0
  %1597 = vmatprep.subr.mxu0 0.0
  %1598 = vmatpush1.msra.mxu0 0.0
  %1599 = vmatprep.subr.mxu0 0.0
  %1600 = vmatpush1.msra.mxu0 0.0
  %1601 = vmatprep.subr.mxu0 0.0
  %1602 = vmatpush1.msra.mxu0 0.0
  %1603 = vmatprep.subr.mxu0 0.0
  %1604 = vmatpush1.msra.mxu0 0.0
  %1605 = vmatprep.subr.mxu0 0.0
  %1606 = vmatpush1.msra.mxu0 0.0
  %1607 = vmatprep.subr.mxu0 0.0
  %1608 = vmatpush1.msra.mxu0 0.0
  %1609 = vmatprep.subr.mxu0 0.0
  %1610 = vmatpush1.msra.mxu0 0.0
  %1611 = vmatprep.subr.mxu0 0.0
  %1612 = vmatpush1.msra.mxu0 0.0
  %1613 = vmatprep.subr.mxu0 0.0
  %1614 = vmatpush1.msra.mxu0 0.0
  %1615 = vmatprep.subr.mxu0 0.0
  %1616 = vmatpush1.msra.mxu0 0.0
  %1617 = vmatprep.subr.mxu0 0.0
  %1618 = vmatpush1.msra.mxu0 0.0
  %1619 = vmatprep.subr.mxu0 0.0
  %1620 = vmatpush1.msra.mxu0 0.0
  %1621 = vmatprep.subr.mxu0 0.0
  %1622 = vmatpush1.msra.mxu0 0.0
  %1623 = vmatprep.subr.mxu0 0.0
  %1624 = vmatpush1.msra.mxu0 0.0
  %1625 = vmatprep.subr.mxu0 0.0
  %1626 = vmatpush1.msra.mxu0 0.0
  %1627 = vmatprep.subr.mxu0 0.0
  %1628 = vmatpush1.msra.mxu0 0.0
  %1629 = vmatprep.subr.mxu0 0.0
  %1630 = vmatpush1.msra.mxu0 0.0
  %1631 = vmatprep.subr.mxu0 0.0
  %1632 = vmatpush1.msra.mxu0 0.0
  %1633 = vmatprep.subr.mxu0 0.0
  %1634 = vmatpush1.msra.mxu0 0.0
  %1635 = vmatprep.subr.mxu0 0.0
  %1636 = vmatpush1.msra.mxu0 0.0
  %1637 = vmatprep.mubr.f32.mxu0 0.0
  %1638 = vmatmul.mubr.f32.gmra.mrb[0].mxu0 %v1568
  %v1639 = vpop.f32.mrb[0].mxu0
  %v1640 = vadd.f32 %v1565, %v1639
  %v1641 = vpop.f32.mrb[0].mxu0
  %1642 = vmatprep.mubr.f32.mxu0 0.0
  %1643 = vmatmul.mubr.f32.gmra.mrb[0].mxu0 %v1571
  %v1644 = vpop.f32.mrb[0].mxu0
  %v1645 = vadd.f32 %v1565, %v1644
  %v1646 = vpop.f32.mrb[0].mxu0
  %1647 = vdwg.mxu0
  %1650 = vrot.lane.b32.xlu0 %v1546, 120
  %v1651 = vpop.permute.xlu0 %1650
  %1652 = vrot.lane.b32.xlu0 %v1551, 120
  %v1653 = vpop.permute.xlu0 %1652
  %1654 = vrot.lane.b32.xlu0 %v1546, 112
  %v1655 = vpop.permute.xlu0 %1654
  %1656 = vrot.lane.b32.xlu0 %v1551, 112
  %v1657 = vpop.permute.xlu0 %1656
  %1658 = vrot.lane.b32.xlu0 %v1546, 104
  %v1659 = vpop.permute.xlu0 %1658
  %1660 = vrot.lane.b32.xlu0 %v1551, 104
  %v1661 = vpop.permute.xlu0 %1660
  %1664 = vrot.lane.b32.xlu0 %v1640, 120
  %v1665 = vpop.permute.xlu0 %1664
  %1666 = vrot.lane.b32.xlu0 %v1645, 120
  %v1667 = vpop.permute.xlu0 %1666
  %1670 = vrot.lane.b32.xlu0 %v1640, 112
  %v1671 = vpop.permute.xlu0 %1670
  %1672 = vrot.lane.b32.xlu0 %v1645, 112
  %v1673 = vpop.permute.xlu0 %1672
  %1676 = vrot.lane.b32.xlu0 %v1640, 104
  %v1677 = vpop.permute.xlu0 %1676
  %1678 = vrot.lane.b32.xlu0 %v1645, 104
  %v1679 = vpop.permute.xlu0 %1678
  %1682 = vrot.lane.b32.xlu0 %v1546, 96
  %v1683 = vpop.permute.xlu0 %1682
  %1684 = vrot.lane.b32.xlu0 %v1551, 96
  %v1685 = vpop.permute.xlu0 %1684
  %v1686 = vsel %vm293, %v1546, 0
  %v1688 = vsel %vm293, %v1551, 0
  %v1690 = vsel %vm293, %v1683, 0
  %v1692 = vsel %vm293, %v1685, 0
  %1694 = vmatprep.subr.mxu0 0.0
  %1695 = vmatpush1.xpose.msra.mxu0 %v1690
  %1696 = vmatprep.subr.mxu0 0.0
  %1697 = vmatpush1.xpose.msra.mxu0 %v1692
  %1698 = vmatprep.subr.mxu0 0.0
  %1699 = vmatpush1.xpose.msra.mxu0 0.0
  %1700 = vmatprep.subr.mxu0 0.0
  %1701 = vmatpush1.xpose.msra.mxu0 0.0
  %1702 = vmatprep.subr.mxu0 0.0
  %1703 = vmatpush1.xpose.msra.mxu0 0.0
  %1704 = vmatprep.subr.mxu0 0.0
  %1705 = vmatpush1.xpose.msra.mxu0 0.0
  %1706 = vmatprep.subr.mxu0 0.0
  %1707 = vmatpush1.xpose.msra.mxu0 0.0
  %1708 = vmatprep.subr.mxu0 0.0
  %1709 = vmatpush1.xpose.msra.mxu0 0.0
  %1710 = vmatprep.subr.mxu0 0.0
  %1711 = vmatpush1.xpose.msra.mxu0 0.0
  %1712 = vmatprep.subr.mxu0 0.0
  %1713 = vmatpush1.xpose.msra.mxu0 0.0
  %1714 = vmatprep.subr.mxu0 0.0
  %1715 = vmatpush1.xpose.msra.mxu0 0.0
  %1716 = vmatprep.subr.mxu0 0.0
  %1717 = vmatpush1.xpose.msra.mxu0 0.0
  %1718 = vmatprep.subr.mxu0 0.0
  %1719 = vmatpush1.xpose.msra.mxu0 0.0
  %1720 = vmatprep.subr.mxu0 0.0
  %1721 = vmatpush1.xpose.msra.mxu0 0.0
  %1722 = vmatprep.subr.mxu0 0.0
  %1723 = vmatpush1.xpose.msra.mxu0 0.0
  %1724 = vmatprep.subr.mxu0 0.0
  %1725 = vmatpush1.xpose.msra.mxu0 0.0
  %1726 = vmatprep.subr.mxu0 0.0
  %1727 = vmatpush1.xpose.msra.mxu0 0.0
  %1728 = vmatprep.subr.mxu0 0.0
  %1729 = vmatpush1.xpose.msra.mxu0 0.0
  %1730 = vmatprep.subr.mxu0 0.0
  %1731 = vmatpush1.xpose.msra.mxu0 0.0
  %1732 = vmatprep.subr.mxu0 0.0
  %1733 = vmatpush1.xpose.msra.mxu0 0.0
  %1734 = vmatprep.subr.mxu0 0.0
  %1735 = vmatpush1.xpose.msra.mxu0 0.0
  %1736 = vmatprep.subr.mxu0 0.0
  %1737 = vmatpush1.xpose.msra.mxu0 0.0
  %1738 = vmatprep.subr.mxu0 0.0
  %1739 = vmatpush1.xpose.msra.mxu0 0.0
  %1740 = vmatprep.subr.mxu0 0.0
  %1741 = vmatpush1.xpose.msra.mxu0 0.0
  %1742 = vmatprep.subr.mxu0 0.0
  %1743 = vmatpush1.xpose.msra.mxu0 0.0
  %1744 = vmatprep.subr.mxu0 0.0
  %1745 = vmatpush1.xpose.msra.mxu0 0.0
  %1746 = vmatprep.subr.mxu0 0.0
  %1747 = vmatpush1.xpose.msra.mxu0 0.0
  %1748 = vmatprep.subr.mxu0 0.0
  %1749 = vmatpush1.xpose.msra.mxu0 0.0
  %1750 = vmatprep.subr.mxu0 0.0
  %1751 = vmatpush1.xpose.msra.mxu0 0.0
  %1752 = vmatprep.subr.mxu0 0.0
  %1753 = vmatpush1.xpose.msra.mxu0 0.0
  %1754 = vmatprep.subr.mxu0 0.0
  %1755 = vmatpush1.xpose.msra.mxu0 0.0
  %1756 = vmatprep.subr.mxu0 0.0
  %1757 = vmatpush1.xpose.msra.mxu0 0.0
  %1758 = vmatprep.mubr.f32.mxu0 0.0
  %1759 = vmatmul.mubr.f32.gmra.mrb[0].mxu0 %v1686
  %v1760 = vpop.f32.mrb[0].mxu0
  %v1761 = vadd.f32 %v66, %v1760
  %v1762 = vpop.f32.mrb[0].mxu0
  %1763 = vmatprep.mubr.f32.mxu0 0.0
  %1764 = vmatmul.mubr.f32.gmra.mrb[0].mxu0 %v1688
  %v1765 = vpop.f32.mrb[0].mxu0
  %v1766 = vadd.f32 %v67, %v1765
  %v1767 = vpop.f32.mrb[0].mxu0
  %1768 = vdwg.mxu0
  %1769 = vrot.lane.b32.xlu0 %v1651, 96
  %v1770 = vpop.permute.xlu0 %1769
  %1771 = vrot.lane.b32.xlu0 %v1653, 96
  %v1772 = vpop.permute.xlu0 %1771
  %v1773 = vsel %vm293, %v1651, 0
  %v1775 = vsel %vm293, %v1653, 0
  %v1777 = vsel %vm293, %v1770, 0
  %v1779 = vsel %vm293, %v1772, 0
  %1781 = vmatprep.subr.mxu0 0.0
  %1782 = vmatpush1.xpose.msra.mxu0 %v1777
  %1783 = vmatprep.subr.mxu0 0.0
  %1784 = vmatpush1.xpose.msra.mxu0 %v1779
  %1785 = vmatprep.subr.mxu0 0.0
  %1786 = vmatpush1.xpose.msra.mxu0 0.0
  %1787 = vmatprep.subr.mxu0 0.0
  %1788 = vmatpush1.xpose.msra.mxu0 0.0
  %1789 = vmatprep.subr.mxu0 0.0
  %1790 = vmatpush1.xpose.msra.mxu0 0.0
  %1791 = vmatprep.subr.mxu0 0.0
  %1792 = vmatpush1.xpose.msra.mxu0 0.0
  %1793 = vmatprep.subr.mxu0 0.0
  %1794 = vmatpush1.xpose.msra.mxu0 0.0
  %1795 = vmatprep.subr.mxu0 0.0
  %1796 = vmatpush1.xpose.msra.mxu0 0.0
  %1797 = vmatprep.subr.mxu0 0.0
  %1798 = vmatpush1.xpose.msra.mxu0 0.0
  %1799 = vmatprep.subr.mxu0 0.0
  %1800 = vmatpush1.xpose.msra.mxu0 0.0
  %1801 = vmatprep.subr.mxu0 0.0
  %1802 = vmatpush1.xpose.msra.mxu0 0.0
  %1803 = vmatprep.subr.mxu0 0.0
  %1804 = vmatpush1.xpose.msra.mxu0 0.0
  %1805 = vmatprep.subr.mxu0 0.0
  %1806 = vmatpush1.xpose.msra.mxu0 0.0
  %1807 = vmatprep.subr.mxu0 0.0
  %1808 = vmatpush1.xpose.msra.mxu0 0.0
  %1809 = vmatprep.subr.mxu0 0.0
  %1810 = vmatpush1.xpose.msra.mxu0 0.0
  %1811 = vmatprep.subr.mxu0 0.0
  %1812 = vmatpush1.xpose.msra.mxu0 0.0
  %1813 = vmatprep.subr.mxu0 0.0
  %1814 = vmatpush1.xpose.msra.mxu0 0.0
  %1815 = vmatprep.subr.mxu0 0.0
  %1816 = vmatpush1.xpose.msra.mxu0 0.0
  %1817 = vmatprep.subr.mxu0 0.0
  %1818 = vmatpush1.xpose.msra.mxu0 0.0
  %1819 = vmatprep.subr.mxu0 0.0
  %1820 = vmatpush1.xpose.msra.mxu0 0.0
  %1821 = vmatprep.subr.mxu0 0.0
  %1822 = vmatpush1.xpose.msra.mxu0 0.0
  %1823 = vmatprep.subr.mxu0 0.0
  %1824 = vmatpush1.xpose.msra.mxu0 0.0
  %1825 = vmatprep.subr.mxu0 0.0
  %1826 = vmatpush1.xpose.msra.mxu0 0.0
  %1827 = vmatprep.subr.mxu0 0.0
  %1828 = vmatpush1.xpose.msra.mxu0 0.0
  %1829 = vmatprep.subr.mxu0 0.0
  %1830 = vmatpush1.xpose.msra.mxu0 0.0
  %1831 = vmatprep.subr.mxu0 0.0
  %1832 = vmatpush1.xpose.msra.mxu0 0.0
  %1833 = vmatprep.subr.mxu0 0.0
  %1834 = vmatpush1.xpose.msra.mxu0 0.0
  %1835 = vmatprep.subr.mxu0 0.0
  %1836 = vmatpush1.xpose.msra.mxu0 0.0
  %1837 = vmatprep.subr.mxu0 0.0
  %1838 = vmatpush1.xpose.msra.mxu0 0.0
  %1839 = vmatprep.subr.mxu0 0.0
  %1840 = vmatpush1.xpose.msra.mxu0 0.0
  %1841 = vmatprep.subr.mxu0 0.0
  %1842 = vmatpush1.xpose.msra.mxu0 0.0
  %1843 = vmatprep.subr.mxu0 0.0
  %1844 = vmatpush1.xpose.msra.mxu0 0.0
  %1845 = vmatprep.mubr.f32.mxu0 0.0
  %1846 = vmatmul.mubr.f32.gmra.mrb[0].mxu0 %v1773
  %v1847 = vpop.f32.mrb[0].mxu0
  %v1848 = vadd.f32 %v66, %v1847
  %v1849 = vpop.f32.mrb[0].mxu0
  %1850 = vmatprep.mubr.f32.mxu0 0.0
  %1851 = vmatmul.mubr.f32.gmra.mrb[0].mxu0 %v1775
  %v1852 = vpop.f32.mrb[0].mxu0
  %v1853 = vadd.f32 %v67, %v1852
  %v1854 = vpop.f32.mrb[0].mxu0
  %1855 = vdwg.mxu0
  %1856 = vrot.lane.b32.xlu0 %v1655, 96
  %v1857 = vpop.permute.xlu0 %1856
  %1858 = vrot.lane.b32.xlu0 %v1657, 96
  %v1859 = vpop.permute.xlu0 %1858
  %v1860 = vsel %vm293, %v1655, 0
  %v1862 = vsel %vm293, %v1657, 0
  %v1864 = vsel %vm293, %v1857, 0
  %v1866 = vsel %vm293, %v1859, 0
  %1868 = vmatprep.subr.mxu0 0.0
  %1869 = vmatpush1.xpose.msra.mxu0 %v1864
  %1870 = vmatprep.subr.mxu0 0.0
  %1871 = vmatpush1.xpose.msra.mxu0 %v1866
  %1872 = vmatprep.subr.mxu0 0.0
  %1873 = vmatpush1.xpose.msra.mxu0 0.0
  %1874 = vmatprep.subr.mxu0 0.0
  %1875 = vmatpush1.xpose.msra.mxu0 0.0
  %1876 = vmatprep.subr.mxu0 0.0
  %1877 = vmatpush1.xpose.msra.mxu0 0.0
  %1878 = vmatprep.subr.mxu0 0.0
  %1879 = vmatpush1.xpose.msra.mxu0 0.0
  %1880 = vmatprep.subr.mxu0 0.0
  %1881 = vmatpush1.xpose.msra.mxu0 0.0
  %1882 = vmatprep.subr.mxu0 0.0
  %1883 = vmatpush1.xpose.msra.mxu0 0.0
  %1884 = vmatprep.subr.mxu0 0.0
  %1885 = vmatpush1.xpose.msra.mxu0 0.0
  %1886 = vmatprep.subr.mxu0 0.0
  %1887 = vmatpush1.xpose.msra.mxu0 0.0
  %1888 = vmatprep.subr.mxu0 0.0
  %1889 = vmatpush1.xpose.msra.mxu0 0.0
  %1890 = vmatprep.subr.mxu0 0.0
  %1891 = vmatpush1.xpose.msra.mxu0 0.0
  %1892 = vmatprep.subr.mxu0 0.0
  %1893 = vmatpush1.xpose.msra.mxu0 0.0
  %1894 = vmatprep.subr.mxu0 0.0
  %1895 = vmatpush1.xpose.msra.mxu0 0.0
  %1896 = vmatprep.subr.mxu0 0.0
  %1897 = vmatpush1.xpose.msra.mxu0 0.0
  %1898 = vmatprep.subr.mxu0 0.0
  %1899 = vmatpush1.xpose.msra.mxu0 0.0
  %1900 = vmatprep.subr.mxu0 0.0
  %1901 = vmatpush1.xpose.msra.mxu0 0.0
  %1902 = vmatprep.subr.mxu0 0.0
  %1903 = vmatpush1.xpose.msra.mxu0 0.0
  %1904 = vmatprep.subr.mxu0 0.0
  %1905 = vmatpush1.xpose.msra.mxu0 0.0
  %1906 = vmatprep.subr.mxu0 0.0
  %1907 = vmatpush1.xpose.msra.mxu0 0.0
  %1908 = vmatprep.subr.mxu0 0.0
  %1909 = vmatpush1.xpose.msra.mxu0 0.0
  %1910 = vmatprep.subr.mxu0 0.0
  %1911 = vmatpush1.xpose.msra.mxu0 0.0
  %1912 = vmatprep.subr.mxu0 0.0
  %1913 = vmatpush1.xpose.msra.mxu0 0.0
  %1914 = vmatprep.subr.mxu0 0.0
  %1915 = vmatpush1.xpose.msra.mxu0 0.0
  %1916 = vmatprep.subr.mxu0 0.0
  %1917 = vmatpush1.xpose.msra.mxu0 0.0
  %1918 = vmatprep.subr.mxu0 0.0
  %1919 = vmatpush1.xpose.msra.mxu0 0.0
  %1920 = vmatprep.subr.mxu0 0.0
  %1921 = vmatpush1.xpose.msra.mxu0 0.0
  %1922 = vmatprep.subr.mxu0 0.0
  %1923 = vmatpush1.xpose.msra.mxu0 0.0
  %1924 = vmatprep.subr.mxu0 0.0
  %1925 = vmatpush1.xpose.msra.mxu0 0.0
  %1926 = vmatprep.subr.mxu0 0.0
  %1927 = vmatpush1.xpose.msra.mxu0 0.0
  %1928 = vmatprep.subr.mxu0 0.0
  %1929 = vmatpush1.xpose.msra.mxu0 0.0
  %1930 = vmatprep.subr.mxu0 0.0
  %1931 = vmatpush1.xpose.msra.mxu0 0.0
  %1932 = vmatprep.mubr.f32.mxu0 0.0
  %1933 = vmatmul.mubr.f32.gmra.mrb[0].mxu0 %v1860
  %v1934 = vpop.f32.mrb[0].mxu0
  %v1935 = vadd.f32 %v66, %v1934
  %v1936 = vpop.f32.mrb[0].mxu0
  %1937 = vmatprep.mubr.f32.mxu0 0.0
  %1938 = vmatmul.mubr.f32.gmra.mrb[0].mxu0 %v1862
  %v1939 = vpop.f32.mrb[0].mxu0
  %v1940 = vadd.f32 %v67, %v1939
  %v1941 = vpop.f32.mrb[0].mxu0
  %1942 = vdwg.mxu0
  %1943 = vrot.lane.b32.xlu0 %v1659, 96
  %v1944 = vpop.permute.xlu0 %1943
  %1945 = vrot.lane.b32.xlu0 %v1661, 96
  %v1946 = vpop.permute.xlu0 %1945
  %v1947 = vsel %vm293, %v1659, 0
  %v1949 = vsel %vm293, %v1661, 0
  %v1951 = vsel %vm293, %v1944, 0
  %v1953 = vsel %vm293, %v1946, 0
  %1955 = vmatprep.subr.mxu0 0.0
  %1956 = vmatpush1.xpose.msra.mxu0 %v1951
  %1957 = vmatprep.subr.mxu0 0.0
  %1958 = vmatpush1.xpose.msra.mxu0 %v1953
  %1959 = vmatprep.subr.mxu0 0.0
  %1960 = vmatpush1.xpose.msra.mxu0 0.0
  %1961 = vmatprep.subr.mxu0 0.0
  %1962 = vmatpush1.xpose.msra.mxu0 0.0
  %1963 = vmatprep.subr.mxu0 0.0
  %1964 = vmatpush1.xpose.msra.mxu0 0.0
  %1965 = vmatprep.subr.mxu0 0.0
  %1966 = vmatpush1.xpose.msra.mxu0 0.0
  %1967 = vmatprep.subr.mxu0 0.0
  %1968 = vmatpush1.xpose.msra.mxu0 0.0
  %1969 = vmatprep.subr.mxu0 0.0
  %1970 = vmatpush1.xpose.msra.mxu0 0.0
  %1971 = vmatprep.subr.mxu0 0.0
  %1972 = vmatpush1.xpose.msra.mxu0 0.0
  %1973 = vmatprep.subr.mxu0 0.0
  %1974 = vmatpush1.xpose.msra.mxu0 0.0
  %1975 = vmatprep.subr.mxu0 0.0
  %1976 = vmatpush1.xpose.msra.mxu0 0.0
  %1977 = vmatprep.subr.mxu0 0.0
  %1978 = vmatpush1.xpose.msra.mxu0 0.0
  %1979 = vmatprep.subr.mxu0 0.0
  %1980 = vmatpush1.xpose.msra.mxu0 0.0
  %1981 = vmatprep.subr.mxu0 0.0
  %1982 = vmatpush1.xpose.msra.mxu0 0.0
  %1983 = vmatprep.subr.mxu0 0.0
  %1984 = vmatpush1.xpose.msra.mxu0 0.0
  %1985 = vmatprep.subr.mxu0 0.0
  %1986 = vmatpush1.xpose.msra.mxu0 0.0
  %1987 = vmatprep.subr.mxu0 0.0
  %1988 = vmatpush1.xpose.msra.mxu0 0.0
  %1989 = vmatprep.subr.mxu0 0.0
  %1990 = vmatpush1.xpose.msra.mxu0 0.0
  %1991 = vmatprep.subr.mxu0 0.0
  %1992 = vmatpush1.xpose.msra.mxu0 0.0
  %1993 = vmatprep.subr.mxu0 0.0
  %1994 = vmatpush1.xpose.msra.mxu0 0.0
  %1995 = vmatprep.subr.mxu0 0.0
  %1996 = vmatpush1.xpose.msra.mxu0 0.0
  %1997 = vmatprep.subr.mxu0 0.0
  %1998 = vmatpush1.xpose.msra.mxu0 0.0
  %1999 = vmatprep.subr.mxu0 0.0
  %2000 = vmatpush1.xpose.msra.mxu0 0.0
  %2001 = vmatprep.subr.mxu0 0.0
  %2002 = vmatpush1.xpose.msra.mxu0 0.0
  %2003 = vmatprep.subr.mxu0 0.0
  %2004 = vmatpush1.xpose.msra.mxu0 0.0
  %2005 = vmatprep.subr.mxu0 0.0
  %2006 = vmatpush1.xpose.msra.mxu0 0.0
  %2007 = vmatprep.subr.mxu0 0.0
  %2008 = vmatpush1.xpose.msra.mxu0 0.0
  %2009 = vmatprep.subr.mxu0 0.0
  %2010 = vmatpush1.xpose.msra.mxu0 0.0
  %2011 = vmatprep.subr.mxu0 0.0
  %2012 = vmatpush1.xpose.msra.mxu0 0.0
  %2013 = vmatprep.subr.mxu0 0.0
  %2014 = vmatpush1.xpose.msra.mxu0 0.0
  %2015 = vmatprep.subr.mxu0 0.0
  %2016 = vmatpush1.xpose.msra.mxu0 0.0
  %2017 = vmatprep.subr.mxu0 0.0
  %2018 = vmatpush1.xpose.msra.mxu0 0.0
  %2019 = vmatprep.mubr.f32.mxu0 0.0
  %2020 = vmatmul.mubr.f32.gmra.mrb[0].mxu0 %v1947
  %v2021 = vpop.f32.mrb[0].mxu0
  %v2022 = vadd.f32 %v66, %v2021
  %v2023 = vpop.f32.mrb[0].mxu0
  %2024 = vmatprep.mubr.f32.mxu0 0.0
  %2025 = vmatmul.mubr.f32.gmra.mrb[0].mxu0 %v1949
  %v2026 = vpop.f32.mrb[0].mxu0
  %v2027 = vadd.f32 %v67, %v2026
  %v2028 = vpop.f32.mrb[0].mxu0
  %2029 = vdwg.mxu0
  %v2030 = vsel %vm638, %v1761, -inf
  %2031 = vmax.xlane.f32.xlu0 %v2030
  %v2032 = vpop.xlane.xlu0 %2031
  %v2033 = vsel %vm638, %v1766, -inf
  %2034 = vmax.xlane.f32.xlu0 %v2033
  %v2035 = vpop.xlane.xlu0 %2034
  %v2036 = vsel %vm638, %v1848, -inf
  %2037 = vmax.xlane.f32.xlu0 %v2036
  %v2038 = vpop.xlane.xlu0 %2037
  %v2039 = vsel %vm638, %v1853, -inf
  %2040 = vmax.xlane.f32.xlu0 %v2039
  %v2041 = vpop.xlane.xlu0 %2040
  %v2042 = vsel %vm638, %v1935, -inf
  %2043 = vmax.xlane.f32.xlu0 %v2042
  %v2044 = vpop.xlane.xlu0 %2043
  %v2045 = vsel %vm638, %v1940, -inf
  %2046 = vmax.xlane.f32.xlu0 %v2045
  %v2047 = vpop.xlane.xlu0 %2046
  %v2048 = vsel %vm638, %v2022, -inf
  %2049 = vmax.xlane.f32.xlu0 %v2048
  %v2050 = vpop.xlane.xlu0 %2049
  %v2051 = vsel %vm638, %v2027, -inf
  %2052 = vmax.xlane.f32.xlu0 %v2051
  %v2053 = vpop.xlane.xlu0 %2052
  %v2054 = vsub.f32 %v1761, %v2032
  %v2055 = vsub.f32 %v1766, %v2035
  %v2056 = vsub.f32 %v1848, %v2038
  %v2057 = vsub.f32 %v1853, %v2041
  %v2058 = vsub.f32 %v1935, %v2044
  %v2059 = vsub.f32 %v1940, %v2047
  %v2060 = vsub.f32 %v2022, %v2050
  %v2061 = vsub.f32 %v2027, %v2053
  %v2062 = vmul.f32 %v2054, 1.442695
  %v2063 = vpow.pop %v2062
  %v2064 = vmul.f32 %v2055, 1.442695
  %v2065 = vpow.pop %v2064
  %v2066 = vmul.f32 %v2056, 1.442695
  %v2067 = vpow.pop %v2066
  %v2068 = vmul.f32 %v2057, 1.442695
  %v2069 = vpow.pop %v2068
  %v2070 = vmul.f32 %v2058, 1.442695
  %v2071 = vpow.pop %v2070
  %v2072 = vmul.f32 %v2059, 1.442695
  %v2073 = vpow.pop %v2072
  %v2074 = vmul.f32 %v2060, 1.442695
  %v2075 = vpow.pop %v2074
  %v2076 = vmul.f32 %v2061, 1.442695
  %v2077 = vpow.pop %v2076
  %v2078 = vsel %vm638, %v2063, 0.0
  %2079 = vadd.xlane.f32.xlu0 %v2078
  %v2080 = vpop.xlane.xlu0 %2079
  %v2081 = vsel %vm638, %v2065, 0.0
  %2082 = vadd.xlane.f32.xlu0 %v2081
  %v2083 = vpop.xlane.xlu0 %2082
  %v2084 = vsel %vm638, %v2067, 0.0
  %2085 = vadd.xlane.f32.xlu0 %v2084
  %v2086 = vpop.xlane.xlu0 %2085
  %v2087 = vsel %vm638, %v2069, 0.0
  %2088 = vadd.xlane.f32.xlu0 %v2087
  %v2089 = vpop.xlane.xlu0 %2088
  %v2090 = vsel %vm638, %v2071, 0.0
  %2091 = vadd.xlane.f32.xlu0 %v2090
  %v2092 = vpop.xlane.xlu0 %2091
  %v2093 = vsel %vm638, %v2073, 0.0
  %2094 = vadd.xlane.f32.xlu0 %v2093
  %v2095 = vpop.xlane.xlu0 %2094
  %v2096 = vsel %vm638, %v2075, 0.0
  %2097 = vadd.xlane.f32.xlu0 %v2096
  %v2098 = vpop.xlane.xlu0 %2097
  %v2099 = vsel %vm638, %v2077, 0.0
  %2100 = vadd.xlane.f32.xlu0 %v2099
  %v2101 = vpop.xlane.xlu0 %2100
  %v2102 = vrcp.pop %v2080
  %v2103 = vrcp.pop %v2083
  %v2104 = vrcp.pop %v2086
  %v2105 = vrcp.pop %v2089
  %v2106 = vrcp.pop %v2092
  %v2107 = vrcp.pop %v2095
  %v2108 = vrcp.pop %v2098
  %v2109 = vrcp.pop %v2101
  %v2110 = vmul.f32 %v2063, %v2102
  %v2111 = vmul.f32 %v2065, %v2103
  %v2112 = vmul.f32 %v2067, %v2104
  %v2113 = vmul.f32 %v2069, %v2105
  %v2114 = vmul.f32 %v2071, %v2106
  %v2115 = vmul.f32 %v2073, %v2107
  %v2116 = vmul.f32 %v2075, %v2108
  %v2117 = vmul.f32 %v2077, %v2109
  %v2119 = vsel %vm638, %v2110, 0
  %v2122 = vsel %vm638, %v2111, 0
  %2124 = vmatprep.subr.mxu0 0.0
  %2125 = vmatpush1.msra.mxu0 %v1640
  %2126 = vmatprep.subr.mxu0 0.0
  %2127 = vmatpush1.msra.mxu0 %v1645
  %2128 = vmatprep.subr.mxu0 0.0
  %2129 = vmatpush1.msra.mxu0 0.0
  %2130 = vmatprep.subr.mxu0 0.0
  %2131 = vmatpush1.msra.mxu0 0.0
  %2132 = vmatprep.subr.mxu0 0.0
  %2133 = vmatpush1.msra.mxu0 0.0
  %2134 = vmatprep.subr.mxu0 0.0
  %2135 = vmatpush1.msra.mxu0 0.0
  %2136 = vmatprep.subr.mxu0 0.0
  %2137 = vmatpush1.msra.mxu0 0.0
  %2138 = vmatprep.subr.mxu0 0.0
  %2139 = vmatpush1.msra.mxu0 0.0
  %2140 = vmatprep.subr.mxu0 0.0
  %2141 = vmatpush1.msra.mxu0 0.0
  %2142 = vmatprep.subr.mxu0 0.0
  %2143 = vmatpush1.msra.mxu0 0.0
  %2144 = vmatprep.subr.mxu0 0.0
  %2145 = vmatpush1.msra.mxu0 0.0
  %2146 = vmatprep.subr.mxu0 0.0
  %2147 = vmatpush1.msra.mxu0 0.0
  %2148 = vmatprep.subr.mxu0 0.0
  %2149 = vmatpush1.msra.mxu0 0.0
  %2150 = vmatprep.subr.mxu0 0.0
  %2151 = vmatpush1.msra.mxu0 0.0
  %2152 = vmatprep.subr.mxu0 0.0
  %2153 = vmatpush1.msra.mxu0 0.0
  %2154 = vmatprep.subr.mxu0 0.0
  %2155 = vmatpush1.msra.mxu0 0.0
  %2156 = vmatprep.subr.mxu0 0.0
  %2157 = vmatpush1.msra.mxu0 0.0
  %2158 = vmatprep.subr.mxu0 0.0
  %2159 = vmatpush1.msra.mxu0 0.0
  %2160 = vmatprep.subr.mxu0 0.0
  %2161 = vmatpush1.msra.mxu0 0.0
  %2162 = vmatprep.subr.mxu0 0.0
  %2163 = vmatpush1.msra.mxu0 0.0
  %2164 = vmatprep.subr.mxu0 0.0
  %2165 = vmatpush1.msra.mxu0 0.0
  %2166 = vmatprep.subr.mxu0 0.0
  %2167 = vmatpush1.msra.mxu0 0.0
  %2168 = vmatprep.subr.mxu0 0.0
  %2169 = vmatpush1.msra.mxu0 0.0
  %2170 = vmatprep.subr.mxu0 0.0
  %2171 = vmatpush1.msra.mxu0 0.0
  %2172 = vmatprep.subr.mxu0 0.0
  %2173 = vmatpush1.msra.mxu0 0.0
  %2174 = vmatprep.subr.mxu0 0.0
  %2175 = vmatpush1.msra.mxu0 0.0
  %2176 = vmatprep.subr.mxu0 0.0
  %2177 = vmatpush1.msra.mxu0 0.0
  %2178 = vmatprep.subr.mxu0 0.0
  %2179 = vmatpush1.msra.mxu0 0.0
  %2180 = vmatprep.subr.mxu0 0.0
  %2181 = vmatpush1.msra.mxu0 0.0
  %2182 = vmatprep.subr.mxu0 0.0
  %2183 = vmatpush1.msra.mxu0 0.0
  %2184 = vmatprep.subr.mxu0 0.0
  %2185 = vmatpush1.msra.mxu0 0.0
  %2186 = vmatprep.subr.mxu0 0.0
  %2187 = vmatpush1.msra.mxu0 0.0
  %2188 = vmatprep.mubr.f32.mxu0 0.0
  %2189 = vmatmul.mubr.f32.gmra.mrb[0].mxu0 %v2119
  %v2190 = vpop.f32.mrb[0].mxu0
  %v2191 = vadd.f32 0.0, %v2190
  %v2192 = vpop.f32.mrb[0].mxu0
  %2193 = vmatprep.mubr.f32.mxu0 0.0
  %2194 = vmatmul.mubr.f32.gmra.mrb[0].mxu0 %v2122
  %v2195 = vpop.f32.mrb[0].mxu0
  %v2196 = vadd.f32 0.0, %v2195
  %v2197 = vpop.f32.mrb[0].mxu0
  %2198 = vdwg.mxu0
  %v2200 = vsel %vm638, %v2112, 0
  %v2203 = vsel %vm638, %v2113, 0
  %2205 = vmatprep.subr.mxu0 0.0
  %2206 = vmatpush1.msra.mxu0 %v1665
  %2207 = vmatprep.subr.mxu0 0.0
  %2208 = vmatpush1.msra.mxu0 %v1667
  %2209 = vmatprep.subr.mxu0 0.0
  %2210 = vmatpush1.msra.mxu0 0.0
  %2211 = vmatprep.subr.mxu0 0.0
  %2212 = vmatpush1.msra.mxu0 0.0
  %2213 = vmatprep.subr.mxu0 0.0
  %2214 = vmatpush1.msra.mxu0 0.0
  %2215 = vmatprep.subr.mxu0 0.0
  %2216 = vmatpush1.msra.mxu0 0.0
  %2217 = vmatprep.subr.mxu0 0.0
  %2218 = vmatpush1.msra.mxu0 0.0
  %2219 = vmatprep.subr.mxu0 0.0
  %2220 = vmatpush1.msra.mxu0 0.0
  %2221 = vmatprep.subr.mxu0 0.0
  %2222 = vmatpush1.msra.mxu0 0.0
  %2223 = vmatprep.subr.mxu0 0.0
  %2224 = vmatpush1.msra.mxu0 0.0
  %2225 = vmatprep.subr.mxu0 0.0
  %2226 = vmatpush1.msra.mxu0 0.0
  %2227 = vmatprep.subr.mxu0 0.0
  %2228 = vmatpush1.msra.mxu0 0.0
  %2229 = vmatprep.subr.mxu0 0.0
  %2230 = vmatpush1.msra.mxu0 0.0
  %2231 = vmatprep.subr.mxu0 0.0
  %2232 = vmatpush1.msra.mxu0 0.0
  %2233 = vmatprep.subr.mxu0 0.0
  %2234 = vmatpush1.msra.mxu0 0.0
  %2235 = vmatprep.subr.mxu0 0.0
  %2236 = vmatpush1.msra.mxu0 0.0
  %2237 = vmatprep.subr.mxu0 0.0
  %2238 = vmatpush1.msra.mxu0 0.0
  %2239 = vmatprep.subr.mxu0 0.0
  %2240 = vmatpush1.msra.mxu0 0.0
  %2241 = vmatprep.subr.mxu0 0.0
  %2242 = vmatpush1.msra.mxu0 0.0
  %2243 = vmatprep.subr.mxu0 0.0
  %2244 = vmatpush1.msra.mxu0 0.0
  %2245 = vmatprep.subr.mxu0 0.0
  %2246 = vmatpush1.msra.mxu0 0.0
  %2247 = vmatprep.subr.mxu0 0.0
  %2248 = vmatpush1.msra.mxu0 0.0
  %2249 = vmatprep.subr.mxu0 0.0
  %2250 = vmatpush1.msra.mxu0 0.0
  %2251 = vmatprep.subr.mxu0 0.0
  %2252 = vmatpush1.msra.mxu0 0.0
  %2253 = vmatprep.subr.mxu0 0.0
  %2254 = vmatpush1.msra.mxu0 0.0
  %2255 = vmatprep.subr.mxu0 0.0
  %2256 = vmatpush1.msra.mxu0 0.0
  %2257 = vmatprep.subr.mxu0 0.0
  %2258 = vmatpush1.msra.mxu0 0.0
  %2259 = vmatprep.subr.mxu0 0.0
  %2260 = vmatpush1.msra.mxu0 0.0
  %2261 = vmatprep.subr.mxu0 0.0
  %2262 = vmatpush1.msra.mxu0 0.0
  %2263 = vmatprep.subr.mxu0 0.0
  %2264 = vmatpush1.msra.mxu0 0.0
  %2265 = vmatprep.subr.mxu0 0.0
  %2266 = vmatpush1.msra.mxu0 0.0
  %2267 = vmatprep.subr.mxu0 0.0
  %2268 = vmatpush1.msra.mxu0 0.0
  %2269 = vmatprep.mubr.f32.mxu0 0.0
  %2270 = vmatmul.mubr.f32.gmra.mrb[0].mxu0 %v2200
  %v2271 = vpop.f32.mrb[0].mxu0
  %v2272 = vadd.f32 0.0, %v2271
  %v2273 = vpop.f32.mrb[0].mxu0
  %2274 = vmatprep.mubr.f32.mxu0 0.0
  %2275 = vmatmul.mubr.f32.gmra.mrb[0].mxu0 %v2203
  %v2276 = vpop.f32.mrb[0].mxu0
  %v2277 = vadd.f32 0.0, %v2276
  %v2278 = vpop.f32.mrb[0].mxu0
  %2279 = vdwg.mxu0
  %v2281 = vsel %vm638, %v2114, 0
  %v2284 = vsel %vm638, %v2115, 0
  %2286 = vmatprep.subr.mxu0 0.0
  %2287 = vmatpush1.msra.mxu0 %v1671
  %2288 = vmatprep.subr.mxu0 0.0
  %2289 = vmatpush1.msra.mxu0 %v1673
  %2290 = vmatprep.subr.mxu0 0.0
  %2291 = vmatpush1.msra.mxu0 0.0
  %2292 = vmatprep.subr.mxu0 0.0
  %2293 = vmatpush1.msra.mxu0 0.0
  %2294 = vmatprep.subr.mxu0 0.0
  %2295 = vmatpush1.msra.mxu0 0.0
  %2296 = vmatprep.subr.mxu0 0.0
  %2297 = vmatpush1.msra.mxu0 0.0
  %2298 = vmatprep.subr.mxu0 0.0
  %2299 = vmatpush1.msra.mxu0 0.0
  %2300 = vmatprep.subr.mxu0 0.0
  %2301 = vmatpush1.msra.mxu0 0.0
  %2302 = vmatprep.subr.mxu0 0.0
  %2303 = vmatpush1.msra.mxu0 0.0
  %2304 = vmatprep.subr.mxu0 0.0
  %2305 = vmatpush1.msra.mxu0 0.0
  %2306 = vmatprep.subr.mxu0 0.0
  %2307 = vmatpush1.msra.mxu0 0.0
  %2308 = vmatprep.subr.mxu0 0.0
  %2309 = vmatpush1.msra.mxu0 0.0
  %2310 = vmatprep.subr.mxu0 0.0
  %2311 = vmatpush1.msra.mxu0 0.0
  %2312 = vmatprep.subr.mxu0 0.0
  %2313 = vmatpush1.msra.mxu0 0.0
  %2314 = vmatprep.subr.mxu0 0.0
  %2315 = vmatpush1.msra.mxu0 0.0
  %2316 = vmatprep.subr.mxu0 0.0
  %2317 = vmatpush1.msra.mxu0 0.0
  %2318 = vmatprep.subr.mxu0 0.0
  %2319 = vmatpush1.msra.mxu0 0.0
  %2320 = vmatprep.subr.mxu0 0.0
  %2321 = vmatpush1.msra.mxu0 0.0
  %2322 = vmatprep.subr.mxu0 0.0
  %2323 = vmatpush1.msra.mxu0 0.0
  %2324 = vmatprep.subr.mxu0 0.0
  %2325 = vmatpush1.msra.mxu0 0.0
  %2326 = vmatprep.subr.mxu0 0.0
  %2327 = vmatpush1.msra.mxu0 0.0
  %2328 = vmatprep.subr.mxu0 0.0
  %2329 = vmatpush1.msra.mxu0 0.0
  %2330 = vmatprep.subr.mxu0 0.0
  %2331 = vmatpush1.msra.mxu0 0.0
  %2332 = vmatprep.subr.mxu0 0.0
  %2333 = vmatpush1.msra.mxu0 0.0
  %2334 = vmatprep.subr.mxu0 0.0
  %2335 = vmatpush1.msra.mxu0 0.0
  %2336 = vmatprep.subr.mxu0 0.0
  %2337 = vmatpush1.msra.mxu0 0.0
  %2338 = vmatprep.subr.mxu0 0.0
  %2339 = vmatpush1.msra.mxu0 0.0
  %2340 = vmatprep.subr.mxu0 0.0
  %2341 = vmatpush1.msra.mxu0 0.0
  %2342 = vmatprep.subr.mxu0 0.0
  %2343 = vmatpush1.msra.mxu0 0.0
  %2344 = vmatprep.subr.mxu0 0.0
  %2345 = vmatpush1.msra.mxu0 0.0
  %2346 = vmatprep.subr.mxu0 0.0
  %2347 = vmatpush1.msra.mxu0 0.0
  %2348 = vmatprep.subr.mxu0 0.0
  %2349 = vmatpush1.msra.mxu0 0.0
  %2350 = vmatprep.mubr.f32.mxu0 0.0
  %2351 = vmatmul.mubr.f32.gmra.mrb[0].mxu0 %v2281
  %v2352 = vpop.f32.mrb[0].mxu0
  %v2353 = vadd.f32 0.0, %v2352
  %v2354 = vpop.f32.mrb[0].mxu0
  %2355 = vmatprep.mubr.f32.mxu0 0.0
  %2356 = vmatmul.mubr.f32.gmra.mrb[0].mxu0 %v2284
  %v2357 = vpop.f32.mrb[0].mxu0
  %v2358 = vadd.f32 0.0, %v2357
  %v2359 = vpop.f32.mrb[0].mxu0
  %2360 = vdwg.mxu0
  %v2362 = vsel %vm638, %v2116, 0
  %v2365 = vsel %vm638, %v2117, 0
  %2367 = vmatprep.subr.mxu0 0.0
  %2368 = vmatpush1.msra.mxu0 %v1677
  %2369 = vmatprep.subr.mxu0 0.0
  %2370 = vmatpush1.msra.mxu0 %v1679
  %2371 = vmatprep.subr.mxu0 0.0
  %2372 = vmatpush1.msra.mxu0 0.0
  %2373 = vmatprep.subr.mxu0 0.0
  %2374 = vmatpush1.msra.mxu0 0.0
  %2375 = vmatprep.subr.mxu0 0.0
  %2376 = vmatpush1.msra.mxu0 0.0
  %2377 = vmatprep.subr.mxu0 0.0
  %2378 = vmatpush1.msra.mxu0 0.0
  %2379 = vmatprep.subr.mxu0 0.0
  %2380 = vmatpush1.msra.mxu0 0.0
  %2381 = vmatprep.subr.mxu0 0.0
  %2382 = vmatpush1.msra.mxu0 0.0
  %2383 = vmatprep.subr.mxu0 0.0
  %2384 = vmatpush1.msra.mxu0 0.0
  %2385 = vmatprep.subr.mxu0 0.0
  %2386 = vmatpush1.msra.mxu0 0.0
  %2387 = vmatprep.subr.mxu0 0.0
  %2388 = vmatpush1.msra.mxu0 0.0
  %2389 = vmatprep.subr.mxu0 0.0
  %2390 = vmatpush1.msra.mxu0 0.0
  %2391 = vmatprep.subr.mxu0 0.0
  %2392 = vmatpush1.msra.mxu0 0.0
  %2393 = vmatprep.subr.mxu0 0.0
  %2394 = vmatpush1.msra.mxu0 0.0
  %2395 = vmatprep.subr.mxu0 0.0
  %2396 = vmatpush1.msra.mxu0 0.0
  %2397 = vmatprep.subr.mxu0 0.0
  %2398 = vmatpush1.msra.mxu0 0.0
  %2399 = vmatprep.subr.mxu0 0.0
  %2400 = vmatpush1.msra.mxu0 0.0
  %2401 = vmatprep.subr.mxu0 0.0
  %2402 = vmatpush1.msra.mxu0 0.0
  %2403 = vmatprep.subr.mxu0 0.0
  %2404 = vmatpush1.msra.mxu0 0.0
  %2405 = vmatprep.subr.mxu0 0.0
  %2406 = vmatpush1.msra.mxu0 0.0
  %2407 = vmatprep.subr.mxu0 0.0
  %2408 = vmatpush1.msra.mxu0 0.0
  %2409 = vmatprep.subr.mxu0 0.0
  %2410 = vmatpush1.msra.mxu0 0.0
  %2411 = vmatprep.subr.mxu0 0.0
  %2412 = vmatpush1.msra.mxu0 0.0
  %2413 = vmatprep.subr.mxu0 0.0
  %2414 = vmatpush1.msra.mxu0 0.0
  %2415 = vmatprep.subr.mxu0 0.0
  %2416 = vmatpush1.msra.mxu0 0.0
  %2417 = vmatprep.subr.mxu0 0.0
  %2418 = vmatpush1.msra.mxu0 0.0
  %2419 = vmatprep.subr.mxu0 0.0
  %2420 = vmatpush1.msra.mxu0 0.0
  %2421 = vmatprep.subr.mxu0 0.0
  %2422 = vmatpush1.msra.mxu0 0.0
  %2423 = vmatprep.subr.mxu0 0.0
  %2424 = vmatpush1.msra.mxu0 0.0
  %2425 = vmatprep.subr.mxu0 0.0
  %2426 = vmatpush1.msra.mxu0 0.0
  %2427 = vmatprep.subr.mxu0 0.0
  %2428 = vmatpush1.msra.mxu0 0.0
  %2429 = vmatprep.subr.mxu0 0.0
  %2430 = vmatpush1.msra.mxu0 0.0
  %2431 = vmatprep.mubr.f32.mxu0 0.0
  %2432 = vmatmul.mubr.f32.gmra.mrb[0].mxu0 %v2362
  %v2433 = vpop.f32.mrb[0].mxu0
  %v2434 = vadd.f32 0.0, %v2433
  %v2435 = vpop.f32.mrb[0].mxu0
  %2436 = vmatprep.mubr.f32.mxu0 0.0
  %2437 = vmatmul.mubr.f32.gmra.mrb[0].mxu0 %v2365
  %v2438 = vpop.f32.mrb[0].mxu0
  %v2439 = vadd.f32 0.0, %v2438
  %v2440 = vpop.f32.mrb[0].mxu0
  %2441 = vdwg.mxu0
  %2444 = vrot.lane.b32.xlu0 %v2272, 8
  %v2445 = vpop.permute.xlu0 %2444
  %2446 = vrot.lane.b32.xlu0 %v2277, 8
  %v2447 = vpop.permute.xlu0 %2446
  %2452 = vrot.lane.b32.xlu0 %v2353, 16
  %v2453 = vpop.permute.xlu0 %2452
  %2454 = vrot.lane.b32.xlu0 %v2358, 16
  %v2455 = vpop.permute.xlu0 %2454
  %2460 = vrot.lane.b32.xlu0 %v2434, 24
  %v2461 = vpop.permute.xlu0 %2460
  %2462 = vrot.lane.b32.xlu0 %v2439, 24
  %v2463 = vpop.permute.xlu0 %2462
  %v2466 = vsel %vm293, %v2191, %v2445
  %v2467 = vsel %vm293, %v2196, %v2447
  %v2468 = vsel %vm638, %v2466, %v2453
  %v2469 = vsel %vm638, %v2467, %v2455
  %v2470 = vsel %vm1079, %v2468, %v2461
  %v2471 = vsel %vm1079, %v2469, %v2463
  %s2472 = scalar_lea.vmem %s7, 32
  %v2473 = vld [vmem:[%s2472] sm:$0xff]
  %v2474 = vld [vmem:[%s2472 + $0x8] sm:$0xff]
  %v2475 = vld [vmem:[%s2472 + $0x10] sm:$0xff]
  %v2476 = vld [vmem:[%s2472 + $0x18] sm:$0xff]
  %s2477 = scalar_lea.vmem %s8, 1
  %v2478 = vld [vmem:[%s2477] sm:$0x1]
  %v2480 = vlaneseq
  %v2481 = vshrl.u32 %v2480, 7
  %v2482 = vsub.s32 0, %v2481
  %v2483 = vrot.slane %v2478, %v2482
  %v2486 = vsel %vm81, %v2470, 0
  %v2489 = vsel %vm81, %v2471, 0
  %2491 = vmatprep.subr.mxu0 0.0
  %2492 = vmatpush1.msra.mxu0 %v2473
  %2493 = vmatprep.subr.mxu0 0.0
  %2494 = vmatpush1.msra.mxu0 %v2474
  %2495 = vmatprep.subr.mxu0 0.0
  %2496 = vmatpush1.msra.mxu0 %v2475
  %2497 = vmatprep.subr.mxu0 0.0
  %2498 = vmatpush1.msra.mxu0 %v2476
  %2499 = vmatprep.subr.mxu0 0.0
  %2500 = vmatpush1.msra.mxu0 0.0
  %2501 = vmatprep.subr.mxu0 0.0
  %2502 = vmatpush1.msra.mxu0 0.0
  %2503 = vmatprep.subr.mxu0 0.0
  %2504 = vmatpush1.msra.mxu0 0.0
  %2505 = vmatprep.subr.mxu0 0.0
  %2506 = vmatpush1.msra.mxu0 0.0
  %2507 = vmatprep.subr.mxu0 0.0
  %2508 = vmatpush1.msra.mxu0 0.0
  %2509 = vmatprep.subr.mxu0 0.0
  %2510 = vmatpush1.msra.mxu0 0.0
  %2511 = vmatprep.subr.mxu0 0.0
  %2512 = vmatpush1.msra.mxu0 0.0
  %2513 = vmatprep.subr.mxu0 0.0
  %2514 = vmatpush1.msra.mxu0 0.0
  %2515 = vmatprep.subr.mxu0 0.0
  %2516 = vmatpush1.msra.mxu0 0.0
  %2517 = vmatprep.subr.mxu0 0.0
  %2518 = vmatpush1.msra.mxu0 0.0
  %2519 = vmatprep.subr.mxu0 0.0
  %2520 = vmatpush1.msra.mxu0 0.0
  %2521 = vmatprep.subr.mxu0 0.0
  %2522 = vmatpush1.msra.mxu0 0.0
  %2523 = vmatprep.subr.mxu0 0.0
  %2524 = vmatpush1.msra.mxu0 0.0
  %2525 = vmatprep.subr.mxu0 0.0
  %2526 = vmatpush1.msra.mxu0 0.0
  %2527 = vmatprep.subr.mxu0 0.0
  %2528 = vmatpush1.msra.mxu0 0.0
  %2529 = vmatprep.subr.mxu0 0.0
  %2530 = vmatpush1.msra.mxu0 0.0
  %2531 = vmatprep.subr.mxu0 0.0
  %2532 = vmatpush1.msra.mxu0 0.0
  %2533 = vmatprep.subr.mxu0 0.0
  %2534 = vmatpush1.msra.mxu0 0.0
  %2535 = vmatprep.subr.mxu0 0.0
  %2536 = vmatpush1.msra.mxu0 0.0
  %2537 = vmatprep.subr.mxu0 0.0
  %2538 = vmatpush1.msra.mxu0 0.0
  %2539 = vmatprep.subr.mxu0 0.0
  %2540 = vmatpush1.msra.mxu0 0.0
  %2541 = vmatprep.subr.mxu0 0.0
  %2542 = vmatpush1.msra.mxu0 0.0
  %2543 = vmatprep.subr.mxu0 0.0
  %2544 = vmatpush1.msra.mxu0 0.0
  %2545 = vmatprep.subr.mxu0 0.0
  %2546 = vmatpush1.msra.mxu0 0.0
  %2547 = vmatprep.subr.mxu0 0.0
  %2548 = vmatpush1.msra.mxu0 0.0
  %2549 = vmatprep.subr.mxu0 0.0
  %2550 = vmatpush1.msra.mxu0 0.0
  %2551 = vmatprep.subr.mxu0 0.0
  %2552 = vmatpush1.msra.mxu0 0.0
  %2553 = vmatprep.subr.mxu0 0.0
  %2554 = vmatpush1.msra.mxu0 0.0
  %2555 = vmatprep.mubr.f32.mxu0 0.0
  %2556 = vmatmul.mubr.f32.gmra.mrb[0].mxu0 %v2486
  %v2557 = vpop.f32.mrb[0].mxu0
  %v2558 = vadd.f32 %v2483, %v2557
  %v2559 = vpop.f32.mrb[0].mxu0
  %2560 = vmatprep.mubr.f32.mxu0 0.0
  %2561 = vmatmul.mubr.f32.gmra.mrb[0].mxu0 %v2489
  %v2562 = vpop.f32.mrb[0].mxu0
  %v2563 = vadd.f32 %v2483, %v2562
  %v2564 = vpop.f32.mrb[0].mxu0
  %2565 = vdwg.mxu0
  %v2566 = vadd.f32 %v1456, %v2558
  %v2567 = vadd.f32 %v1457, %v2563
  %s2568 = scalar_lea.vmem %s9, 1
  %v2569 = vld [vmem:[%s2568] sm:$0x1]
  %s2570 = scalar_lea.vmem %s10, 1
  %v2571 = vld [vmem:[%s2570] sm:$0x1]
  %v2572 = vsel %vm81, %v2566, 0.0
  %2573 = vadd.xlane.f32.xlu0 %v2572
  %v2574 = vpop.xlane.xlu0 %2573
  %v2575 = vsel %vm81, %v2567, 0.0
  %2576 = vadd.xlane.f32.xlu0 %v2575
  %v2577 = vpop.xlane.xlu0 %2576
  %v2578 = vmul.f32 %v2574, %v1184
  %v2579 = vmul.f32 %v2577, %v1184
  %v2580 = vsub.f32 %v2566, %v2578
  %v2581 = vsub.f32 %v2567, %v2579
  %v2582 = vmul.f32 %v2580, %v2580
  %v2583 = vmul.f32 %v2581, %v2581
  %v2584 = vsel %vm81, %v2582, 0.0
  %2585 = vadd.xlane.f32.xlu0 %v2584
  %v2586 = vpop.xlane.xlu0 %2585
  %v2587 = vsel %vm81, %v2583, 0.0
  %2588 = vadd.xlane.f32.xlu0 %v2587
  %v2589 = vpop.xlane.xlu0 %2588
  %v2590 = vmul.f32 %v2586, %v1184
  %v2591 = vmul.f32 %v2589, %v1184
  %v2592 = vadd.f32 %v2590, 1e-05
  %v2593 = vadd.f32 %v2591, 1e-05
  %v2594 = vrsqrt.pop %v2592
  %v2595 = vrsqrt.pop %v2593
  %v2596 = vmul.f32 %v2580, %v2594
  %v2597 = vmul.f32 %v2581, %v2595
  %v2599 = vlaneseq
  %v2600 = vshrl.u32 %v2599, 7
  %v2601 = vsub.s32 0, %v2600
  %v2602 = vrot.slane %v2569, %v2601
  %v2604 = vmul.f32 %v2596, %v2602
  %v2605 = vmul.f32 %v2597, %v2602
  %v2607 = vlaneseq
  %v2608 = vshrl.u32 %v2607, 7
  %v2609 = vsub.s32 0, %v2608
  %v2610 = vrot.slane %v2571, %v2609
  %v2612 = vadd.f32 %v2604, %v2610
  %v2613 = vadd.f32 %v2605, %v2610
  %s2614 = scalar_lea.vmem %s11, 32
  %v2615 = vld [vmem:[%s2614] sm:$0xff]
  %v2616 = vld [vmem:[%s2614 + $0x8] sm:$0xff]
  %v2617 = vld [vmem:[%s2614 + $0x10] sm:$0xff]
  %v2618 = vld [vmem:[%s2614 + $0x18] sm:$0xff]
  %s2619 = scalar_lea.vmem %s12, 1
  %v2620 = vld [vmem:[%s2619] sm:$0x1]
  %v2622 = vlaneseq
  %v2623 = vshrl.u32 %v2622, 7
  %v2624 = vsub.s32 0, %v2623
  %v2625 = vrot.slane %v2620, %v2624
  %v2628 = vsel %vm81, %v2612, 0
  %v2631 = vsel %vm81, %v2613, 0
  %2633 = vmatprep.subr.mxu0 0.0
  %2634 = vmatpush1.msra.mxu0 %v2615
  %2635 = vmatprep.subr.mxu0 0.0
  %2636 = vmatpush1.msra.mxu0 %v2616
  %2637 = vmatprep.subr.mxu0 0.0
  %2638 = vmatpush1.msra.mxu0 %v2617
  %2639 = vmatprep.subr.mxu0 0.0
  %2640 = vmatpush1.msra.mxu0 %v2618
  %2641 = vmatprep.subr.mxu0 0.0
  %2642 = vmatpush1.msra.mxu0 0.0
  %2643 = vmatprep.subr.mxu0 0.0
  %2644 = vmatpush1.msra.mxu0 0.0
  %2645 = vmatprep.subr.mxu0 0.0
  %2646 = vmatpush1.msra.mxu0 0.0
  %2647 = vmatprep.subr.mxu0 0.0
  %2648 = vmatpush1.msra.mxu0 0.0
  %2649 = vmatprep.subr.mxu0 0.0
  %2650 = vmatpush1.msra.mxu0 0.0
  %2651 = vmatprep.subr.mxu0 0.0
  %2652 = vmatpush1.msra.mxu0 0.0
  %2653 = vmatprep.subr.mxu0 0.0
  %2654 = vmatpush1.msra.mxu0 0.0
  %2655 = vmatprep.subr.mxu0 0.0
  %2656 = vmatpush1.msra.mxu0 0.0
  %2657 = vmatprep.subr.mxu0 0.0
  %2658 = vmatpush1.msra.mxu0 0.0
  %2659 = vmatprep.subr.mxu0 0.0
  %2660 = vmatpush1.msra.mxu0 0.0
  %2661 = vmatprep.subr.mxu0 0.0
  %2662 = vmatpush1.msra.mxu0 0.0
  %2663 = vmatprep.subr.mxu0 0.0
  %2664 = vmatpush1.msra.mxu0 0.0
  %2665 = vmatprep.subr.mxu0 0.0
  %2666 = vmatpush1.msra.mxu0 0.0
  %2667 = vmatprep.subr.mxu0 0.0
  %2668 = vmatpush1.msra.mxu0 0.0
  %2669 = vmatprep.subr.mxu0 0.0
  %2670 = vmatpush1.msra.mxu0 0.0
  %2671 = vmatprep.subr.mxu0 0.0
  %2672 = vmatpush1.msra.mxu0 0.0
  %2673 = vmatprep.subr.mxu0 0.0
  %2674 = vmatpush1.msra.mxu0 0.0
  %2675 = vmatprep.subr.mxu0 0.0
  %2676 = vmatpush1.msra.mxu0 0.0
  %2677 = vmatprep.subr.mxu0 0.0
  %2678 = vmatpush1.msra.mxu0 0.0
  %2679 = vmatprep.subr.mxu0 0.0
  %2680 = vmatpush1.msra.mxu0 0.0
  %2681 = vmatprep.subr.mxu0 0.0
  %2682 = vmatpush1.msra.mxu0 0.0
  %2683 = vmatprep.subr.mxu0 0.0
  %2684 = vmatpush1.msra.mxu0 0.0
  %2685 = vmatprep.subr.mxu0 0.0
  %2686 = vmatpush1.msra.mxu0 0.0
  %2687 = vmatprep.subr.mxu0 0.0
  %2688 = vmatpush1.msra.mxu0 0.0
  %2689 = vmatprep.subr.mxu0 0.0
  %2690 = vmatpush1.msra.mxu0 0.0
  %2691 = vmatprep.subr.mxu0 0.0
  %2692 = vmatpush1.msra.mxu0 0.0
  %2693 = vmatprep.subr.mxu0 0.0
  %2694 = vmatpush1.msra.mxu0 0.0
  %2695 = vmatprep.subr.mxu0 0.0
  %2696 = vmatpush1.msra.mxu0 0.0
  %2697 = vmatprep.mubr.f32.mxu0 0.0
  %2698 = vmatmul.mubr.f32.gmra.mrb[0].mxu0 %v2628
  %v2699 = vpop.f32.mrb[0].mxu0
  %v2700 = vadd.f32 %v2625, %v2699
  %v2701 = vpop.f32.mrb[0].mxu0
  %2702 = vmatprep.mubr.f32.mxu0 0.0
  %2703 = vmatmul.mubr.f32.gmra.mrb[0].mxu0 %v2631
  %v2704 = vpop.f32.mrb[0].mxu0
  %v2705 = vadd.f32 %v2625, %v2704
  %v2706 = vpop.f32.mrb[0].mxu0
  %2707 = vdwg.mxu0
  %v2708 = vmax.f32 %v2700, 0.0
  %v2709 = vmax.f32 %v2705, 0.0
  %s2710 = scalar_lea.vmem %s13, 64
  %v2711 = vld [vmem:[%s2710] sm:$0xff]
  %v2712 = vld [vmem:[%s2710 + $0x8] sm:$0xff]
  %v2713 = vld [vmem:[%s2710 + $0x10] sm:$0xff]
  %v2714 = vld [vmem:[%s2710 + $0x18] sm:$0xff]
  %v2715 = vld [vmem:[%s2710 + $0x20] sm:$0xff]
  %v2716 = vld [vmem:[%s2710 + $0x28] sm:$0xff]
  %v2717 = vld [vmem:[%s2710 + $0x30] sm:$0xff]
  %v2718 = vld [vmem:[%s2710 + $0x38] sm:$0xff]
  %s2719 = scalar_lea.vmem %s14, 1
  %v2720 = vld [vmem:[%s2719] sm:$0x1]
  %v2722 = vlaneseq
  %v2723 = vshrl.u32 %v2722, 7
  %v2724 = vsub.s32 0, %v2723
  %v2725 = vrot.slane %v2720, %v2724
  %v2728 = vsel %vm1330, %v2708, 0
  %v2731 = vsel %vm1330, %v2709, 0
  %2733 = vmatprep.subr.mxu0 0.0
  %2734 = vmatpush1.msra.mxu0 %v2711
  %2735 = vmatprep.subr.mxu0 0.0
  %2736 = vmatpush1.msra.mxu0 %v2712
  %2737 = vmatprep.subr.mxu0 0.0
  %2738 = vmatpush1.msra.mxu0 %v2713
  %2739 = vmatprep.subr.mxu0 0.0
  %2740 = vmatpush1.msra.mxu0 %v2714
  %2741 = vmatprep.subr.mxu0 0.0
  %2742 = vmatpush1.msra.mxu0 %v2715
  %2743 = vmatprep.subr.mxu0 0.0
  %2744 = vmatpush1.msra.mxu0 %v2716
  %2745 = vmatprep.subr.mxu0 0.0
  %2746 = vmatpush1.msra.mxu0 %v2717
  %2747 = vmatprep.subr.mxu0 0.0
  %2748 = vmatpush1.msra.mxu0 %v2718
  %2749 = vmatprep.subr.mxu0 0.0
  %2750 = vmatpush1.msra.mxu0 0.0
  %2751 = vmatprep.subr.mxu0 0.0
  %2752 = vmatpush1.msra.mxu0 0.0
  %2753 = vmatprep.subr.mxu0 0.0
  %2754 = vmatpush1.msra.mxu0 0.0
  %2755 = vmatprep.subr.mxu0 0.0
  %2756 = vmatpush1.msra.mxu0 0.0
  %2757 = vmatprep.subr.mxu0 0.0
  %2758 = vmatpush1.msra.mxu0 0.0
  %2759 = vmatprep.subr.mxu0 0.0
  %2760 = vmatpush1.msra.mxu0 0.0
  %2761 = vmatprep.subr.mxu0 0.0
  %2762 = vmatpush1.msra.mxu0 0.0
  %2763 = vmatprep.subr.mxu0 0.0
  %2764 = vmatpush1.msra.mxu0 0.0
  %2765 = vmatprep.subr.mxu0 0.0
  %2766 = vmatpush1.msra.mxu0 0.0
  %2767 = vmatprep.subr.mxu0 0.0
  %2768 = vmatpush1.msra.mxu0 0.0
  %2769 = vmatprep.subr.mxu0 0.0
  %2770 = vmatpush1.msra.mxu0 0.0
  %2771 = vmatprep.subr.mxu0 0.0
  %2772 = vmatpush1.msra.mxu0 0.0
  %2773 = vmatprep.subr.mxu0 0.0
  %2774 = vmatpush1.msra.mxu0 0.0
  %2775 = vmatprep.subr.mxu0 0.0
  %2776 = vmatpush1.msra.mxu0 0.0
  %2777 = vmatprep.subr.mxu0 0.0
  %2778 = vmatpush1.msra.mxu0 0.0
  %2779 = vmatprep.subr.mxu0 0.0
  %2780 = vmatpush1.msra.mxu0 0.0
  %2781 = vmatprep.subr.mxu0 0.0
  %2782 = vmatpush1.msra.mxu0 0.0
  %2783 = vmatprep.subr.mxu0 0.0
  %2784 = vmatpush1.msra.mxu0 0.0
  %2785 = vmatprep.subr.mxu0 0.0
  %2786 = vmatpush1.msra.mxu0 0.0
  %2787 = vmatprep.subr.mxu0 0.0
  %2788 = vmatpush1.msra.mxu0 0.0
  %2789 = vmatprep.subr.mxu0 0.0
  %2790 = vmatpush1.msra.mxu0 0.0
  %2791 = vmatprep.subr.mxu0 0.0
  %2792 = vmatpush1.msra.mxu0 0.0
  %2793 = vmatprep.subr.mxu0 0.0
  %2794 = vmatpush1.msra.mxu0 0.0
  %2795 = vmatprep.subr.mxu0 0.0
  %2796 = vmatpush1.msra.mxu0 0.0
  %2797 = vmatprep.mubr.f32.mxu0 0.0
  %2798 = vmatmul.mubr.f32.gmra.mrb[0].mxu0 %v2728
  %v2799 = vpop.f32.mrb[0].mxu0
  %v2800 = vadd.f32 %v2725, %v2799
  %v2801 = vpop.f32.mrb[0].mxu0
  %2802 = vmatprep.mubr.f32.mxu0 0.0
  %2803 = vmatmul.mubr.f32.gmra.mrb[0].mxu0 %v2731
  %v2804 = vpop.f32.mrb[0].mxu0
  %v2805 = vadd.f32 %v2725, %v2804
  %v2806 = vpop.f32.mrb[0].mxu0
  %2807 = vdwg.mxu0
  %v2808 = vadd.f32 %v2612, %v2800
  %v2809 = vadd.f32 %v2613, %v2805
  %s2810 = scalar_lea.vmem %s15, 1
  %v2811 = vld [vmem:[%s2810] sm:$0x1]
  %s2812 = scalar_lea.vmem %s16, 1
  %v2813 = vld [vmem:[%s2812] sm:$0x1]
  %v2814 = vsel %vm81, %v2808, 0.0
  %2815 = vadd.xlane.f32.xlu0 %v2814
  %v2816 = vpop.xlane.xlu0 %2815
  %v2817 = vsel %vm81, %v2809, 0.0
  %2818 = vadd.xlane.f32.xlu0 %v2817
  %v2819 = vpop.xlane.xlu0 %2818
  %v2820 = vmul.f32 %v2816, %v1184
  %v2821 = vmul.f32 %v2819, %v1184
  %v2822 = vsub.f32 %v2808, %v2820
  %v2823 = vsub.f32 %v2809, %v2821
  %v2824 = vmul.f32 %v2822, %v2822
  %v2825 = vmul.f32 %v2823, %v2823
  %v2826 = vsel %vm81, %v2824, 0.0
  %2827 = vadd.xlane.f32.xlu0 %v2826
  %v2828 = vpop.xlane.xlu0 %2827
  %v2829 = vsel %vm81, %v2825, 0.0
  %2830 = vadd.xlane.f32.xlu0 %v2829
  %v2831 = vpop.xlane.xlu0 %2830
  %v2832 = vmul.f32 %v2828, %v1184
  %v2833 = vmul.f32 %v2831, %v1184
  %v2834 = vadd.f32 %v2832, 1e-05
  %v2835 = vadd.f32 %v2833, 1e-05
  %v2836 = vrsqrt.pop %v2834
  %v2837 = vrsqrt.pop %v2835
  %v2838 = vmul.f32 %v2822, %v2836
  %v2839 = vmul.f32 %v2823, %v2837
  %v2841 = vlaneseq
  %v2842 = vshrl.u32 %v2841, 7
  %v2843 = vsub.s32 0, %v2842
  %v2844 = vrot.slane %v2811, %v2843
  %v2846 = vmul.f32 %v2838, %v2844
  %v2847 = vmul.f32 %v2839, %v2844
  %v2849 = vlaneseq
  %v2850 = vshrl.u32 %v2849, 7
  %v2851 = vsub.s32 0, %v2850
  %v2852 = vrot.slane %v2813, %v2851
  %v2854 = vadd.f32 %v2846, %v2852
  %v2855 = vadd.f32 %v2847, %v2852
  %v2856 = vld [vmem:[%s17] sm:$0x1]
  %v2857 = vld [vmem:[%s18] sm:$0x1]
  %v2858 = vsel %vm81, %v2854, 0.0
  %2859 = vadd.xlane.f32.xlu0 %v2858
  %v2860 = vpop.xlane.xlu0 %2859
  %v2861 = vsel %vm81, %v2855, 0.0
  %2862 = vadd.xlane.f32.xlu0 %v2861
  %v2863 = vpop.xlane.xlu0 %2862
  %v2864 = vmul.f32 %v2860, %v1184
  %v2865 = vmul.f32 %v2863, %v1184
  %v2866 = vsub.f32 %v2854, %v2864
  %v2867 = vsub.f32 %v2855, %v2865
  %v2868 = vmul.f32 %v2866, %v2866
  %v2869 = vmul.f32 %v2867, %v2867
  %v2870 = vsel %vm81, %v2868, 0.0
  %2871 = vadd.xlane.f32.xlu0 %v2870
  %v2872 = vpop.xlane.xlu0 %2871
  %v2873 = vsel %vm81, %v2869, 0.0
  %2874 = vadd.xlane.f32.xlu0 %v2873
  %v2875 = vpop.xlane.xlu0 %2874
  %v2876 = vmul.f32 %v2872, %v1184
  %v2877 = vmul.f32 %v2875, %v1184
  %v2878 = vadd.f32 %v2876, 1e-05
  %v2879 = vadd.f32 %v2877, 1e-05
  %v2880 = vrsqrt.pop %v2878
  %v2881 = vrsqrt.pop %v2879
  %v2882 = vmul.f32 %v2866, %v2880
  %v2883 = vmul.f32 %v2867, %v2881
  %v2885 = vlaneseq
  %v2886 = vshrl.u32 %v2885, 7
  %v2887 = vsub.s32 0, %v2886
  %v2888 = vrot.slane %v2856, %v2887
  %v2890 = vmul.f32 %v2882, %v2888
  %v2891 = vmul.f32 %v2883, %v2888
  %v2893 = vlaneseq
  %v2894 = vshrl.u32 %v2893, 7
  %v2895 = vsub.s32 0, %v2894
  %v2896 = vrot.slane %v2857, %v2895
  %v2898 = vadd.f32 %v2890, %v2896
  %v2899 = vadd.f32 %v2891, %v2896
  %2900 = vst.msk [vmem:[%s19] sm:$0xff] %vm81, %v2898
  %2901 = vst.msk [vmem:[%s19 + $0x8] sm:$0xff] %vm81, %v2899
  // Predicated region
  $region78: #{transformer_encoder.1} parent=0 // pred_check
    _
  $region79: #{transformer_encoder.1} parent=0 // pred_check_branch
    %2903 = sbr.rel (0) target = $region81
  $region80: #{transformer_encoder.1} parent=0 // pred_region
    _
  $region81: #{transformer_encoder.1} parent=0 // pred_fallthru
    _
  // Predicated region
  $region82: #{transformer_encoder.1} parent=0 // pred_check
    _
  $region83: #{transformer_encoder.1} parent=0 // pred_check_branch
    %2905 = sbr.rel (0) target = $region85
  $region84: #{transformer_encoder.1} parent=0 // pred_region
    _
  $region85: #{transformer_encoder.1} parent=0 // pred_fallthru
    _

</llo_original>
